<compile_context>
chip_gen: v5e
topology: v5e:2x2
jax: 0.10.0
libtpu: 0.0.40
codegen_flags: <defaults>
</compile_context>

<pallas_src>
import jax
import jax.numpy as jnp
from jax import lax
from jax.experimental import pallas as pl
from jax.experimental.pallas import tpu as pltpu


# ----------------------------------------------------------------------------
# Pallas kernels
# ----------------------------------------------------------------------------
def _conv_pool_kernel(a0_ref, a1_ref, a2_ref, a3_ref, w_ref, b_ref, o_ref):
    """Fused conv (im2col matmul) + bias + ReLU + 2x2 max-pool.

    a{0..3}: (tm, K) im2col patches for the four pool-window corners.
    w: (K, N) packed conv weights, b: (1, N) bias.
    o[m] = relu(max_c(a_c[m] @ w) + b)  ==  2x2-max-pooled relu(conv)
    (the bias is shared by the four corners and relu/max commute).
    """
    w = w_ref[...]
    acc = jnp.dot(a0_ref[...], w, preferred_element_type=jnp.float32)
    acc = jnp.maximum(acc, jnp.dot(a1_ref[...], w, preferred_element_type=jnp.float32))
    acc = jnp.maximum(acc, jnp.dot(a2_ref[...], w, preferred_element_type=jnp.float32))
    acc = jnp.maximum(acc, jnp.dot(a3_ref[...], w, preferred_element_type=jnp.float32))
    o_ref[...] = jnp.maximum(acc + b_ref[...], 0.0).astype(o_ref.dtype)


def _fc_head_kernel(x_ref, w1_ref, b1_ref, w2_ref, b2_ref, w3_ref, b3_ref, o_ref):
    """Fused fc1+ReLU -> fc2+ReLU -> fc3. Intermediates never leave VMEM."""
    h = jnp.dot(x_ref[...], w1_ref[...], preferred_element_type=jnp.float32)
    h = jnp.maximum(h + b1_ref[...], 0.0)
    h = jnp.dot(h, w2_ref[...], preferred_element_type=jnp.float32)
    h = jnp.maximum(h + b2_ref[...], 0.0)
    h = jnp.dot(h, w3_ref[...], preferred_element_type=jnp.float32)
    o_ref[...] = (h + b3_ref[...]).astype(o_ref.dtype)


# ----------------------------------------------------------------------------
# pallas_call wrappers
# ----------------------------------------------------------------------------
def _pick_tm(m, k, n_mats, budget_bytes=16 * 1024 * 1024):
    """Largest M-block (from a fixed menu) that divides m and keeps the
    double-buffered input tiles under ~budget_bytes (sized for v7x VMEM)."""
    cap = max(8, budget_bytes // (n_mats * k * 4 * 2))
    for tm in (512, 256, 128, 64, 32, 16, 8):
        if tm <= cap and m % tm == 0:
            return tm
    return m


def conv_relu_pool(corner_mats, w, b):
    """corner_mats: list of 4 (M, K) patch matrices; w: (K, N); b: (1, N)."""
    m, k = corner_mats[0].shape
    k2, n = w.shape
    assert k == k2 and b.shape == (1, n)
    tm = _pick_tm(m, k, n_mats=4)
    grid = (m // tm,)
    a_spec = pl.BlockSpec((tm, k), lambda i: (i, 0))
    flops = 2 * 4 * m * k * n
    bytes_accessed = 4 * (4 * m * k + k * n + n + m * n)
    return pl.pallas_call(
        _conv_pool_kernel,
        out_shape=jax.ShapeDtypeStruct((m, n), jnp.float32),
        grid=grid,
        in_specs=[a_spec, a_spec, a_spec, a_spec,
                  pl.BlockSpec((k, n), lambda i: (0, 0)),
                  pl.BlockSpec((1, n), lambda i: (0, 0))],
        out_specs=pl.BlockSpec((tm, n), lambda i: (i, 0)),
        compiler_params=pltpu.CompilerParams(dimension_semantics=("parallel",)),
        cost_estimate=pl.CostEstimate(flops=flops, transcendentals=0,
                                      bytes_accessed=bytes_accessed),
    )(*corner_mats, w, b)


def fc_head(x, w1, b1, w2, b2, w3, b3):
    """Fused 3-layer FC head. x: (M, 512); all weights pre-padded to 128 lanes."""
    m, k = x.shape
    n = w3.shape[1]
    tm = _pick_tm(m, k, n_mats=1)
    grid = (m // tm,)
    flops = 2 * m * (k * w1.shape[1] + w1.shape[1] * w2.shape[1] + w2.shape[1] * n)
    bytes_accessed = 4 * (m * k + m * n + w1.size + w2.size + w3.size
                          + b1.size + b2.size + b3.size)
    return pl.pallas_call(
        _fc_head_kernel,
        out_shape=jax.ShapeDtypeStruct((m, n), jnp.float32),
        grid=grid,
        in_specs=[pl.BlockSpec((tm, k), lambda i: (i, 0)),
                  pl.BlockSpec(w1.shape, lambda i: (0, 0)),
                  pl.BlockSpec(b1.shape, lambda i: (0, 0)),
                  pl.BlockSpec(w2.shape, lambda i: (0, 0)),
                  pl.BlockSpec(b2.shape, lambda i: (0, 0)),
                  pl.BlockSpec(w3.shape, lambda i: (0, 0)),
                  pl.BlockSpec(b3.shape, lambda i: (0, 0))],
        out_specs=pl.BlockSpec((tm, n), lambda i: (i, 0)),
        compiler_params=pltpu.CompilerParams(dimension_semantics=("parallel",)),
        cost_estimate=pl.CostEstimate(flops=flops, transcendentals=0,
                                      bytes_accessed=bytes_accessed),
    )(x, w1, b1, w2, b2, w3, b3)


# ----------------------------------------------------------------------------
# XLA glue: per-corner im2col (slices/stack only; all matmuls run in Pallas)
# ----------------------------------------------------------------------------
def corner_patches(x_nhwc, k, stride, k_pad):
    """Four im2col matrices, one per 2x2 pool-window corner.

    Corner (di,dj), pooled position (pi,pj) -> conv-output position
    (2*pi+di, 2*pj+dj) -> input window top-left (stride*(2*pi+di), ...).
    Each matrix is (N*ohp*owp, k_pad) f32, zero-padded on K for lane density.
    Column order is (ki, kj, c), matching the packed weight matrices.
    """
    n, h, w, c = x_nhwc.shape
    oh = (h - k) // stride + 1
    ow = (w - k) // stride + 1
    ohp, owp = oh // 2, ow // 2
    s = 2 * stride
    kk = k * k * c
    mats = []
    for di in range(2):
        for dj in range(2):
            taps = []
            for ki in range(k):
                for kj in range(k):
                    i0 = stride * di + ki
                    j0 = stride * dj + kj
                    taps.append(x_nhwc[:, i0:i0 + s * (ohp - 1) + 1:s,
                                       j0:j0 + s * (owp - 1) + 1:s, :])
            p = jnp.stack(taps, axis=3).reshape(n * ohp * owp, kk)
            if k_pad > kk:
                p = jnp.pad(p, ((0, 0), (0, k_pad - kk)))
            mats.append(p)
    return mats, (n, ohp, owp)


# ----------------------------------------------------------------------------
# Deterministic parameter init (mirrors LeNet5_funky_fix_init.__init__)
# ----------------------------------------------------------------------------
def init_params(key):
    ks = jax.random.split(key, 10)

    # Laws texture filters for conv1[:25]
    L5 = jnp.array([1, 4, 6, 4, 1], jnp.float32)
    E5 = jnp.array([-1, -2, 0, 2, 1], jnp.float32)
    S5 = jnp.array([-1, 0, 2, 0, -1], jnp.float32)
    R5 = jnp.array([1, -4, 6, -4, 1], jnp.float32)
    W5 = jnp.array([-1, 2, 0, -2, 1], jnp.float32)
    vecs = [L5, E5, S5, R5, W5]
    laws = jnp.stack([jnp.outer(a, b) for a in vecs for b in vecs])   # (25,5,5)
    laws = jnp.broadcast_to(laws[:, None, :, :], (25, 3, 5, 5))       # (25,3,5,5)

    # conv1[25:] : kaiming_normal_(mode='fan_out', relu) on a (39,3,5,5) slice
    fan_out = 39 * 5 * 5
    std = (2.0 / fan_out) ** 0.5
    rest = std * jax.random.normal(ks[0], (39, 3, 5, 5), jnp.float32)
    conv1_w = jnp.concatenate([laws, rest], axis=0)                   # (64,3,5,5)
    conv1_b = jax.random.uniform(ks[1], (64,), jnp.float32,
                                 -1.0 / (75 ** 0.5), 1.0 / (75 ** 0.5))

    def uni(k, shape, fan_in):
        lim = 1.0 / (fan_in ** 0.5)
        return jax.random.uniform(k, shape, jnp.float32, -lim, lim)

    conv2_w = uni(ks[2], (128, 64, 5, 5), 64 * 25)
    conv2_b = uni(ks[3], (128,), 64 * 25)
    fc1_w = uni(ks[4], (120, 512), 512)
    fc1_b = uni(ks[5], (120,), 512)
    fc2_w = uni(ks[6], (50, 120), 120)
    fc2_b = uni(ks[7], (50,), 120)
    fc3_w = uni(ks[8], (10, 50), 50)
    fc3_b = uni(ks[9], (10,), 50)

    return dict(conv1_w=conv1_w, conv1_b=conv1_b,
                conv2_w=conv2_w, conv2_b=conv2_b,
                fc1_w=fc1_w, fc1_b=fc1_b,
                fc2_w=fc2_w, fc2_b=fc2_b,
                fc3_w=fc3_w, fc3_b=fc3_b)


def prepare_params(params):
    """One-time packing: pre-transposed, lane-dense (128-padded) matmul matrices."""
    # conv1: (O=64,Cin=3,5,5) -> rows in (ki,kj,c) order (75,64) -> pad to (128,128)
    w1 = jnp.transpose(params["conv1_w"], (2, 3, 1, 0)).reshape(75, 64)
    w1 = jnp.pad(w1, ((0, 128 - 75), (0, 128 - 64)))
    b1 = jnp.pad(params["conv1_b"], (0, 128 - 64)).reshape(1, 128)

    # conv2: (128,64,5,5) -> (5,5,64,128); pad Cin 64->128 with zero rows to
    # match conv1's zero-padded output channels -> (3200,128) (25*128 lanes).
    w2 = jnp.transpose(params["conv2_w"], (2, 3, 1, 0))          # (5,5,64,128)
    w2 = jnp.pad(w2, ((0, 0), (0, 0), (0, 64), (0, 0)))          # (5,5,128,128)
    w2 = w2.reshape(25 * 128, 128)
    b2 = params["conv2_b"].reshape(1, 128)

    # fc1: fold the NCHW flatten permutation into the weight so the kernel can
    # consume the NHWC-flattened (h,w,c) activation directly; pad 120 -> 128.
    f1 = params["fc1_w"].reshape(120, 128, 2, 2)                 # (out, C, H, W)
    f1 = jnp.transpose(f1, (2, 3, 1, 0)).reshape(512, 120)       # rows in (H,W,C)
    f1 = jnp.pad(f1, ((0, 0), (0, 128 - 120)))
    fb1 = jnp.pad(params["fc1_b"], (0, 128 - 120)).reshape(1, 128)

    f2 = jnp.pad(params["fc2_w"].T, ((0, 128 - 120), (0, 128 - 50)))   # (128,128)
    fb2 = jnp.pad(params["fc2_b"], (0, 128 - 50)).reshape(1, 128)

    f3 = jnp.pad(params["fc3_w"].T, ((0, 128 - 50), (0, 128 - 10)))    # (128,128)
    fb3 = jnp.pad(params["fc3_b"], (0, 128 - 10)).reshape(1, 128)

    return dict(w1=w1, b1=b1, w2=w2, b2=b2,
                f1=f1, fb1=fb1, f2=f2, fb2=fb2, f3=f3, fb3=fb3)


# ----------------------------------------------------------------------------
# Forward pass (matches torch forward: conv-relu-pool x2, flatten, 3 fc)
# ----------------------------------------------------------------------------
@jax.jit
def lenet5_forward(x_nchw, mp):
    x = jnp.transpose(x_nchw, (0, 2, 3, 1)).astype(jnp.float32)   # NCHW -> NHWC

    # conv1(3->64, k5, s2) + ReLU + 2x2 max-pool, fused. Output channels are
    # zero-padded 64->128 (via the padded weights/bias) for lane-dense stores.
    mats, (n, oh, ow) = corner_patches(x, 5, 2, 128)
    y = conv_relu_pool(mats, mp["w1"], mp["b1"])                  # (N*8*8, 128)
    y = y.reshape(n, oh, ow, 128)

    # conv2(64->128, k5, s1) + ReLU + 2x2 max-pool, fused. Its weight matrix
    # has zero rows for conv1's padded channels, so no channel slice is needed.
    mats, (n, oh, ow) = corner_patches(y, 5, 1, 25 * 128)
    y = conv_relu_pool(mats, mp["w2"], mp["b2"])                  # (N*2*2, 128)

    # Fused FC head. The NCHW flatten permutation is baked into mp["f1"], so
    # the NHWC-flattened activation is consumed directly; output is padded to
    # 128 lanes, real logits are the first 10 columns.
    y = y.reshape(n, oh * ow * 128)                               # (N, 512)
    out = fc_head(y, mp["f1"], mp["fb1"], mp["f2"], mp["fb2"], mp["f3"], mp["fb3"])
    return out[:, :10]


# ----------------------------------------------------------------------------
# Pure-JAX reference (independent path) for a numerical sanity check
# ----------------------------------------------------------------------------
def _pool_ref(y_nchw):
    return jnp.maximum(
        jnp.maximum(y_nchw[:, :, 0::2, 0::2], y_nchw[:, :, 0::2, 1::2]),
        jnp.maximum(y_nchw[:, :, 1::2, 0::2], y_nchw[:, :, 1::2, 1::2]))


def reference_forward(x_nchw, params):
    dn = ("NCHW", "OIHW", "NCHW")
    y = lax.conv_general_dilated(x_nchw, params["conv1_w"], (2, 2), "VALID",
                                 dimension_numbers=dn)
    y = _pool_ref(jax.nn.relu(y + params["conv1_b"][None, :, None, None]))
    y = lax.conv_general_dilated(y, params["conv2_w"], (1, 1), "VALID",
                                 dimension_numbers=dn)
    y = _pool_ref(jax.nn.relu(y + params["conv2_b"][None, :, None, None]))
    y = y.reshape(y.shape[0], -1)
    y = jax.nn.relu(jnp.dot(y, params["fc1_w"].T) + params["fc1_b"])
    y = jax.nn.relu(jnp.dot(y, params["fc2_w"].T) + params["fc2_b"])
    return jnp.dot(y, params["fc3_w"].T) + params["fc3_b"]


if __name__ == "__main__":
    key = jax.random.PRNGKey(0)
    k_x, k_p = jax.random.split(key)

    # Spatial size 36 so the flattened feature count hits fc1's in_features=512:
    # 36 --conv1(k5,s2)--> 16 --pool--> 8 --conv2(k5)--> 4 --pool--> 2 ; 128*2*2=512
    x = jax.random.normal(k_x, (2, 3, 36, 36), jnp.float32)       # NCHW, like PyTorch
    params = init_params(k_p)
    packed = prepare_params(params)    # one-time weight packing (not per forward)

    out = jax.block_until_ready(lenet5_forward(x, packed))
    assert out.shape == (2, 10) and out.dtype == jnp.float32

    ref = jax.block_until_ready(jax.jit(reference_forward)(x, params))
    max_err = float(jnp.max(jnp.abs(out - ref)))
    tol = 0.1 * float(jnp.max(jnp.abs(ref))) + 0.05   # loose: MXU vs XLA matmul precision
    assert max_err < tol, f"mismatch vs reference: max abs err {max_err} (tol {tol})"

    print("KERNEL_OK")
</pallas_src>

<mosaic_0001>
module attributes {stable_mosaic.version = 11 : i64} {
  func.func @_conv_pool_kernel(%arg0: i32, %arg1: memref<128x128xf32, #tpu.memory_space<vmem>>, %arg2: memref<128x128xf32, #tpu.memory_space<vmem>>, %arg3: memref<128x128xf32, #tpu.memory_space<vmem>>, %arg4: memref<128x128xf32, #tpu.memory_space<vmem>>, %arg5: memref<128x128xf32, #tpu.memory_space<vmem>>, %arg6: memref<1x128xf32, #tpu.memory_space<vmem>>, %arg7: memref<128x128xf32, #tpu.memory_space<vmem>>) attributes {dimension_semantics = [#tpu.dimension_semantics<parallel>], iteration_bounds = array<i64: 1>, scalar_prefetch = 0 : i64, scratch_operands = 0 : i64, tpu.core_type = #tpu.core_type<tc>, window_params = [{transform_indices = @transform_0, window_bounds = array<i64: 128, 128>}, {transform_indices = @transform_1, window_bounds = array<i64: 128, 128>}, {transform_indices = @transform_2, window_bounds = array<i64: 128, 128>}, {transform_indices = @transform_3, window_bounds = array<i64: 128, 128>}, {pipeline_mode = #tpu.pipeline_mode<synchronous>, transform_indices = @transform_4, window_bounds = array<i64: 128, 128>}, {pipeline_mode = #tpu.pipeline_mode<synchronous>, transform_indices = @transform_5, window_bounds = array<i64: 1, 128>}, {transform_indices = @transform_6, window_bounds = array<i64: 128, 128>}]} {
    %c0 = arith.constant 0 : index
    %c0_0 = arith.constant 0 : index
    %0 = vector.load %arg5[%c0, %c0_0] : memref<128x128xf32, #tpu.memory_space<vmem>>, vector<128x128xf32>
    %c0_1 = arith.constant 0 : index
    %c0_2 = arith.constant 0 : index
    %1 = vector.load %arg1[%c0_1, %c0_2] : memref<128x128xf32, #tpu.memory_space<vmem>>, vector<128x128xf32>
    %cst = arith.constant dense<0.000000e+00> : vector<128x128xf32>
    %2 = tpu.matmul %1, %0, %cst {dimension_numbers = #tpu.dot_dimension_numbers<[1], [0], [0], [1], [0, 0, 1, 1], [], []>} : vector<128x128xf32>, vector<128x128xf32>, vector<128x128xf32> -> vector<128x128xf32>
    %c0_3 = arith.constant 0 : index
    %c0_4 = arith.constant 0 : index
    %3 = vector.load %arg2[%c0_3, %c0_4] : memref<128x128xf32, #tpu.memory_space<vmem>>, vector<128x128xf32>
    %cst_5 = arith.constant dense<0.000000e+00> : vector<128x128xf32>
    %4 = tpu.matmul %3, %0, %cst_5 {dimension_numbers = #tpu.dot_dimension_numbers<[1], [0], [0], [1], [0, 0, 1, 1], [], []>} : vector<128x128xf32>, vector<128x128xf32>, vector<128x128xf32> -> vector<128x128xf32>
    %5 = arith.maximumf %2, %4 : vector<128x128xf32>
    %c0_6 = arith.constant 0 : index
    %c0_7 = arith.constant 0 : index
    %6 = vector.load %arg3[%c0_6, %c0_7] : memref<128x128xf32, #tpu.memory_space<vmem>>, vector<128x128xf32>
    %cst_8 = arith.constant dense<0.000000e+00> : vector<128x128xf32>
    %7 = tpu.matmul %6, %0, %cst_8 {dimension_numbers = #tpu.dot_dimension_numbers<[1], [0], [0], [1], [0, 0, 1, 1], [], []>} : vector<128x128xf32>, vector<128x128xf32>, vector<128x128xf32> -> vector<128x128xf32>
    %8 = arith.maximumf %5, %7 : vector<128x128xf32>
    %c0_9 = arith.constant 0 : index
    %c0_10 = arith.constant 0 : index
    %9 = vector.load %arg4[%c0_9, %c0_10] : memref<128x128xf32, #tpu.memory_space<vmem>>, vector<128x128xf32>
    %cst_11 = arith.constant dense<0.000000e+00> : vector<128x128xf32>
    %10 = tpu.matmul %9, %0, %cst_11 {dimension_numbers = #tpu.dot_dimension_numbers<[1], [0], [0], [1], [0, 0, 1, 1], [], []>} : vector<128x128xf32>, vector<128x128xf32>, vector<128x128xf32> -> vector<128x128xf32>
    %11 = arith.maximumf %8, %10 : vector<128x128xf32>
    %c0_12 = arith.constant 0 : index
    %c0_13 = arith.constant 0 : index
    %12 = vector.load %arg6[%c0_12, %c0_13] : memref<1x128xf32, #tpu.memory_space<vmem>>, vector<1x128xf32>
    %13 = vector.broadcast %12 : vector<1x128xf32> to vector<128x128xf32>
    %14 = arith.addf %11, %13 : vector<128x128xf32>
    %cst_14 = arith.constant 0.000000e+00 : f32
    %15 = vector.broadcast %cst_14 : f32 to vector<128x128xf32>
    %16 = arith.maximumf %14, %15 : vector<128x128xf32>
    %c0_15 = arith.constant 0 : index
    %c0_16 = arith.constant 0 : index
    %17 = vector.load %arg7[%c0_15, %c0_16] : memref<128x128xf32, #tpu.memory_space<vmem>>, vector<128x128xf32>
    tpu.vector_store %arg7[%c0_15, %c0_16], %16 {strides = array<i32>} : memref<128x128xf32, #tpu.memory_space<vmem>>, vector<128x128xf32>,
    return
  }
  func.func @transform_0(%arg0: i32) -> (i32, i32) {
    %c0_i32 = arith.constant 0 : i32
    %c0_i32_0 = arith.constant 0 : i32
    return %arg0, %c0_i32 : i32, i32
  }
  func.func @transform_1(%arg0: i32) -> (i32, i32) {
    %c0_i32 = arith.constant 0 : i32
    %c0_i32_0 = arith.constant 0 : i32
    return %arg0, %c0_i32 : i32, i32
  }
  func.func @transform_2(%arg0: i32) -> (i32, i32) {
    %c0_i32 = arith.constant 0 : i32
    %c0_i32_0 = arith.constant 0 : i32
    return %arg0, %c0_i32 : i32, i32
  }
  func.func @transform_3(%arg0: i32) -> (i32, i32) {
    %c0_i32 = arith.constant 0 : i32
    %c0_i32_0 = arith.constant 0 : i32
    return %arg0, %c0_i32 : i32, i32
  }
  func.func @transform_4(%arg0: i32) -> (i32, i32) {
    %c0_i32 = arith.constant 0 : i32
    %c0_i32_0 = arith.constant 0 : i32
    %c0_i32_1 = arith.constant 0 : i32
    return %c0_i32, %c0_i32_0 : i32, i32
  }
  func.func @transform_5(%arg0: i32) -> (i32, i32) {
    %c0_i32 = arith.constant 0 : i32
    %c0_i32_0 = arith.constant 0 : i32
    %c0_i32_1 = arith.constant 0 : i32
    return %c0_i32, %c0_i32_0 : i32, i32
  }
  func.func @transform_6(%arg0: i32) -> (i32, i32) {
    %c0_i32 = arith.constant 0 : i32
    %c0_i32_0 = arith.constant 0 : i32
    return %arg0, %c0_i32 : i32, i32
  }
}

module attributes {stable_mosaic.version = 11 : i64} {
  func.func @_conv_pool_kernel(%arg0: i32, %arg1: memref<8x3200xf32, #tpu.memory_space<vmem>>, %arg2: memref<8x3200xf32, #tpu.memory_space<vmem>>, %arg3: memref<8x3200xf32, #tpu.memory_space<vmem>>, %arg4: memref<8x3200xf32, #tpu.memory_space<vmem>>, %arg5: memref<3200x128xf32, #tpu.memory_space<vmem>>, %arg6: memref<1x128xf32, #tpu.memory_space<vmem>>, %arg7: memref<8x128xf32, #tpu.memory_space<vmem>>) attributes {dimension_semantics = [#tpu.dimension_semantics<parallel>], iteration_bounds = array<i64: 1>, scalar_prefetch = 0 : i64, scratch_operands = 0 : i64, tpu.core_type = #tpu.core_type<tc>, window_params = [{transform_indices = @transform_0, window_bounds = array<i64: 8, 3200>}, {transform_indices = @transform_1, window_bounds = array<i64: 8, 3200>}, {transform_indices = @transform_2, window_bounds = array<i64: 8, 3200>}, {transform_indices = @transform_3, window_bounds = array<i64: 8, 3200>}, {pipeline_mode = #tpu.pipeline_mode<synchronous>, transform_indices = @transform_4, window_bounds = array<i64: 3200, 128>}, {pipeline_mode = #tpu.pipeline_mode<synchronous>, transform_indices = @transform_5, window_bounds = array<i64: 1, 128>}, {transform_indices = @transform_6, window_bounds = array<i64: 8, 128>}]} {
    %c0 = arith.constant 0 : index
    %c0_0 = arith.constant 0 : index
    %0 = vector.load %arg5[%c0, %c0_0] : memref<3200x128xf32, #tpu.memory_space<vmem>>, vector<3200x128xf32>
    %c0_1 = arith.constant 0 : index
    %c0_2 = arith.constant 0 : index
    %1 = vector.load %arg1[%c0_1, %c0_2] : memref<8x3200xf32, #tpu.memory_space<vmem>>, vector<8x3200xf32>
    %cst = arith.constant dense<0.000000e+00> : vector<8x128xf32>
    %2 = tpu.matmul %1, %0, %cst {dimension_numbers = #tpu.dot_dimension_numbers<[1], [0], [0], [1], [0, 0, 1, 1], [], []>} : vector<8x3200xf32>, vector<3200x128xf32>, vector<8x128xf32> -> vector<8x128xf32>
    %c0_3 = arith.constant 0 : index
    %c0_4 = arith.constant 0 : index
    %3 = vector.load %arg2[%c0_3, %c0_4] : memref<8x3200xf32, #tpu.memory_space<vmem>>, vector<8x3200xf32>
    %cst_5 = arith.constant dense<0.000000e+00> : vector<8x128xf32>
    %4 = tpu.matmul %3, %0, %cst_5 {dimension_numbers = #tpu.dot_dimension_numbers<[1], [0], [0], [1], [0, 0, 1, 1], [], []>} : vector<8x3200xf32>, vector<3200x128xf32>, vector<8x128xf32> -> vector<8x128xf32>
    %5 = arith.maximumf %2, %4 : vector<8x128xf32>
    %c0_6 = arith.constant 0 : index
    %c0_7 = arith.constant 0 : index
    %6 = vector.load %arg3[%c0_6, %c0_7] : memref<8x3200xf32, #tpu.memory_space<vmem>>, vector<8x3200xf32>
    %cst_8 = arith.constant dense<0.000000e+00> : vector<8x128xf32>
    %7 = tpu.matmul %6, %0, %cst_8 {dimension_numbers = #tpu.dot_dimension_numbers<[1], [0], [0], [1], [0, 0, 1, 1], [], []>} : vector<8x3200xf32>, vector<3200x128xf32>, vector<8x128xf32> -> vector<8x128xf32>
    %8 = arith.maximumf %5, %7 : vector<8x128xf32>
    %c0_9 = arith.constant 0 : index
    %c0_10 = arith.constant 0 : index
    %9 = vector.load %arg4[%c0_9, %c0_10] : memref<8x3200xf32, #tpu.memory_space<vmem>>, vector<8x3200xf32>
    %cst_11 = arith.constant dense<0.000000e+00> : vector<8x128xf32>
    %10 = tpu.matmul %9, %0, %cst_11 {dimension_numbers = #tpu.dot_dimension_numbers<[1], [0], [0], [1], [0, 0, 1, 1], [], []>} : vector<8x3200xf32>, vector<3200x128xf32>, vector<8x128xf32> -> vector<8x128xf32>
    %11 = arith.maximumf %8, %10 : vector<8x128xf32>
    %c0_12 = arith.constant 0 : index
    %c0_13 = arith.constant 0 : index
    %12 = vector.load %arg6[%c0_12, %c0_13] : memref<1x128xf32, #tpu.memory_space<vmem>>, vector<1x128xf32>
    %13 = vector.broadcast %12 : vector<1x128xf32> to vector<8x128xf32>
    %14 = arith.addf %11, %13 : vector<8x128xf32>
    %cst_14 = arith.constant 0.000000e+00 : f32
    %15 = vector.broadcast %cst_14 : f32 to vector<8x128xf32>
    %16 = arith.maximumf %14, %15 : vector<8x128xf32>
    %c0_15 = arith.constant 0 : index
    %c0_16 = arith.constant 0 : index
    %17 = vector.load %arg7[%c0_15, %c0_16] : memref<8x128xf32, #tpu.memory_space<vmem>>, vector<8x128xf32>
    tpu.vector_store %arg7[%c0_15, %c0_16], %16 {strides = array<i32>} : memref<8x128xf32, #tpu.memory_space<vmem>>, vector<8x128xf32>,
    return
  }
  func.func @transform_0(%arg0: i32) -> (i32, i32) {
    %c0_i32 = arith.constant 0 : i32
    %c0_i32_0 = arith.constant 0 : i32
    return %arg0, %c0_i32 : i32, i32
  }
  func.func @transform_1(%arg0: i32) -> (i32, i32) {
    %c0_i32 = arith.constant 0 : i32
    %c0_i32_0 = arith.constant 0 : i32
    return %arg0, %c0_i32 : i32, i32
  }
  func.func @transform_2(%arg0: i32) -> (i32, i32) {
    %c0_i32 = arith.constant 0 : i32
    %c0_i32_0 = arith.constant 0 : i32
    return %arg0, %c0_i32 : i32, i32
  }
  func.func @transform_3(%arg0: i32) -> (i32, i32) {
    %c0_i32 = arith.constant 0 : i32
    %c0_i32_0 = arith.constant 0 : i32
    return %arg0, %c0_i32 : i32, i32
  }
  func.func @transform_4(%arg0: i32) -> (i32, i32) {
    %c0_i32 = arith.constant 0 : i32
    %c0_i32_0 = arith.constant 0 : i32
    %c0_i32_1 = arith.constant 0 : i32
    return %c0_i32, %c0_i32_0 : i32, i32
  }
  func.func @transform_5(%arg0: i32) -> (i32, i32) {
    %c0_i32 = arith.constant 0 : i32
    %c0_i32_0 = arith.constant 0 : i32
    %c0_i32_1 = arith.constant 0 : i32
    return %c0_i32, %c0_i32_0 : i32, i32
  }
  func.func @transform_6(%arg0: i32) -> (i32, i32) {
    %c0_i32 = arith.constant 0 : i32
    %c0_i32_0 = arith.constant 0 : i32
    return %arg0, %c0_i32 : i32, i32
  }
}

module attributes {stable_mosaic.version = 11 : i64} {
  func.func @_fc_head_kernel(%arg0: i32, %arg1: memref<2x512xf32, #tpu.memory_space<vmem>>, %arg2: memref<512x128xf32, #tpu.memory_space<vmem>>, %arg3: memref<1x128xf32, #tpu.memory_space<vmem>>, %arg4: memref<128x128xf32, #tpu.memory_space<vmem>>, %arg5: memref<1x128xf32, #tpu.memory_space<vmem>>, %arg6: memref<128x128xf32, #tpu.memory_space<vmem>>, %arg7: memref<1x128xf32, #tpu.memory_space<vmem>>, %arg8: memref<2x128xf32, #tpu.memory_space<vmem>>) attributes {dimension_semantics = [#tpu.dimension_semantics<parallel>], iteration_bounds = array<i64: 1>, scalar_prefetch = 0 : i64, scratch_operands = 0 : i64, tpu.core_type = #tpu.core_type<tc>, window_params = [{transform_indices = @transform_0, window_bounds = array<i64: 2, 512>}, {pipeline_mode = #tpu.pipeline_mode<synchronous>, transform_indices = @transform_1, window_bounds = array<i64: 512, 128>}, {pipeline_mode = #tpu.pipeline_mode<synchronous>, transform_indices = @transform_2, window_bounds = array<i64: 1, 128>}, {pipeline_mode = #tpu.pipeline_mode<synchronous>, transform_indices = @transform_3, window_bounds = array<i64: 128, 128>}, {pipeline_mode = #tpu.pipeline_mode<synchronous>, transform_indices = @transform_4, window_bounds = array<i64: 1, 128>}, {pipeline_mode = #tpu.pipeline_mode<synchronous>, transform_indices = @transform_5, window_bounds = array<i64: 128, 128>}, {pipeline_mode = #tpu.pipeline_mode<synchronous>, transform_indices = @transform_6, window_bounds = array<i64: 1, 128>}, {transform_indices = @transform_7, window_bounds = array<i64: 2, 128>}]} {
    %c0 = arith.constant 0 : index
    %c0_0 = arith.constant 0 : index
    %0 = vector.load %arg1[%c0, %c0_0] : memref<2x512xf32, #tpu.memory_space<vmem>>, vector<2x512xf32>
    %c0_1 = arith.constant 0 : index
    %c0_2 = arith.constant 0 : index
    %1 = vector.load %arg2[%c0_1, %c0_2] : memref<512x128xf32, #tpu.memory_space<vmem>>, vector<512x128xf32>
    %cst = arith.constant dense<0.000000e+00> : vector<2x128xf32>
    %2 = tpu.matmul %0, %1, %cst {dimension_numbers = #tpu.dot_dimension_numbers<[1], [0], [0], [1], [0, 0, 1, 1], [], []>} : vector<2x512xf32>, vector<512x128xf32>, vector<2x128xf32> -> vector<2x128xf32>
    %c0_3 = arith.constant 0 : index
    %c0_4 = arith.constant 0 : index
    %3 = vector.load %arg3[%c0_3, %c0_4] : memref<1x128xf32, #tpu.memory_space<vmem>>, vector<1x128xf32>
    %4 = vector.broadcast %3 : vector<1x128xf32> to vector<2x128xf32>
    %5 = arith.addf %2, %4 : vector<2x128xf32>
    %cst_5 = arith.constant 0.000000e+00 : f32
    %6 = vector.broadcast %cst_5 : f32 to vector<2x128xf32>
    %7 = arith.maximumf %5, %6 : vector<2x128xf32>
    %c0_6 = arith.constant 0 : index
    %c0_7 = arith.constant 0 : index
    %8 = vector.load %arg4[%c0_6, %c0_7] : memref<128x128xf32, #tpu.memory_space<vmem>>, vector<128x128xf32>
    %cst_8 = arith.constant dense<0.000000e+00> : vector<2x128xf32>
    %9 = tpu.matmul %7, %8, %cst_8 {dimension_numbers = #tpu.dot_dimension_numbers<[1], [0], [0], [1], [0, 0, 1, 1], [], []>} : vector<2x128xf32>, vector<128x128xf32>, vector<2x128xf32> -> vector<2x128xf32>
    %c0_9 = arith.constant 0 : index
    %c0_10 = arith.constant 0 : index
    %10 = vector.load %arg5[%c0_9, %c0_10] : memref<1x128xf32, #tpu.memory_space<vmem>>, vector<1x128xf32>
    %11 = vector.broadcast %10 : vector<1x128xf32> to vector<2x128xf32>
    %12 = arith.addf %9, %11 : vector<2x128xf32>
    %cst_11 = arith.constant 0.000000e+00 : f32
    %13 = vector.broadcast %cst_11 : f32 to vector<2x128xf32>
    %14 = arith.maximumf %12, %13 : vector<2x128xf32>
    %c0_12 = arith.constant 0 : index
    %c0_13 = arith.constant 0 : index
    %15 = vector.load %arg6[%c0_12, %c0_13] : memref<128x128xf32, #tpu.memory_space<vmem>>, vector<128x128xf32>
    %cst_14 = arith.constant dense<0.000000e+00> : vector<2x128xf32>
    %16 = tpu.matmul %14, %15, %cst_14 {dimension_numbers = #tpu.dot_dimension_numbers<[1], [0], [0], [1], [0, 0, 1, 1], [], []>} : vector<2x128xf32>, vector<128x128xf32>, vector<2x128xf32> -> vector<2x128xf32>
    %c0_15 = arith.constant 0 : index
    %c0_16 = arith.constant 0 : index
    %17 = vector.load %arg7[%c0_15, %c0_16] : memref<1x128xf32, #tpu.memory_space<vmem>>, vector<1x128xf32>
    %18 = vector.broadcast %17 : vector<1x128xf32> to vector<2x128xf32>
    %19 = arith.addf %16, %18 : vector<2x128xf32>
    %c0_17 = arith.constant 0 : index
    %c0_18 = arith.constant 0 : index
    %20 = vector.load %arg8[%c0_17, %c0_18] : memref<2x128xf32, #tpu.memory_space<vmem>>, vector<2x128xf32>
    tpu.vector_store %arg8[%c0_17, %c0_18], %19 {strides = array<i32>} : memref<2x128xf32, #tpu.memory_space<vmem>>, vector<2x128xf32>,
    return
  }
  func.func @transform_0(%arg0: i32) -> (i32, i32) {
    %c0_i32 = arith.constant 0 : i32
    %c0_i32_0 = arith.constant 0 : i32
    return %arg0, %c0_i32 : i32, i32
  }
  func.func @transform_1(%arg0: i32) -> (i32, i32) {
    %c0_i32 = arith.constant 0 : i32
    %c0_i32_0 = arith.constant 0 : i32
    %c0_i32_1 = arith.constant 0 : i32
    return %c0_i32, %c0_i32_0 : i32, i32
  }
  func.func @transform_2(%arg0: i32) -> (i32, i32) {
    %c0_i32 = arith.constant 0 : i32
    %c0_i32_0 = arith.constant 0 : i32
    %c0_i32_1 = arith.constant 0 : i32
    return %c0_i32, %c0_i32_0 : i32, i32
  }
  func.func @transform_3(%arg0: i32) -> (i32, i32) {
    %c0_i32 = arith.constant 0 : i32
    %c0_i32_0 = arith.constant 0 : i32
    %c0_i32_1 = arith.constant 0 : i32
    return %c0_i32, %c0_i32_0 : i32, i32
  }
  func.func @transform_4(%arg0: i32) -> (i32, i32) {
    %c0_i32 = arith.constant 0 : i32
    %c0_i32_0 = arith.constant 0 : i32
    %c0_i32_1 = arith.constant 0 : i32
    return %c0_i32, %c0_i32_0 : i32, i32
  }
  func.func @transform_5(%arg0: i32) -> (i32, i32) {
    %c0_i32 = arith.constant 0 : i32
    %c0_i32_0 = arith.constant 0 : i32
    %c0_i32_1 = arith.constant 0 : i32
    return %c0_i32, %c0_i32_0 : i32, i32
  }
  func.func @transform_6(%arg0: i32) -> (i32, i32) {
    %c0_i32 = arith.constant 0 : i32
    %c0_i32_0 = arith.constant 0 : i32
    %c0_i32_1 = arith.constant 0 : i32
    return %c0_i32, %c0_i32_0 : i32, i32
  }
  func.func @transform_7(%arg0: i32) -> (i32, i32) {
    %c0_i32 = arith.constant 0 : i32
    %c0_i32_0 = arith.constant 0 : i32
    return %arg0, %c0_i32 : i32, i32
  }
}

</mosaic_0001>

<llo_original>
// kernel: lenet5_forward.3
$region0: #{lenet5_forward.3}
  #allocation0 [shape = 'u32[]', space=smem, size = 0x4, offset = 0x4, fixed_abs, tag = 'smem constant byte address 0x4 - core index']
  #allocation1 [shape = 'u32[72,128]{1,0:T(1,128)}', space=vmem, size = 0x9000, scoped, tag = 'internal scratch']
  %s0 = inlined_call_operand.vmem [shape: f32[128,128], index: 0, kind: input, shape index: {}]
  %s1 = inlined_call_operand.vmem [shape: f32[128,128], index: 1, kind: input, shape index: {}]
  %s2 = inlined_call_operand.vmem [shape: f32[128,128], index: 2, kind: input, shape index: {}]
  %s3 = inlined_call_operand.vmem [shape: f32[128,128], index: 3, kind: input, shape index: {}]
  %s4 = inlined_call_operand.vmem [shape: f32[128,128], index: 4, kind: input, shape index: {}]
  %s5 = inlined_call_operand.vmem [shape: f32[1,128], index: 5, kind: input, shape index: {}]
  %s6 = inlined_call_operand.vmem [shape: f32[128,128], index: 6, kind: output, shape index: {}]
  %s7 = sld [smem:[#allocation0]]
  $region34: #{lenet5_forward.3} parent=0
    _
  %s9 = ssub.s32 1, %s7
  %s10 = scalar_select 0, %s9, %s7
  // Predicated region
  $region2: #{lenet5_forward.3} parent=0 // pred_check
    _
  $region3: #{lenet5_forward.3} parent=0 // pred_check_branch
    %12 = sbr.rel (0) target = $region5
  $region4: #{lenet5_forward.3} parent=0 // pred_region
    _
  $region5: #{lenet5_forward.3} parent=0 // pred_fallthru
    _
  // Predicated region
  $region6: #{lenet5_forward.3} parent=0 // pred_check
    _
  $region7: #{lenet5_forward.3} parent=0 // pred_check_branch
    %14 = sbr.rel (0) target = $region9
  $region8: #{lenet5_forward.3} parent=0 // pred_region
    _
  $region9: #{lenet5_forward.3} parent=0 // pred_fallthru
    _
  // Predicated region
  $region10: #{lenet5_forward.3} parent=0 // pred_check
    _
  $region11: #{lenet5_forward.3} parent=0 // pred_check_branch
    %16 = sbr.rel (0) target = $region13
  $region12: #{lenet5_forward.3} parent=0 // pred_region
    _
  $region13: #{lenet5_forward.3} parent=0 // pred_fallthru
    _
  // Predicated region
  $region14: #{lenet5_forward.3} parent=0 // pred_check
    _
  $region15: #{lenet5_forward.3} parent=0 // pred_check_branch
    %18 = sbr.rel (0) target = $region17
  $region16: #{lenet5_forward.3} parent=0 // pred_region
    _
  $region17: #{lenet5_forward.3} parent=0 // pred_fallthru
    _
  // Predicated region
  $region18: #{lenet5_forward.3} parent=0 // pred_check
    _
  $region19: #{lenet5_forward.3} parent=0 // pred_check_branch
    %20 = sbr.rel (0) target = $region21
  $region20: #{lenet5_forward.3} parent=0 // pred_region
    _
  $region21: #{lenet5_forward.3} parent=0 // pred_fallthru
    _
  // Predicated region
  $region22: #{lenet5_forward.3} parent=0 // pred_check
    _
  $region23: #{lenet5_forward.3} parent=0 // pred_check_branch
    %22 = sbr.rel (0) target = $region25
  $region24: #{lenet5_forward.3} parent=0 // pred_region
    _
  $region25: #{lenet5_forward.3} parent=0 // pred_fallthru
    _
  %v23 = vld [vmem:[%s4] sm:$0xff]
  %v24 = vld [vmem:[%s4 + $0x8] sm:$0xff]
  %v25 = vld [vmem:[%s4 + $0x10] sm:$0xff]
  %v26 = vld [vmem:[%s4 + $0x18] sm:$0xff]
  %v27 = vld [vmem:[%s4 + $0x20] sm:$0xff]
  %v28 = vld [vmem:[%s4 + $0x28] sm:$0xff]
  %v29 = vld [vmem:[%s4 + $0x30] sm:$0xff]
  %v30 = vld [vmem:[%s4 + $0x38] sm:$0xff]
  %v31 = vld [vmem:[%s4 + $0x40] sm:$0xff]
  %v32 = vld [vmem:[%s4 + $0x48] sm:$0xff]
  %v33 = vld [vmem:[%s4 + $0x50] sm:$0xff]
  %v34 = vld [vmem:[%s4 + $0x58] sm:$0xff]
  %v35 = vld [vmem:[%s4 + $0x60] sm:$0xff]
  %v36 = vld [vmem:[%s4 + $0x68] sm:$0xff]
  %v37 = vld [vmem:[%s4 + $0x70] sm:$0xff]
  %v38 = vld [vmem:[%s4 + $0x78] sm:$0xff]
  %v39 = vld [vmem:[%s0] sm:$0xff]
  %v40 = vld [vmem:[%s0 + $0x8] sm:$0xff]
  %v41 = vld [vmem:[%s0 + $0x10] sm:$0xff]
  %v42 = vld [vmem:[%s0 + $0x18] sm:$0xff]
  %v43 = vld [vmem:[%s0 + $0x20] sm:$0xff]
  %v44 = vld [vmem:[%s0 + $0x28] sm:$0xff]
  %v45 = vld [vmem:[%s0 + $0x30] sm:$0xff]
  %v46 = vld [vmem:[%s0 + $0x38] sm:$0xff]
  %v47 = vld [vmem:[%s0 + $0x40] sm:$0xff]
  %v48 = vld [vmem:[%s0 + $0x48] sm:$0xff]
  %v49 = vld [vmem:[%s0 + $0x50] sm:$0xff]
  %v50 = vld [vmem:[%s0 + $0x58] sm:$0xff]
  %v51 = vld [vmem:[%s0 + $0x60] sm:$0xff]
  %v52 = vld [vmem:[%s0 + $0x68] sm:$0xff]
  %v53 = vld [vmem:[%s0 + $0x70] sm:$0xff]
  %v54 = vld [vmem:[%s0 + $0x78] sm:$0xff]
  %55 = vmatpush.msra.mxu0 %v38
  %56 = vmatpush.msra.mxu0 %v37
  %57 = vmatpush.msra.mxu0 %v36
  %58 = vmatpush.msra.mxu0 %v35
  %59 = vmatpush.msra.mxu0 %v34
  %60 = vmatpush.msra.mxu0 %v33
  %61 = vmatpush.msra.mxu0 %v32
  %62 = vmatpush.msra.mxu0 %v31
  %63 = vmatpush.msra.mxu0 %v30
  %64 = vmatpush.msra.mxu0 %v29
  %65 = vmatpush.msra.mxu0 %v28
  %66 = vmatpush.msra.mxu0 %v27
  %67 = vmatpush.msra.mxu0 %v26
  %68 = vmatpush.msra.mxu0 %v25
  %69 = vmatpush.msra.mxu0 %v24
  %70 = vmatpush.msra.mxu0 %v23
  %71 = vmatmul.f32.gmra.mxu0 %v39
  %v72 = vpop.f32.mrf.mxu0
  %v73 = vadd.f32 0.0, %v72
  %74 = vmatmul.f32.gmra.mxu0 %v40
  %v75 = vpop.f32.mrf.mxu0
  %v76 = vadd.f32 0.0, %v75
  %77 = vmatmul.f32.gmra.mxu0 %v41
  %v78 = vpop.f32.mrf.mxu0
  %v79 = vadd.f32 0.0, %v78
  %80 = vmatmul.f32.gmra.mxu0 %v42
  %v81 = vpop.f32.mrf.mxu0
  %v82 = vadd.f32 0.0, %v81
  %83 = vmatmul.f32.gmra.mxu0 %v43
  %v84 = vpop.f32.mrf.mxu0
  %v85 = vadd.f32 0.0, %v84
  %86 = vmatmul.f32.gmra.mxu0 %v44
  %v87 = vpop.f32.mrf.mxu0
  %v88 = vadd.f32 0.0, %v87
  %89 = vmatmul.f32.gmra.mxu0 %v45
  %v90 = vpop.f32.mrf.mxu0
  %v91 = vadd.f32 0.0, %v90
  %92 = vmatmul.f32.gmra.mxu0 %v46
  %v93 = vpop.f32.mrf.mxu0
  %v94 = vadd.f32 0.0, %v93
  %95 = vmatmul.f32.gmra.mxu0 %v47
  %v96 = vpop.f32.mrf.mxu0
  %v97 = vadd.f32 0.0, %v96
  %98 = vmatmul.f32.gmra.mxu0 %v48
  %v99 = vpop.f32.mrf.mxu0
  %v100 = vadd.f32 0.0, %v99
  %101 = vmatmul.f32.gmra.mxu0 %v49
  %v102 = vpop.f32.mrf.mxu0
  %v103 = vadd.f32 0.0, %v102
  %104 = vmatmul.f32.gmra.mxu0 %v50
  %v105 = vpop.f32.mrf.mxu0
  %v106 = vadd.f32 0.0, %v105
  %107 = vmatmul.f32.gmra.mxu0 %v51
  %v108 = vpop.f32.mrf.mxu0
  %v109 = vadd.f32 0.0, %v108
  %110 = vmatmul.f32.gmra.mxu0 %v52
  %v111 = vpop.f32.mrf.mxu0
  %v112 = vadd.f32 0.0, %v111
  %113 = vmatmul.f32.gmra.mxu0 %v53
  %v114 = vpop.f32.mrf.mxu0
  %v115 = vadd.f32 0.0, %v114
  %116 = vmatmul.f32.gmra.mxu0 %v54
  %v117 = vpop.f32.mrf.mxu0
  %v118 = vadd.f32 0.0, %v117
  %119 = vdwg.mxu0
  %v120 = vld [vmem:[%s1] sm:$0xff]
  %v121 = vld [vmem:[%s1 + $0x8] sm:$0xff]
  %v122 = vld [vmem:[%s1 + $0x10] sm:$0xff]
  %v123 = vld [vmem:[%s1 + $0x18] sm:$0xff]
  %v124 = vld [vmem:[%s1 + $0x20] sm:$0xff]
  %v125 = vld [vmem:[%s1 + $0x28] sm:$0xff]
  %v126 = vld [vmem:[%s1 + $0x30] sm:$0xff]
  %v127 = vld [vmem:[%s1 + $0x38] sm:$0xff]
  %v128 = vld [vmem:[%s1 + $0x40] sm:$0xff]
  %v129 = vld [vmem:[%s1 + $0x48] sm:$0xff]
  %v130 = vld [vmem:[%s1 + $0x50] sm:$0xff]
  %v131 = vld [vmem:[%s1 + $0x58] sm:$0xff]
  %v132 = vld [vmem:[%s1 + $0x60] sm:$0xff]
  %v133 = vld [vmem:[%s1 + $0x68] sm:$0xff]
  %v134 = vld [vmem:[%s1 + $0x70] sm:$0xff]
  %v135 = vld [vmem:[%s1 + $0x78] sm:$0xff]
  %136 = vmatpush.msra.mxu0 %v38
  %137 = vmatpush.msra.mxu0 %v37
  %138 = vmatpush.msra.mxu0 %v36
  %139 = vmatpush.msra.mxu0 %v35
  %140 = vmatpush.msra.mxu0 %v34
  %141 = vmatpush.msra.mxu0 %v33
  %142 = vmatpush.msra.mxu0 %v32
  %143 = vmatpush.msra.mxu0 %v31
  %144 = vmatpush.msra.mxu0 %v30
  %145 = vmatpush.msra.mxu0 %v29
  %146 = vmatpush.msra.mxu0 %v28
  %147 = vmatpush.msra.mxu0 %v27
  %148 = vmatpush.msra.mxu0 %v26
  %149 = vmatpush.msra.mxu0 %v25
  %150 = vmatpush.msra.mxu0 %v24
  %151 = vmatpush.msra.mxu0 %v23
  %152 = vmatmul.f32.gmra.mxu0 %v120
  %v153 = vpop.f32.mrf.mxu0
  %v154 = vadd.f32 0.0, %v153
  %155 = vmatmul.f32.gmra.mxu0 %v121
  %v156 = vpop.f32.mrf.mxu0
  %v157 = vadd.f32 0.0, %v156
  %158 = vmatmul.f32.gmra.mxu0 %v122
  %v159 = vpop.f32.mrf.mxu0
  %v160 = vadd.f32 0.0, %v159
  %161 = vmatmul.f32.gmra.mxu0 %v123
  %v162 = vpop.f32.mrf.mxu0
  %v163 = vadd.f32 0.0, %v162
  %164 = vmatmul.f32.gmra.mxu0 %v124
  %v165 = vpop.f32.mrf.mxu0
  %v166 = vadd.f32 0.0, %v165
  %167 = vmatmul.f32.gmra.mxu0 %v125
  %v168 = vpop.f32.mrf.mxu0
  %v169 = vadd.f32 0.0, %v168
  %170 = vmatmul.f32.gmra.mxu0 %v126
  %v171 = vpop.f32.mrf.mxu0
  %v172 = vadd.f32 0.0, %v171
  %173 = vmatmul.f32.gmra.mxu0 %v127
  %v174 = vpop.f32.mrf.mxu0
  %v175 = vadd.f32 0.0, %v174
  %176 = vmatmul.f32.gmra.mxu0 %v128
  %v177 = vpop.f32.mrf.mxu0
  %v178 = vadd.f32 0.0, %v177
  %179 = vmatmul.f32.gmra.mxu0 %v129
  %v180 = vpop.f32.mrf.mxu0
  %v181 = vadd.f32 0.0, %v180
  %182 = vmatmul.f32.gmra.mxu0 %v130
  %v183 = vpop.f32.mrf.mxu0
  %v184 = vadd.f32 0.0, %v183
  %185 = vmatmul.f32.gmra.mxu0 %v131
  %v186 = vpop.f32.mrf.mxu0
  %v187 = vadd.f32 0.0, %v186
  %188 = vmatmul.f32.gmra.mxu0 %v132
  %v189 = vpop.f32.mrf.mxu0
  %v190 = vadd.f32 0.0, %v189
  %191 = vmatmul.f32.gmra.mxu0 %v133
  %v192 = vpop.f32.mrf.mxu0
  %v193 = vadd.f32 0.0, %v192
  %194 = vmatmul.f32.gmra.mxu0 %v134
  %v195 = vpop.f32.mrf.mxu0
  %v196 = vadd.f32 0.0, %v195
  %197 = vmatmul.f32.gmra.mxu0 %v135
  %v198 = vpop.f32.mrf.mxu0
  %v199 = vadd.f32 0.0, %v198
  %200 = vdwg.mxu0
  %v201 = vmax.f32 %v73, %v154
  %v202 = vmax.f32 %v76, %v157
  %v203 = vmax.f32 %v79, %v160
  %v204 = vmax.f32 %v82, %v163
  %v205 = vmax.f32 %v85, %v166
  %v206 = vmax.f32 %v88, %v169
  %v207 = vmax.f32 %v91, %v172
  %v208 = vmax.f32 %v94, %v175
  %v209 = vmax.f32 %v97, %v178
  %v210 = vmax.f32 %v100, %v181
  %v211 = vmax.f32 %v103, %v184
  %v212 = vmax.f32 %v106, %v187
  %v213 = vmax.f32 %v109, %v190
  %v214 = vmax.f32 %v112, %v193
  %v215 = vmax.f32 %v115, %v196
  %v216 = vmax.f32 %v118, %v199
  %v217 = vld [vmem:[%s2] sm:$0xff]
  %v218 = vld [vmem:[%s2 + $0x8] sm:$0xff]
  %v219 = vld [vmem:[%s2 + $0x10] sm:$0xff]
  %v220 = vld [vmem:[%s2 + $0x18] sm:$0xff]
  %v221 = vld [vmem:[%s2 + $0x20] sm:$0xff]
  %v222 = vld [vmem:[%s2 + $0x28] sm:$0xff]
  %v223 = vld [vmem:[%s2 + $0x30] sm:$0xff]
  %v224 = vld [vmem:[%s2 + $0x38] sm:$0xff]
  %v225 = vld [vmem:[%s2 + $0x40] sm:$0xff]
  %v226 = vld [vmem:[%s2 + $0x48] sm:$0xff]
  %v227 = vld [vmem:[%s2 + $0x50] sm:$0xff]
  %v228 = vld [vmem:[%s2 + $0x58] sm:$0xff]
  %v229 = vld [vmem:[%s2 + $0x60] sm:$0xff]
  %v230 = vld [vmem:[%s2 + $0x68] sm:$0xff]
  %v231 = vld [vmem:[%s2 + $0x70] sm:$0xff]
  %v232 = vld [vmem:[%s2 + $0x78] sm:$0xff]
  %233 = vmatpush.msra.mxu0 %v38
  %234 = vmatpush.msra.mxu0 %v37
  %235 = vmatpush.msra.mxu0 %v36
  %236 = vmatpush.msra.mxu0 %v35
  %237 = vmatpush.msra.mxu0 %v34
  %238 = vmatpush.msra.mxu0 %v33
  %239 = vmatpush.msra.mxu0 %v32
  %240 = vmatpush.msra.mxu0 %v31
  %241 = vmatpush.msra.mxu0 %v30
  %242 = vmatpush.msra.mxu0 %v29
  %243 = vmatpush.msra.mxu0 %v28
  %244 = vmatpush.msra.mxu0 %v27
  %245 = vmatpush.msra.mxu0 %v26
  %246 = vmatpush.msra.mxu0 %v25
  %247 = vmatpush.msra.mxu0 %v24
  %248 = vmatpush.msra.mxu0 %v23
  %249 = vmatmul.f32.gmra.mxu0 %v217
  %v250 = vpop.f32.mrf.mxu0
  %v251 = vadd.f32 0.0, %v250
  %252 = vmatmul.f32.gmra.mxu0 %v218
  %v253 = vpop.f32.mrf.mxu0
  %v254 = vadd.f32 0.0, %v253
  %255 = vmatmul.f32.gmra.mxu0 %v219
  %v256 = vpop.f32.mrf.mxu0
  %v257 = vadd.f32 0.0, %v256
  %258 = vmatmul.f32.gmra.mxu0 %v220
  %v259 = vpop.f32.mrf.mxu0
  %v260 = vadd.f32 0.0, %v259
  %261 = vmatmul.f32.gmra.mxu0 %v221
  %v262 = vpop.f32.mrf.mxu0
  %v263 = vadd.f32 0.0, %v262
  %264 = vmatmul.f32.gmra.mxu0 %v222
  %v265 = vpop.f32.mrf.mxu0
  %v266 = vadd.f32 0.0, %v265
  %267 = vmatmul.f32.gmra.mxu0 %v223
  %v268 = vpop.f32.mrf.mxu0
  %v269 = vadd.f32 0.0, %v268
  %270 = vmatmul.f32.gmra.mxu0 %v224
  %v271 = vpop.f32.mrf.mxu0
  %v272 = vadd.f32 0.0, %v271
  %273 = vmatmul.f32.gmra.mxu0 %v225
  %v274 = vpop.f32.mrf.mxu0
  %v275 = vadd.f32 0.0, %v274
  %276 = vmatmul.f32.gmra.mxu0 %v226
  %v277 = vpop.f32.mrf.mxu0
  %v278 = vadd.f32 0.0, %v277
  %279 = vmatmul.f32.gmra.mxu0 %v227
  %v280 = vpop.f32.mrf.mxu0
  %v281 = vadd.f32 0.0, %v280
  %282 = vmatmul.f32.gmra.mxu0 %v228
  %v283 = vpop.f32.mrf.mxu0
  %v284 = vadd.f32 0.0, %v283
  %285 = vmatmul.f32.gmra.mxu0 %v229
  %v286 = vpop.f32.mrf.mxu0
  %v287 = vadd.f32 0.0, %v286
  %288 = vmatmul.f32.gmra.mxu0 %v230
  %v289 = vpop.f32.mrf.mxu0
  %v290 = vadd.f32 0.0, %v289
  %291 = vmatmul.f32.gmra.mxu0 %v231
  %v292 = vpop.f32.mrf.mxu0
  %v293 = vadd.f32 0.0, %v292
  %294 = vmatmul.f32.gmra.mxu0 %v232
  %v295 = vpop.f32.mrf.mxu0
  %v296 = vadd.f32 0.0, %v295
  %297 = vdwg.mxu0
  %v298 = vmax.f32 %v201, %v251
  %v299 = vmax.f32 %v202, %v254
  %v300 = vmax.f32 %v203, %v257
  %v301 = vmax.f32 %v204, %v260
  %v302 = vmax.f32 %v205, %v263
  %v303 = vmax.f32 %v206, %v266
  %v304 = vmax.f32 %v207, %v269
  %v305 = vmax.f32 %v208, %v272
  %v306 = vmax.f32 %v209, %v275
  %v307 = vmax.f32 %v210, %v278
  %v308 = vmax.f32 %v211, %v281
  %v309 = vmax.f32 %v212, %v284
  %v310 = vmax.f32 %v213, %v287
  %v311 = vmax.f32 %v214, %v290
  %v312 = vmax.f32 %v215, %v293
  %v313 = vmax.f32 %v216, %v296
  %v314 = vld [vmem:[%s3] sm:$0xff]
  %v315 = vld [vmem:[%s3 + $0x8] sm:$0xff]
  %v316 = vld [vmem:[%s3 + $0x10] sm:$0xff]
  %v317 = vld [vmem:[%s3 + $0x18] sm:$0xff]
  %v318 = vld [vmem:[%s3 + $0x20] sm:$0xff]
  %v319 = vld [vmem:[%s3 + $0x28] sm:$0xff]
  %v320 = vld [vmem:[%s3 + $0x30] sm:$0xff]
  %v321 = vld [vmem:[%s3 + $0x38] sm:$0xff]
  %v322 = vld [vmem:[%s3 + $0x40] sm:$0xff]
  %v323 = vld [vmem:[%s3 + $0x48] sm:$0xff]
  %v324 = vld [vmem:[%s3 + $0x50] sm:$0xff]
  %v325 = vld [vmem:[%s3 + $0x58] sm:$0xff]
  %v326 = vld [vmem:[%s3 + $0x60] sm:$0xff]
  %v327 = vld [vmem:[%s3 + $0x68] sm:$0xff]
  %v328 = vld [vmem:[%s3 + $0x70] sm:$0xff]
  %v329 = vld [vmem:[%s3 + $0x78] sm:$0xff]
  %330 = vmatpush.msra.mxu0 %v38
  %331 = vmatpush.msra.mxu0 %v37
  %332 = vmatpush.msra.mxu0 %v36
  %333 = vmatpush.msra.mxu0 %v35
  %334 = vmatpush.msra.mxu0 %v34
  %335 = vmatpush.msra.mxu0 %v33
  %336 = vmatpush.msra.mxu0 %v32
  %337 = vmatpush.msra.mxu0 %v31
  %338 = vmatpush.msra.mxu0 %v30
  %339 = vmatpush.msra.mxu0 %v29
  %340 = vmatpush.msra.mxu0 %v28
  %341 = vmatpush.msra.mxu0 %v27
  %342 = vmatpush.msra.mxu0 %v26
  %343 = vmatpush.msra.mxu0 %v25
  %344 = vmatpush.msra.mxu0 %v24
  %345 = vmatpush.msra.mxu0 %v23
  %346 = vmatmul.f32.gmra.mxu0 %v314
  %v347 = vpop.f32.mrf.mxu0
  %v348 = vadd.f32 0.0, %v347
  %349 = vmatmul.f32.gmra.mxu0 %v315
  %v350 = vpop.f32.mrf.mxu0
  %v351 = vadd.f32 0.0, %v350
  %352 = vmatmul.f32.gmra.mxu0 %v316
  %v353 = vpop.f32.mrf.mxu0
  %v354 = vadd.f32 0.0, %v353
  %355 = vmatmul.f32.gmra.mxu0 %v317
  %v356 = vpop.f32.mrf.mxu0
  %v357 = vadd.f32 0.0, %v356
  %358 = vmatmul.f32.gmra.mxu0 %v318
  %v359 = vpop.f32.mrf.mxu0
  %v360 = vadd.f32 0.0, %v359
  %361 = vmatmul.f32.gmra.mxu0 %v319
  %v362 = vpop.f32.mrf.mxu0
  %v363 = vadd.f32 0.0, %v362
  %364 = vmatmul.f32.gmra.mxu0 %v320
  %v365 = vpop.f32.mrf.mxu0
  %v366 = vadd.f32 0.0, %v365
  %367 = vmatmul.f32.gmra.mxu0 %v321
  %v368 = vpop.f32.mrf.mxu0
  %v369 = vadd.f32 0.0, %v368
  %370 = vmatmul.f32.gmra.mxu0 %v322
  %v371 = vpop.f32.mrf.mxu0
  %v372 = vadd.f32 0.0, %v371
  %373 = vmatmul.f32.gmra.mxu0 %v323
  %v374 = vpop.f32.mrf.mxu0
  %v375 = vadd.f32 0.0, %v374
  %376 = vmatmul.f32.gmra.mxu0 %v324
  %v377 = vpop.f32.mrf.mxu0
  %v378 = vadd.f32 0.0, %v377
  %379 = vmatmul.f32.gmra.mxu0 %v325
  %v380 = vpop.f32.mrf.mxu0
  %v381 = vadd.f32 0.0, %v380
  %382 = vmatmul.f32.gmra.mxu0 %v326
  %v383 = vpop.f32.mrf.mxu0
  %v384 = vadd.f32 0.0, %v383
  %385 = vmatmul.f32.gmra.mxu0 %v327
  %v386 = vpop.f32.mrf.mxu0
  %v387 = vadd.f32 0.0, %v386
  %388 = vmatmul.f32.gmra.mxu0 %v328
  %v389 = vpop.f32.mrf.mxu0
  %v390 = vadd.f32 0.0, %v389
  %391 = vmatmul.f32.gmra.mxu0 %v329
  %v392 = vpop.f32.mrf.mxu0
  %v393 = vadd.f32 0.0, %v392
  %394 = vdwg.mxu0
  %v395 = vmax.f32 %v298, %v348
  %v396 = vmax.f32 %v299, %v351
  %v397 = vmax.f32 %v300, %v354
  %v398 = vmax.f32 %v301, %v357
  %v399 = vmax.f32 %v302, %v360
  %v400 = vmax.f32 %v303, %v363
  %v401 = vmax.f32 %v304, %v366
  %v402 = vmax.f32 %v305, %v369
  %v403 = vmax.f32 %v306, %v372
  %v404 = vmax.f32 %v307, %v375
  %v405 = vmax.f32 %v308, %v378
  %v406 = vmax.f32 %v309, %v381
  %v407 = vmax.f32 %v310, %v384
  %v408 = vmax.f32 %v311, %v387
  %v409 = vmax.f32 %v312, %v390
  %v410 = vmax.f32 %v313, %v393
  %v411 = vld [vmem:[%s5] sm:$0x1]
  %v413 = vperm.slane %v411, 0
  %v415 = vadd.f32 %v395, %v413
  %v416 = vadd.f32 %v396, %v413
  %v417 = vadd.f32 %v397, %v413
  %v418 = vadd.f32 %v398, %v413
  %v419 = vadd.f32 %v399, %v413
  %v420 = vadd.f32 %v400, %v413
  %v421 = vadd.f32 %v401, %v413
  %v422 = vadd.f32 %v402, %v413
  %v423 = vadd.f32 %v403, %v413
  %v424 = vadd.f32 %v404, %v413
  %v425 = vadd.f32 %v405, %v413
  %v426 = vadd.f32 %v406, %v413
  %v427 = vadd.f32 %v407, %v413
  %v428 = vadd.f32 %v408, %v413
  %v429 = vadd.f32 %v409, %v413
  %v430 = vadd.f32 %v410, %v413
  %v431 = vmax.f32 %v415, 0.0
  %v432 = vmax.f32 %v416, 0.0
  %v433 = vmax.f32 %v417, 0.0
  %v434 = vmax.f32 %v418, 0.0
  %v435 = vmax.f32 %v419, 0.0
  %v436 = vmax.f32 %v420, 0.0
  %v437 = vmax.f32 %v421, 0.0
  %v438 = vmax.f32 %v422, 0.0
  %v439 = vmax.f32 %v423, 0.0
  %v440 = vmax.f32 %v424, 0.0
  %v441 = vmax.f32 %v425, 0.0
  %v442 = vmax.f32 %v426, 0.0
  %v443 = vmax.f32 %v427, 0.0
  %v444 = vmax.f32 %v428, 0.0
  %v445 = vmax.f32 %v429, 0.0
  %v446 = vmax.f32 %v430, 0.0
  %447 = vst [vmem:[%s6] sm:$0xff] %v431
  %448 = vst [vmem:[%s6 + $0x8] sm:$0xff] %v432
  %449 = vst [vmem:[%s6 + $0x10] sm:$0xff] %v433
  %450 = vst [vmem:[%s6 + $0x18] sm:$0xff] %v434
  %451 = vst [vmem:[%s6 + $0x20] sm:$0xff] %v435
  %452 = vst [vmem:[%s6 + $0x28] sm:$0xff] %v436
  %453 = vst [vmem:[%s6 + $0x30] sm:$0xff] %v437
  %454 = vst [vmem:[%s6 + $0x38] sm:$0xff] %v438
  %455 = vst [vmem:[%s6 + $0x40] sm:$0xff] %v439
  %456 = vst [vmem:[%s6 + $0x48] sm:$0xff] %v440
  %457 = vst [vmem:[%s6 + $0x50] sm:$0xff] %v441
  %458 = vst [vmem:[%s6 + $0x58] sm:$0xff] %v442
  %459 = vst [vmem:[%s6 + $0x60] sm:$0xff] %v443
  %460 = vst [vmem:[%s6 + $0x68] sm:$0xff] %v444
  %461 = vst [vmem:[%s6 + $0x70] sm:$0xff] %v445
  %462 = vst [vmem:[%s6 + $0x78] sm:$0xff] %v446
  // Predicated region
  $region26: #{lenet5_forward.3} parent=0 // pred_check
    _
  $region27: #{lenet5_forward.3} parent=0 // pred_check_branch
    %464 = sbr.rel (0) target = $region29
  $region28: #{lenet5_forward.3} parent=0 // pred_region
    _
  $region29: #{lenet5_forward.3} parent=0 // pred_fallthru
    _
  // Predicated region
  $region30: #{lenet5_forward.3} parent=0 // pred_check
    _
  $region31: #{lenet5_forward.3} parent=0 // pred_check_branch
    %466 = sbr.rel (0) target = $region33
  $region32: #{lenet5_forward.3} parent=0 // pred_region
    _
  $region33: #{lenet5_forward.3} parent=0 // pred_fallthru
    _

// kernel: lenet5_forward.5
$region0: #{lenet5_forward.5}
  #allocation0 [shape = 'u32[]', space=smem, size = 0x4, offset = 0x4, fixed_abs, tag = 'smem constant byte address 0x4 - core index']
  #allocation1 [shape = 'u32[72,128]{1,0:T(1,128)}', space=vmem, size = 0x9000, scoped, tag = 'internal scratch']
  %s0 = inlined_call_operand.vmem [shape: f32[2,512], index: 0, kind: input, shape index: {}]
  %s1 = inlined_call_operand.vmem [shape: f32[512,128], index: 1, kind: input, shape index: {}]
  %s2 = inlined_call_operand.vmem [shape: f32[1,128], index: 2, kind: input, shape index: {}]
  %s3 = inlined_call_operand.vmem [shape: f32[128,128], index: 3, kind: input, shape index: {}]
  %s4 = inlined_call_operand.vmem [shape: f32[1,128], index: 4, kind: input, shape index: {}]
  %s5 = inlined_call_operand.vmem [shape: f32[128,128], index: 5, kind: input, shape index: {}]
  %s6 = inlined_call_operand.vmem [shape: f32[1,128], index: 6, kind: input, shape index: {}]
  %s7 = inlined_call_operand.hbm [shape: f32[2,128], index: 7, kind: output, shape index: {}]
  %s8 = sld [smem:[#allocation0]]
  $region38: #{lenet5_forward.5} parent=0
    _
  %s10 = ssub.s32 1, %s8
  %s11 = scalar_select 0, %s10, %s8
  $region1: #{lenet5_forward.5} parent=0
    #allocation2 [shape = 'u8[1024]{0}', space=vmem, size = 0x400, scoped, tag = 'output window, operand 0, single buffered']
    #allocation3 [shape = 's32[1]{0}', space=sflag, size = 0x4, scoped, tag = 'scoped memory for lenet5_forward.5']
    %12 = vsyncpa [#allocation3], 0
    // Predicated region
    $region2: #{lenet5_forward.5} parent=1 // pred_check
      _
    $region3: #{lenet5_forward.5} parent=1 // pred_check_branch
      %14 = sbr.rel (0) target = $region5
    $region4: #{lenet5_forward.5} parent=1 // pred_region
      _
    $region5: #{lenet5_forward.5} parent=1 // pred_fallthru
      _
    // Predicated region
    $region6: #{lenet5_forward.5} parent=1 // pred_check
      _
    $region7: #{lenet5_forward.5} parent=1 // pred_check_branch
      %16 = sbr.rel (0) target = $region9
    $region8: #{lenet5_forward.5} parent=1 // pred_region
      _
    $region9: #{lenet5_forward.5} parent=1 // pred_fallthru
      _
    // Predicated region
    $region10: #{lenet5_forward.5} parent=1 // pred_check
      _
    $region11: #{lenet5_forward.5} parent=1 // pred_check_branch
      %18 = sbr.rel (0) target = $region13
    $region12: #{lenet5_forward.5} parent=1 // pred_region
      _
    $region13: #{lenet5_forward.5} parent=1 // pred_fallthru
      _
    // Predicated region
    $region14: #{lenet5_forward.5} parent=1 // pred_check
      _
    $region15: #{lenet5_forward.5} parent=1 // pred_check_branch
      %20 = sbr.rel (0) target = $region17
    $region16: #{lenet5_forward.5} parent=1 // pred_region
      _
    $region17: #{lenet5_forward.5} parent=1 // pred_fallthru
      _
    // Predicated region
    $region18: #{lenet5_forward.5} parent=1 // pred_check
      _
    $region19: #{lenet5_forward.5} parent=1 // pred_check_branch
      %22 = sbr.rel (0) target = $region21
    $region20: #{lenet5_forward.5} parent=1 // pred_region
      _
    $region21: #{lenet5_forward.5} parent=1 // pred_fallthru
      _
    // Predicated region
    $region22: #{lenet5_forward.5} parent=1 // pred_check
      _
    $region23: #{lenet5_forward.5} parent=1 // pred_check_branch
      %24 = sbr.rel (0) target = $region25
    $region24: #{lenet5_forward.5} parent=1 // pred_region
      _
    $region25: #{lenet5_forward.5} parent=1 // pred_fallthru
      _
    // Predicated region
    $region26: #{lenet5_forward.5} parent=1 // pred_check
      _
    $region27: #{lenet5_forward.5} parent=1 // pred_check_branch
      %26 = sbr.rel (0) target = $region29
    $region28: #{lenet5_forward.5} parent=1 // pred_region
      _
    $region29: #{lenet5_forward.5} parent=1 // pred_fallthru
      _
    %v27 = vld [vmem:[%s0] sm:$0xff]
    %v28 = vld [vmem:[%s1] sm:$0xff]
    %v29 = vld [vmem:[%s1 + $0x8] sm:$0xff]
    %v30 = vld [vmem:[%s1 + $0x10] sm:$0xff]
    %v31 = vld [vmem:[%s1 + $0x18] sm:$0xff]
    %v32 = vld [vmem:[%s1 + $0x20] sm:$0xff]
    %v33 = vld [vmem:[%s1 + $0x28] sm:$0xff]
    %v34 = vld [vmem:[%s1 + $0x30] sm:$0xff]
    %v35 = vld [vmem:[%s1 + $0x38] sm:$0xff]
    %v36 = vld [vmem:[%s1 + $0x40] sm:$0xff]
    %v37 = vld [vmem:[%s1 + $0x48] sm:$0xff]
    %v38 = vld [vmem:[%s1 + $0x50] sm:$0xff]
    %v39 = vld [vmem:[%s1 + $0x58] sm:$0xff]
    %v40 = vld [vmem:[%s1 + $0x60] sm:$0xff]
    %v41 = vld [vmem:[%s1 + $0x68] sm:$0xff]
    %v42 = vld [vmem:[%s1 + $0x70] sm:$0xff]
    %v43 = vld [vmem:[%s1 + $0x78] sm:$0xff]
    %v44 = vld [vmem:[%s1 + $0x80] sm:$0xff]
    %v45 = vld [vmem:[%s1 + $0x88] sm:$0xff]
    %v46 = vld [vmem:[%s1 + $0x90] sm:$0xff]
    %v47 = vld [vmem:[%s1 + $0x98] sm:$0xff]
    %v48 = vld [vmem:[%s1 + $0xa0] sm:$0xff]
    %v49 = vld [vmem:[%s1 + $0xa8] sm:$0xff]
    %v50 = vld [vmem:[%s1 + $0xb0] sm:$0xff]
    %v51 = vld [vmem:[%s1 + $0xb8] sm:$0xff]
    %v52 = vld [vmem:[%s1 + $0xc0] sm:$0xff]
    %v53 = vld [vmem:[%s1 + $0xc8] sm:$0xff]
    %v54 = vld [vmem:[%s1 + $0xd0] sm:$0xff]
    %v55 = vld [vmem:[%s1 + $0xd8] sm:$0xff]
    %v56 = vld [vmem:[%s1 + $0xe0] sm:$0xff]
    %v57 = vld [vmem:[%s1 + $0xe8] sm:$0xff]
    %v58 = vld [vmem:[%s1 + $0xf0] sm:$0xff]
    %v59 = vld [vmem:[%s1 + $0xf8] sm:$0xff]
    %v60 = vld [vmem:[%s1 + $0x100] sm:$0xff]
    %v61 = vld [vmem:[%s1 + $0x108] sm:$0xff]
    %v62 = vld [vmem:[%s1 + $0x110] sm:$0xff]
    %v63 = vld [vmem:[%s1 + $0x118] sm:$0xff]
    %v64 = vld [vmem:[%s1 + $0x120] sm:$0xff]
    %v65 = vld [vmem:[%s1 + $0x128] sm:$0xff]
    %v66 = vld [vmem:[%s1 + $0x130] sm:$0xff]
    %v67 = vld [vmem:[%s1 + $0x138] sm:$0xff]
    %v68 = vld [vmem:[%s1 + $0x140] sm:$0xff]
    %v69 = vld [vmem:[%s1 + $0x148] sm:$0xff]
    %v70 = vld [vmem:[%s1 + $0x150] sm:$0xff]
    %v71 = vld [vmem:[%s1 + $0x158] sm:$0xff]
    %v72 = vld [vmem:[%s1 + $0x160] sm:$0xff]
    %v73 = vld [vmem:[%s1 + $0x168] sm:$0xff]
    %v74 = vld [vmem:[%s1 + $0x170] sm:$0xff]
    %v75 = vld [vmem:[%s1 + $0x178] sm:$0xff]
    %v76 = vld [vmem:[%s1 + $0x180] sm:$0xff]
    %v77 = vld [vmem:[%s1 + $0x188] sm:$0xff]
    %v78 = vld [vmem:[%s1 + $0x190] sm:$0xff]
    %v79 = vld [vmem:[%s1 + $0x198] sm:$0xff]
    %v80 = vld [vmem:[%s1 + $0x1a0] sm:$0xff]
    %v81 = vld [vmem:[%s1 + $0x1a8] sm:$0xff]
    %v82 = vld [vmem:[%s1 + $0x1b0] sm:$0xff]
    %v83 = vld [vmem:[%s1 + $0x1b8] sm:$0xff]
    %v84 = vld [vmem:[%s1 + $0x1c0] sm:$0xff]
    %v85 = vld [vmem:[%s1 + $0x1c8] sm:$0xff]
    %v86 = vld [vmem:[%s1 + $0x1d0] sm:$0xff]
    %v87 = vld [vmem:[%s1 + $0x1d8] sm:$0xff]
    %v88 = vld [vmem:[%s1 + $0x1e0] sm:$0xff]
    %v89 = vld [vmem:[%s1 + $0x1e8] sm:$0xff]
    %v90 = vld [vmem:[%s1 + $0x1f0] sm:$0xff]
    %v91 = vld [vmem:[%s1 + $0x1f8] sm:$0xff]
    %v92 = vld [vmem:[%s2] sm:$0x1]
    %v94 = vperm.slane %v92, 0
    %97 = vst [vmem:[#allocation1] ss:$4 sm:$0xff] %v27
    %v98 = vld.sshfl [vmem:[#allocation1] sm:$0xff pattern:$0x73625140]
    %v99 = vld.sshfl [vmem:[#allocation1 + $0x8] sm:$0xff pattern:$0x73625140]
    %v100 = vld.sshfl [vmem:[#allocation1 + $0x10] sm:$0xff pattern:$0x73625140]
    %v101 = vld.sshfl [vmem:[#allocation1 + $0x18] sm:$0xff pattern:$0x73625140]
    %106 = vmatpush.msra.mxu0 %v43
    %107 = vmatpush.msra.mxu0 %v42
    %108 = vmatpush.msra.mxu0 %v41
    %109 = vmatpush.msra.mxu0 %v40
    %110 = vmatpush.msra.mxu0 %v39
    %111 = vmatpush.msra.mxu0 %v38
    %112 = vmatpush.msra.mxu0 %v37
    %113 = vmatpush.msra.mxu0 %v36
    %114 = vmatpush.msra.mxu0 %v35
    %115 = vmatpush.msra.mxu0 %v34
    %116 = vmatpush.msra.mxu0 %v33
    %117 = vmatpush.msra.mxu0 %v32
    %118 = vmatpush.msra.mxu0 %v31
    %119 = vmatpush.msra.mxu0 %v30
    %120 = vmatpush.msra.mxu0 %v29
    %121 = vmatpush.msra.mxu0 %v28
    %122 = vmatmul.f32.gmra.mxu0 %v98
    %v123 = vpop.f32.mrf.mxu0
    %v124 = vadd.f32 %v94, %v123
    %125 = vdwg.mxu0
    %126 = vmatpush.msra.mxu0 %v59
    %127 = vmatpush.msra.mxu0 %v58
    %128 = vmatpush.msra.mxu0 %v57
    %129 = vmatpush.msra.mxu0 %v56
    %130 = vmatpush.msra.mxu0 %v55
    %131 = vmatpush.msra.mxu0 %v54
    %132 = vmatpush.msra.mxu0 %v53
    %133 = vmatpush.msra.mxu0 %v52
    %134 = vmatpush.msra.mxu0 %v51
    %135 = vmatpush.msra.mxu0 %v50
    %136 = vmatpush.msra.mxu0 %v49
    %137 = vmatpush.msra.mxu0 %v48
    %138 = vmatpush.msra.mxu0 %v47
    %139 = vmatpush.msra.mxu0 %v46
    %140 = vmatpush.msra.mxu0 %v45
    %141 = vmatpush.msra.mxu0 %v44
    %142 = vmatmul.f32.gmra.mxu0 %v99
    %v143 = vpop.f32.mrf.mxu0
    %v144 = vadd.f32 %v124, %v143
    %145 = vdwg.mxu0
    %146 = vmatpush.msra.mxu0 %v75
    %147 = vmatpush.msra.mxu0 %v74
    %148 = vmatpush.msra.mxu0 %v73
    %149 = vmatpush.msra.mxu0 %v72
    %150 = vmatpush.msra.mxu0 %v71
    %151 = vmatpush.msra.mxu0 %v70
    %152 = vmatpush.msra.mxu0 %v69
    %153 = vmatpush.msra.mxu0 %v68
    %154 = vmatpush.msra.mxu0 %v67
    %155 = vmatpush.msra.mxu0 %v66
    %156 = vmatpush.msra.mxu0 %v65
    %157 = vmatpush.msra.mxu0 %v64
    %158 = vmatpush.msra.mxu0 %v63
    %159 = vmatpush.msra.mxu0 %v62
    %160 = vmatpush.msra.mxu0 %v61
    %161 = vmatpush.msra.mxu0 %v60
    %162 = vmatmul.f32.gmra.mxu0 %v100
    %v163 = vpop.f32.mrf.mxu0
    %v164 = vadd.f32 %v144, %v163
    %165 = vdwg.mxu0
    %166 = vmatpush.msra.mxu0 %v91
    %167 = vmatpush.msra.mxu0 %v90
    %168 = vmatpush.msra.mxu0 %v89
    %169 = vmatpush.msra.mxu0 %v88
    %170 = vmatpush.msra.mxu0 %v87
    %171 = vmatpush.msra.mxu0 %v86
    %172 = vmatpush.msra.mxu0 %v85
    %173 = vmatpush.msra.mxu0 %v84
    %174 = vmatpush.msra.mxu0 %v83
    %175 = vmatpush.msra.mxu0 %v82
    %176 = vmatpush.msra.mxu0 %v81
    %177 = vmatpush.msra.mxu0 %v80
    %178 = vmatpush.msra.mxu0 %v79
    %179 = vmatpush.msra.mxu0 %v78
    %180 = vmatpush.msra.mxu0 %v77
    %181 = vmatpush.msra.mxu0 %v76
    %182 = vmatmul.f32.gmra.mxu0 %v101
    %v183 = vpop.f32.mrf.mxu0
    %v184 = vadd.f32 %v164, %v183
    %185 = vdwg.mxu0
    %v186 = vmax.f32 %v184, 0.0
    %v187 = vld [vmem:[%s3] sm:$0xff]
    %v188 = vld [vmem:[%s3 + $0x8] sm:$0xff]
    %v189 = vld [vmem:[%s3 + $0x10] sm:$0xff]
    %v190 = vld [vmem:[%s3 + $0x18] sm:$0xff]
    %v191 = vld [vmem:[%s3 + $0x20] sm:$0xff]
    %v192 = vld [vmem:[%s3 + $0x28] sm:$0xff]
    %v193 = vld [vmem:[%s3 + $0x30] sm:$0xff]
    %v194 = vld [vmem:[%s3 + $0x38] sm:$0xff]
    %v195 = vld [vmem:[%s3 + $0x40] sm:$0xff]
    %v196 = vld [vmem:[%s3 + $0x48] sm:$0xff]
    %v197 = vld [vmem:[%s3 + $0x50] sm:$0xff]
    %v198 = vld [vmem:[%s3 + $0x58] sm:$0xff]
    %v199 = vld [vmem:[%s3 + $0x60] sm:$0xff]
    %v200 = vld [vmem:[%s3 + $0x68] sm:$0xff]
    %v201 = vld [vmem:[%s3 + $0x70] sm:$0xff]
    %v202 = vld [vmem:[%s3 + $0x78] sm:$0xff]
    %v203 = vld [vmem:[%s4] sm:$0x1]
    %v205 = vperm.slane %v203, 0
    %207 = vmatpush.msra.mxu0 %v202
    %208 = vmatpush.msra.mxu0 %v201
    %209 = vmatpush.msra.mxu0 %v200
    %210 = vmatpush.msra.mxu0 %v199
    %211 = vmatpush.msra.mxu0 %v198
    %212 = vmatpush.msra.mxu0 %v197
    %213 = vmatpush.msra.mxu0 %v196
    %214 = vmatpush.msra.mxu0 %v195
    %215 = vmatpush.msra.mxu0 %v194
    %216 = vmatpush.msra.mxu0 %v193
    %217 = vmatpush.msra.mxu0 %v192
    %218 = vmatpush.msra.mxu0 %v191
    %219 = vmatpush.msra.mxu0 %v190
    %220 = vmatpush.msra.mxu0 %v189
    %221 = vmatpush.msra.mxu0 %v188
    %222 = vmatpush.msra.mxu0 %v187
    %223 = vmatmul.f32.gmra.mxu0 %v186
    %v224 = vpop.f32.mrf.mxu0
    %v225 = vadd.f32 %v205, %v224
    %226 = vdwg.mxu0
    %v227 = vmax.f32 %v225, 0.0
    %v228 = vld [vmem:[%s5] sm:$0xff]
    %v229 = vld [vmem:[%s5 + $0x8] sm:$0xff]
    %v230 = vld [vmem:[%s5 + $0x10] sm:$0xff]
    %v231 = vld [vmem:[%s5 + $0x18] sm:$0xff]
    %v232 = vld [vmem:[%s5 + $0x20] sm:$0xff]
    %v233 = vld [vmem:[%s5 + $0x28] sm:$0xff]
    %v234 = vld [vmem:[%s5 + $0x30] sm:$0xff]
    %v235 = vld [vmem:[%s5 + $0x38] sm:$0xff]
    %v236 = vld [vmem:[%s5 + $0x40] sm:$0xff]
    %v237 = vld [vmem:[%s5 + $0x48] sm:$0xff]
    %v238 = vld [vmem:[%s5 + $0x50] sm:$0xff]
    %v239 = vld [vmem:[%s5 + $0x58] sm:$0xff]
    %v240 = vld [vmem:[%s5 + $0x60] sm:$0xff]
    %v241 = vld [vmem:[%s5 + $0x68] sm:$0xff]
    %v242 = vld [vmem:[%s5 + $0x70] sm:$0xff]
    %v243 = vld [vmem:[%s5 + $0x78] sm:$0xff]
    %v244 = vld [vmem:[%s6] sm:$0x1]
    %v246 = vperm.slane %v244, 0
    %248 = vmatpush.msra.mxu0 %v243
    %249 = vmatpush.msra.mxu0 %v242
    %250 = vmatpush.msra.mxu0 %v241
    %251 = vmatpush.msra.mxu0 %v240
    %252 = vmatpush.msra.mxu0 %v239
    %253 = vmatpush.msra.mxu0 %v238
    %254 = vmatpush.msra.mxu0 %v237
    %255 = vmatpush.msra.mxu0 %v236
    %256 = vmatpush.msra.mxu0 %v235
    %257 = vmatpush.msra.mxu0 %v234
    %258 = vmatpush.msra.mxu0 %v233
    %259 = vmatpush.msra.mxu0 %v232
    %260 = vmatpush.msra.mxu0 %v231
    %261 = vmatpush.msra.mxu0 %v230
    %262 = vmatpush.msra.mxu0 %v229
    %263 = vmatpush.msra.mxu0 %v228
    %264 = vmatmul.f32.gmra.mxu0 %v227
    %v265 = vpop.f32.mrf.mxu0
    %v266 = vadd.f32 %v246, %v265
    %267 = vdwg.mxu0
    %268 = vst [vmem:[#allocation2] sm:$0x3] %v266
    // Predicated region
    $region30: #{lenet5_forward.5} parent=1 // pred_check
      _
    $region31: #{lenet5_forward.5} parent=1 // pred_check_branch
      %270 = sbr.rel (0) target = $region33
    $region32: #{lenet5_forward.5} parent=1 // pred_region
      %272 = vsyncadd [#allocation3], 0
      %s274 = sshll.u32 [#allocation2], 4
      %s275 = int_to_ptr.vmem [resolvable:$true] %s274
      %s276 = sshll.u32 %s7, 4
      %s277 = int_to_ptr.hbm [resolvable:$true] %s276
      %279 = dma.vmem_to_hbm [thread:$0]  %s275, 32, %s277, [#allocation3]
    $region33: #{lenet5_forward.5} parent=1 // pred_fallthru
      _
    // Predicated region
    $region34: #{lenet5_forward.5} parent=1 // pred_check
      _
    $region35: #{lenet5_forward.5} parent=1 // pred_check_branch
      %281 = sbr.rel (0) target = $region37
    $region36: #{lenet5_forward.5} parent=1 // pred_region
      %283 = dma.done [#allocation3], 32
    $region37: #{lenet5_forward.5} parent=1 // pred_fallthru
      _
    %284 = vsyncpa [#allocation3], 1

// kernel: lenet5_forward.4
$region0: #{lenet5_forward.4}
  #allocation0 [shape = 'u32[]', space=smem, size = 0x4, offset = 0x4, fixed_abs, tag = 'smem constant byte address 0x4 - core index']
  #allocation1 [shape = 'u32[72,128]{1,0:T(1,128)}', space=vmem, size = 0x9000, scoped, tag = 'internal scratch']
  %s0 = inlined_call_operand.vmem [shape: f32[8,3200], index: 0, kind: input, shape index: {}]
  %s1 = inlined_call_operand.vmem [shape: f32[8,3200], index: 1, kind: input, shape index: {}]
  %s2 = inlined_call_operand.vmem [shape: f32[8,3200], index: 2, kind: input, shape index: {}]
  %s3 = inlined_call_operand.vmem [shape: f32[8,3200], index: 3, kind: input, shape index: {}]
  %s4 = inlined_call_operand.vmem [shape: f32[3200,128], index: 4, kind: input, shape index: {}]
  %s5 = inlined_call_operand.vmem [shape: f32[1,128], index: 5, kind: input, shape index: {}]
  %s6 = inlined_call_operand.vmem [shape: f32[8,128], index: 6, kind: output, shape index: {}]
  %s7 = sld [smem:[#allocation0]]
  $region34: #{lenet5_forward.4} parent=0
    _
  %s9 = ssub.s32 1, %s7
  %s10 = scalar_select 0, %s9, %s7
  // Predicated region
  $region2: #{lenet5_forward.4} parent=0 // pred_check
    _
  $region3: #{lenet5_forward.4} parent=0 // pred_check_branch
    %12 = sbr.rel (0) target = $region5
  $region4: #{lenet5_forward.4} parent=0 // pred_region
    _
  $region5: #{lenet5_forward.4} parent=0 // pred_fallthru
    _
  // Predicated region
  $region6: #{lenet5_forward.4} parent=0 // pred_check
    _
  $region7: #{lenet5_forward.4} parent=0 // pred_check_branch
    %14 = sbr.rel (0) target = $region9
  $region8: #{lenet5_forward.4} parent=0 // pred_region
    _
  $region9: #{lenet5_forward.4} parent=0 // pred_fallthru
    _
  // Predicated region
  $region10: #{lenet5_forward.4} parent=0 // pred_check
    _
  $region11: #{lenet5_forward.4} parent=0 // pred_check_branch
    %16 = sbr.rel (0) target = $region13
  $region12: #{lenet5_forward.4} parent=0 // pred_region
    _
  $region13: #{lenet5_forward.4} parent=0 // pred_fallthru
    _
  // Predicated region
  $region14: #{lenet5_forward.4} parent=0 // pred_check
    _
  $region15: #{lenet5_forward.4} parent=0 // pred_check_branch
    %18 = sbr.rel (0) target = $region17
  $region16: #{lenet5_forward.4} parent=0 // pred_region
    _
  $region17: #{lenet5_forward.4} parent=0 // pred_fallthru
    _
  // Predicated region
  $region18: #{lenet5_forward.4} parent=0 // pred_check
    _
  $region19: #{lenet5_forward.4} parent=0 // pred_check_branch
    %20 = sbr.rel (0) target = $region21
  $region20: #{lenet5_forward.4} parent=0 // pred_region
    _
  $region21: #{lenet5_forward.4} parent=0 // pred_fallthru
    _
  // Predicated region
  $region22: #{lenet5_forward.4} parent=0 // pred_check
    _
  $region23: #{lenet5_forward.4} parent=0 // pred_check_branch
    %22 = sbr.rel (0) target = $region25
  $region24: #{lenet5_forward.4} parent=0 // pred_region
    _
  $region25: #{lenet5_forward.4} parent=0 // pred_fallthru
    _
  %v23 = vld [vmem:[%s4] sm:$0xff]
  %v24 = vld [vmem:[%s4 + $0x8] sm:$0xff]
  %v25 = vld [vmem:[%s4 + $0x10] sm:$0xff]
  %v26 = vld [vmem:[%s4 + $0x18] sm:$0xff]
  %v27 = vld [vmem:[%s4 + $0x20] sm:$0xff]
  %v28 = vld [vmem:[%s4 + $0x28] sm:$0xff]
  %v29 = vld [vmem:[%s4 + $0x30] sm:$0xff]
  %v30 = vld [vmem:[%s4 + $0x38] sm:$0xff]
  %v31 = vld [vmem:[%s4 + $0x40] sm:$0xff]
  %v32 = vld [vmem:[%s4 + $0x48] sm:$0xff]
  %v33 = vld [vmem:[%s4 + $0x50] sm:$0xff]
  %v34 = vld [vmem:[%s4 + $0x58] sm:$0xff]
  %v35 = vld [vmem:[%s4 + $0x60] sm:$0xff]
  %v36 = vld [vmem:[%s4 + $0x68] sm:$0xff]
  %v37 = vld [vmem:[%s4 + $0x70] sm:$0xff]
  %v38 = vld [vmem:[%s4 + $0x78] sm:$0xff]
  %v39 = vld [vmem:[%s4 + $0x80] sm:$0xff]
  %v40 = vld [vmem:[%s4 + $0x88] sm:$0xff]
  %v41 = vld [vmem:[%s4 + $0x90] sm:$0xff]
  %v42 = vld [vmem:[%s4 + $0x98] sm:$0xff]
  %v43 = vld [vmem:[%s4 + $0xa0] sm:$0xff]
  %v44 = vld [vmem:[%s4 + $0xa8] sm:$0xff]
  %v45 = vld [vmem:[%s4 + $0xb0] sm:$0xff]
  %v46 = vld [vmem:[%s4 + $0xb8] sm:$0xff]
  %v47 = vld [vmem:[%s4 + $0xc0] sm:$0xff]
  %v48 = vld [vmem:[%s4 + $0xc8] sm:$0xff]
  %v49 = vld [vmem:[%s4 + $0xd0] sm:$0xff]
  %v50 = vld [vmem:[%s4 + $0xd8] sm:$0xff]
  %v51 = vld [vmem:[%s4 + $0xe0] sm:$0xff]
  %v52 = vld [vmem:[%s4 + $0xe8] sm:$0xff]
  %v53 = vld [vmem:[%s4 + $0xf0] sm:$0xff]
  %v54 = vld [vmem:[%s4 + $0xf8] sm:$0xff]
  %v55 = vld [vmem:[%s4 + $0x100] sm:$0xff]
  %v56 = vld [vmem:[%s4 + $0x108] sm:$0xff]
  %v57 = vld [vmem:[%s4 + $0x110] sm:$0xff]
  %v58 = vld [vmem:[%s4 + $0x118] sm:$0xff]
  %v59 = vld [vmem:[%s4 + $0x120] sm:$0xff]
  %v60 = vld [vmem:[%s4 + $0x128] sm:$0xff]
  %v61 = vld [vmem:[%s4 + $0x130] sm:$0xff]
  %v62 = vld [vmem:[%s4 + $0x138] sm:$0xff]
  %v63 = vld [vmem:[%s4 + $0x140] sm:$0xff]
  %v64 = vld [vmem:[%s4 + $0x148] sm:$0xff]
  %v65 = vld [vmem:[%s4 + $0x150] sm:$0xff]
  %v66 = vld [vmem:[%s4 + $0x158] sm:$0xff]
  %v67 = vld [vmem:[%s4 + $0x160] sm:$0xff]
  %v68 = vld [vmem:[%s4 + $0x168] sm:$0xff]
  %v69 = vld [vmem:[%s4 + $0x170] sm:$0xff]
  %v70 = vld [vmem:[%s4 + $0x178] sm:$0xff]
  %v71 = vld [vmem:[%s4 + $0x180] sm:$0xff]
  %v72 = vld [vmem:[%s4 + $0x188] sm:$0xff]
  %v73 = vld [vmem:[%s4 + $0x190] sm:$0xff]
  %v74 = vld [vmem:[%s4 + $0x198] sm:$0xff]
  %v75 = vld [vmem:[%s4 + $0x1a0] sm:$0xff]
  %v76 = vld [vmem:[%s4 + $0x1a8] sm:$0xff]
  %v77 = vld [vmem:[%s4 + $0x1b0] sm:$0xff]
  %v78 = vld [vmem:[%s4 + $0x1b8] sm:$0xff]
  %v79 = vld [vmem:[%s4 + $0x1c0] sm:$0xff]
  %v80 = vld [vmem:[%s4 + $0x1c8] sm:$0xff]
  %v81 = vld [vmem:[%s4 + $0x1d0] sm:$0xff]
  %v82 = vld [vmem:[%s4 + $0x1d8] sm:$0xff]
  %v83 = vld [vmem:[%s4 + $0x1e0] sm:$0xff]
  %v84 = vld [vmem:[%s4 + $0x1e8] sm:$0xff]
  %v85 = vld [vmem:[%s4 + $0x1f0] sm:$0xff]
  %v86 = vld [vmem:[%s4 + $0x1f8] sm:$0xff]
  %v87 = vld [vmem:[%s4 + $0x200] sm:$0xff]
  %v88 = vld [vmem:[%s4 + $0x208] sm:$0xff]
  %v89 = vld [vmem:[%s4 + $0x210] sm:$0xff]
  %v90 = vld [vmem:[%s4 + $0x218] sm:$0xff]
  %v91 = vld [vmem:[%s4 + $0x220] sm:$0xff]
  %v92 = vld [vmem:[%s4 + $0x228] sm:$0xff]
  %v93 = vld [vmem:[%s4 + $0x230] sm:$0xff]
  %v94 = vld [vmem:[%s4 + $0x238] sm:$0xff]
  %v95 = vld [vmem:[%s4 + $0x240] sm:$0xff]
  %v96 = vld [vmem:[%s4 + $0x248] sm:$0xff]
  %v97 = vld [vmem:[%s4 + $0x250] sm:$0xff]
  %v98 = vld [vmem:[%s4 + $0x258] sm:$0xff]
  %v99 = vld [vmem:[%s4 + $0x260] sm:$0xff]
  %v100 = vld [vmem:[%s4 + $0x268] sm:$0xff]
  %v101 = vld [vmem:[%s4 + $0x270] sm:$0xff]
  %v102 = vld [vmem:[%s4 + $0x278] sm:$0xff]
  %v103 = vld [vmem:[%s4 + $0x280] sm:$0xff]
  %v104 = vld [vmem:[%s4 + $0x288] sm:$0xff]
  %v105 = vld [vmem:[%s4 + $0x290] sm:$0xff]
  %v106 = vld [vmem:[%s4 + $0x298] sm:$0xff]
  %v107 = vld [vmem:[%s4 + $0x2a0] sm:$0xff]
  %v108 = vld [vmem:[%s4 + $0x2a8] sm:$0xff]
  %v109 = vld [vmem:[%s4 + $0x2b0] sm:$0xff]
  %v110 = vld [vmem:[%s4 + $0x2b8] sm:$0xff]
  %v111 = vld [vmem:[%s4 + $0x2c0] sm:$0xff]
  %v112 = vld [vmem:[%s4 + $0x2c8] sm:$0xff]
  %v113 = vld [vmem:[%s4 + $0x2d0] sm:$0xff]
  %v114 = vld [vmem:[%s4 + $0x2d8] sm:$0xff]
  %v115 = vld [vmem:[%s4 + $0x2e0] sm:$0xff]
  %v116 = vld [vmem:[%s4 + $0x2e8] sm:$0xff]
  %v117 = vld [vmem:[%s4 + $0x2f0] sm:$0xff]
  %v118 = vld [vmem:[%s4 + $0x2f8] sm:$0xff]
  %v119 = vld [vmem:[%s4 + $0x300] sm:$0xff]
  %v120 = vld [vmem:[%s4 + $0x308] sm:$0xff]
  %v121 = vld [vmem:[%s4 + $0x310] sm:$0xff]
  %v122 = vld [vmem:[%s4 + $0x318] sm:$0xff]
  %v123 = vld [vmem:[%s4 + $0x320] sm:$0xff]
  %v124 = vld [vmem:[%s4 + $0x328] sm:$0xff]
  %v125 = vld [vmem:[%s4 + $0x330] sm:$0xff]
  %v126 = vld [vmem:[%s4 + $0x338] sm:$0xff]
  %v127 = vld [vmem:[%s4 + $0x340] sm:$0xff]
  %v128 = vld [vmem:[%s4 + $0x348] sm:$0xff]
  %v129 = vld [vmem:[%s4 + $0x350] sm:$0xff]
  %v130 = vld [vmem:[%s4 + $0x358] sm:$0xff]
  %v131 = vld [vmem:[%s4 + $0x360] sm:$0xff]
  %v132 = vld [vmem:[%s4 + $0x368] sm:$0xff]
  %v133 = vld [vmem:[%s4 + $0x370] sm:$0xff]
  %v134 = vld [vmem:[%s4 + $0x378] sm:$0xff]
  %v135 = vld [vmem:[%s4 + $0x380] sm:$0xff]
  %v136 = vld [vmem:[%s4 + $0x388] sm:$0xff]
  %v137 = vld [vmem:[%s4 + $0x390] sm:$0xff]
  %v138 = vld [vmem:[%s4 + $0x398] sm:$0xff]
  %v139 = vld [vmem:[%s4 + $0x3a0] sm:$0xff]
  %v140 = vld [vmem:[%s4 + $0x3a8] sm:$0xff]
  %v141 = vld [vmem:[%s4 + $0x3b0] sm:$0xff]
  %v142 = vld [vmem:[%s4 + $0x3b8] sm:$0xff]
  %v143 = vld [vmem:[%s4 + $0x3c0] sm:$0xff]
  %v144 = vld [vmem:[%s4 + $0x3c8] sm:$0xff]
  %v145 = vld [vmem:[%s4 + $0x3d0] sm:$0xff]
  %v146 = vld [vmem:[%s4 + $0x3d8] sm:$0xff]
  %v147 = vld [vmem:[%s4 + $0x3e0] sm:$0xff]
  %v148 = vld [vmem:[%s4 + $0x3e8] sm:$0xff]
  %v149 = vld [vmem:[%s4 + $0x3f0] sm:$0xff]
  %v150 = vld [vmem:[%s4 + $0x3f8] sm:$0xff]
  %v151 = vld [vmem:[%s4 + $0x400] sm:$0xff]
  %v152 = vld [vmem:[%s4 + $0x408] sm:$0xff]
  %v153 = vld [vmem:[%s4 + $0x410] sm:$0xff]
  %v154 = vld [vmem:[%s4 + $0x418] sm:$0xff]
  %v155 = vld [vmem:[%s4 + $0x420] sm:$0xff]
  %v156 = vld [vmem:[%s4 + $0x428] sm:$0xff]
  %v157 = vld [vmem:[%s4 + $0x430] sm:$0xff]
  %v158 = vld [vmem:[%s4 + $0x438] sm:$0xff]
  %v159 = vld [vmem:[%s4 + $0x440] sm:$0xff]
  %v160 = vld [vmem:[%s4 + $0x448] sm:$0xff]
  %v161 = vld [vmem:[%s4 + $0x450] sm:$0xff]
  %v162 = vld [vmem:[%s4 + $0x458] sm:$0xff]
  %v163 = vld [vmem:[%s4 + $0x460] sm:$0xff]
  %v164 = vld [vmem:[%s4 + $0x468] sm:$0xff]
  %v165 = vld [vmem:[%s4 + $0x470] sm:$0xff]
  %v166 = vld [vmem:[%s4 + $0x478] sm:$0xff]
  %v167 = vld [vmem:[%s4 + $0x480] sm:$0xff]
  %v168 = vld [vmem:[%s4 + $0x488] sm:$0xff]
  %v169 = vld [vmem:[%s4 + $0x490] sm:$0xff]
  %v170 = vld [vmem:[%s4 + $0x498] sm:$0xff]
  %v171 = vld [vmem:[%s4 + $0x4a0] sm:$0xff]
  %v172 = vld [vmem:[%s4 + $0x4a8] sm:$0xff]
  %v173 = vld [vmem:[%s4 + $0x4b0] sm:$0xff]
  %v174 = vld [vmem:[%s4 + $0x4b8] sm:$0xff]
  %v175 = vld [vmem:[%s4 + $0x4c0] sm:$0xff]
  %v176 = vld [vmem:[%s4 + $0x4c8] sm:$0xff]
  %v177 = vld [vmem:[%s4 + $0x4d0] sm:$0xff]
  %v178 = vld [vmem:[%s4 + $0x4d8] sm:$0xff]
  %v179 = vld [vmem:[%s4 + $0x4e0] sm:$0xff]
  %v180 = vld [vmem:[%s4 + $0x4e8] sm:$0xff]
  %v181 = vld [vmem:[%s4 + $0x4f0] sm:$0xff]
  %v182 = vld [vmem:[%s4 + $0x4f8] sm:$0xff]
  %v183 = vld [vmem:[%s4 + $0x500] sm:$0xff]
  %v184 = vld [vmem:[%s4 + $0x508] sm:$0xff]
  %v185 = vld [vmem:[%s4 + $0x510] sm:$0xff]
  %v186 = vld [vmem:[%s4 + $0x518] sm:$0xff]
  %v187 = vld [vmem:[%s4 + $0x520] sm:$0xff]
  %v188 = vld [vmem:[%s4 + $0x528] sm:$0xff]
  %v189 = vld [vmem:[%s4 + $0x530] sm:$0xff]
  %v190 = vld [vmem:[%s4 + $0x538] sm:$0xff]
  %v191 = vld [vmem:[%s4 + $0x540] sm:$0xff]
  %v192 = vld [vmem:[%s4 + $0x548] sm:$0xff]
  %v193 = vld [vmem:[%s4 + $0x550] sm:$0xff]
  %v194 = vld [vmem:[%s4 + $0x558] sm:$0xff]
  %v195 = vld [vmem:[%s4 + $0x560] sm:$0xff]
  %v196 = vld [vmem:[%s4 + $0x568] sm:$0xff]
  %v197 = vld [vmem:[%s4 + $0x570] sm:$0xff]
  %v198 = vld [vmem:[%s4 + $0x578] sm:$0xff]
  %v199 = vld [vmem:[%s4 + $0x580] sm:$0xff]
  %v200 = vld [vmem:[%s4 + $0x588] sm:$0xff]
  %v201 = vld [vmem:[%s4 + $0x590] sm:$0xff]
  %v202 = vld [vmem:[%s4 + $0x598] sm:$0xff]
  %v203 = vld [vmem:[%s4 + $0x5a0] sm:$0xff]
  %v204 = vld [vmem:[%s4 + $0x5a8] sm:$0xff]
  %v205 = vld [vmem:[%s4 + $0x5b0] sm:$0xff]
  %v206 = vld [vmem:[%s4 + $0x5b8] sm:$0xff]
  %v207 = vld [vmem:[%s4 + $0x5c0] sm:$0xff]
  %v208 = vld [vmem:[%s4 + $0x5c8] sm:$0xff]
  %v209 = vld [vmem:[%s4 + $0x5d0] sm:$0xff]
  %v210 = vld [vmem:[%s4 + $0x5d8] sm:$0xff]
  %v211 = vld [vmem:[%s4 + $0x5e0] sm:$0xff]
  %v212 = vld [vmem:[%s4 + $0x5e8] sm:$0xff]
  %v213 = vld [vmem:[%s4 + $0x5f0] sm:$0xff]
  %v214 = vld [vmem:[%s4 + $0x5f8] sm:$0xff]
  %v215 = vld [vmem:[%s4 + $0x600] sm:$0xff]
  %v216 = vld [vmem:[%s4 + $0x608] sm:$0xff]
  %v217 = vld [vmem:[%s4 + $0x610] sm:$0xff]
  %v218 = vld [vmem:[%s4 + $0x618] sm:$0xff]
  %v219 = vld [vmem:[%s4 + $0x620] sm:$0xff]
  %v220 = vld [vmem:[%s4 + $0x628] sm:$0xff]
  %v221 = vld [vmem:[%s4 + $0x630] sm:$0xff]
  %v222 = vld [vmem:[%s4 + $0x638] sm:$0xff]
  %v223 = vld [vmem:[%s4 + $0x640] sm:$0xff]
  %v224 = vld [vmem:[%s4 + $0x648] sm:$0xff]
  %v225 = vld [vmem:[%s4 + $0x650] sm:$0xff]
  %v226 = vld [vmem:[%s4 + $0x658] sm:$0xff]
  %v227 = vld [vmem:[%s4 + $0x660] sm:$0xff]
  %v228 = vld [vmem:[%s4 + $0x668] sm:$0xff]
  %v229 = vld [vmem:[%s4 + $0x670] sm:$0xff]
  %v230 = vld [vmem:[%s4 + $0x678] sm:$0xff]
  %v231 = vld [vmem:[%s4 + $0x680] sm:$0xff]
  %v232 = vld [vmem:[%s4 + $0x688] sm:$0xff]
  %v233 = vld [vmem:[%s4 + $0x690] sm:$0xff]
  %v234 = vld [vmem:[%s4 + $0x698] sm:$0xff]
  %v235 = vld [vmem:[%s4 + $0x6a0] sm:$0xff]
  %v236 = vld [vmem:[%s4 + $0x6a8] sm:$0xff]
  %v237 = vld [vmem:[%s4 + $0x6b0] sm:$0xff]
  %v238 = vld [vmem:[%s4 + $0x6b8] sm:$0xff]
  %v239 = vld [vmem:[%s4 + $0x6c0] sm:$0xff]
  %v240 = vld [vmem:[%s4 + $0x6c8] sm:$0xff]
  %v241 = vld [vmem:[%s4 + $0x6d0] sm:$0xff]
  %v242 = vld [vmem:[%s4 + $0x6d8] sm:$0xff]
  %v243 = vld [vmem:[%s4 + $0x6e0] sm:$0xff]
  %v244 = vld [vmem:[%s4 + $0x6e8] sm:$0xff]
  %v245 = vld [vmem:[%s4 + $0x6f0] sm:$0xff]
  %v246 = vld [vmem:[%s4 + $0x6f8] sm:$0xff]
  %v247 = vld [vmem:[%s4 + $0x700] sm:$0xff]
  %v248 = vld [vmem:[%s4 + $0x708] sm:$0xff]
  %v249 = vld [vmem:[%s4 + $0x710] sm:$0xff]
  %v250 = vld [vmem:[%s4 + $0x718] sm:$0xff]
  %v251 = vld [vmem:[%s4 + $0x720] sm:$0xff]
  %v252 = vld [vmem:[%s4 + $0x728] sm:$0xff]
  %v253 = vld [vmem:[%s4 + $0x730] sm:$0xff]
  %v254 = vld [vmem:[%s4 + $0x738] sm:$0xff]
  %v255 = vld [vmem:[%s4 + $0x740] sm:$0xff]
  %v256 = vld [vmem:[%s4 + $0x748] sm:$0xff]
  %v257 = vld [vmem:[%s4 + $0x750] sm:$0xff]
  %v258 = vld [vmem:[%s4 + $0x758] sm:$0xff]
  %v259 = vld [vmem:[%s4 + $0x760] sm:$0xff]
  %v260 = vld [vmem:[%s4 + $0x768] sm:$0xff]
  %v261 = vld [vmem:[%s4 + $0x770] sm:$0xff]
  %v262 = vld [vmem:[%s4 + $0x778] sm:$0xff]
  %v263 = vld [vmem:[%s4 + $0x780] sm:$0xff]
  %v264 = vld [vmem:[%s4 + $0x788] sm:$0xff]
  %v265 = vld [vmem:[%s4 + $0x790] sm:$0xff]
  %v266 = vld [vmem:[%s4 + $0x798] sm:$0xff]
  %v267 = vld [vmem:[%s4 + $0x7a0] sm:$0xff]
  %v268 = vld [vmem:[%s4 + $0x7a8] sm:$0xff]
  %v269 = vld [vmem:[%s4 + $0x7b0] sm:$0xff]
  %v270 = vld [vmem:[%s4 + $0x7b8] sm:$0xff]
  %v271 = vld [vmem:[%s4 + $0x7c0] sm:$0xff]
  %v272 = vld [vmem:[%s4 + $0x7c8] sm:$0xff]
  %v273 = vld [vmem:[%s4 + $0x7d0] sm:$0xff]
  %v274 = vld [vmem:[%s4 + $0x7d8] sm:$0xff]
  %v275 = vld [vmem:[%s4 + $0x7e0] sm:$0xff]
  %v276 = vld [vmem:[%s4 + $0x7e8] sm:$0xff]
  %v277 = vld [vmem:[%s4 + $0x7f0] sm:$0xff]
  %v278 = vld [vmem:[%s4 + $0x7f8] sm:$0xff]
  %v279 = vld [vmem:[%s4 + $0x800] sm:$0xff]
  %v280 = vld [vmem:[%s4 + $0x808] sm:$0xff]
  %v281 = vld [vmem:[%s4 + $0x810] sm:$0xff]
  %v282 = vld [vmem:[%s4 + $0x818] sm:$0xff]
  %v283 = vld [vmem:[%s4 + $0x820] sm:$0xff]
  %v284 = vld [vmem:[%s4 + $0x828] sm:$0xff]
  %v285 = vld [vmem:[%s4 + $0x830] sm:$0xff]
  %v286 = vld [vmem:[%s4 + $0x838] sm:$0xff]
  %v287 = vld [vmem:[%s4 + $0x840] sm:$0xff]
  %v288 = vld [vmem:[%s4 + $0x848] sm:$0xff]
  %v289 = vld [vmem:[%s4 + $0x850] sm:$0xff]
  %v290 = vld [vmem:[%s4 + $0x858] sm:$0xff]
  %v291 = vld [vmem:[%s4 + $0x860] sm:$0xff]
  %v292 = vld [vmem:[%s4 + $0x868] sm:$0xff]
  %v293 = vld [vmem:[%s4 + $0x870] sm:$0xff]
  %v294 = vld [vmem:[%s4 + $0x878] sm:$0xff]
  %v295 = vld [vmem:[%s4 + $0x880] sm:$0xff]
  %v296 = vld [vmem:[%s4 + $0x888] sm:$0xff]
  %v297 = vld [vmem:[%s4 + $0x890] sm:$0xff]
  %v298 = vld [vmem:[%s4 + $0x898] sm:$0xff]
  %v299 = vld [vmem:[%s4 + $0x8a0] sm:$0xff]
  %v300 = vld [vmem:[%s4 + $0x8a8] sm:$0xff]
  %v301 = vld [vmem:[%s4 + $0x8b0] sm:$0xff]
  %v302 = vld [vmem:[%s4 + $0x8b8] sm:$0xff]
  %v303 = vld [vmem:[%s4 + $0x8c0] sm:$0xff]
  %v304 = vld [vmem:[%s4 + $0x8c8] sm:$0xff]
  %v305 = vld [vmem:[%s4 + $0x8d0] sm:$0xff]
  %v306 = vld [vmem:[%s4 + $0x8d8] sm:$0xff]
  %v307 = vld [vmem:[%s4 + $0x8e0] sm:$0xff]
  %v308 = vld [vmem:[%s4 + $0x8e8] sm:$0xff]
  %v309 = vld [vmem:[%s4 + $0x8f0] sm:$0xff]
  %v310 = vld [vmem:[%s4 + $0x8f8] sm:$0xff]
  %v311 = vld [vmem:[%s4 + $0x900] sm:$0xff]
  %v312 = vld [vmem:[%s4 + $0x908] sm:$0xff]
  %v313 = vld [vmem:[%s4 + $0x910] sm:$0xff]
  %v314 = vld [vmem:[%s4 + $0x918] sm:$0xff]
  %v315 = vld [vmem:[%s4 + $0x920] sm:$0xff]
  %v316 = vld [vmem:[%s4 + $0x928] sm:$0xff]
  %v317 = vld [vmem:[%s4 + $0x930] sm:$0xff]
  %v318 = vld [vmem:[%s4 + $0x938] sm:$0xff]
  %v319 = vld [vmem:[%s4 + $0x940] sm:$0xff]
  %v320 = vld [vmem:[%s4 + $0x948] sm:$0xff]
  %v321 = vld [vmem:[%s4 + $0x950] sm:$0xff]
  %v322 = vld [vmem:[%s4 + $0x958] sm:$0xff]
  %v323 = vld [vmem:[%s4 + $0x960] sm:$0xff]
  %v324 = vld [vmem:[%s4 + $0x968] sm:$0xff]
  %v325 = vld [vmem:[%s4 + $0x970] sm:$0xff]
  %v326 = vld [vmem:[%s4 + $0x978] sm:$0xff]
  %v327 = vld [vmem:[%s4 + $0x980] sm:$0xff]
  %v328 = vld [vmem:[%s4 + $0x988] sm:$0xff]
  %v329 = vld [vmem:[%s4 + $0x990] sm:$0xff]
  %v330 = vld [vmem:[%s4 + $0x998] sm:$0xff]
  %v331 = vld [vmem:[%s4 + $0x9a0] sm:$0xff]
  %v332 = vld [vmem:[%s4 + $0x9a8] sm:$0xff]
  %v333 = vld [vmem:[%s4 + $0x9b0] sm:$0xff]
  %v334 = vld [vmem:[%s4 + $0x9b8] sm:$0xff]
  %v335 = vld [vmem:[%s4 + $0x9c0] sm:$0xff]
  %v336 = vld [vmem:[%s4 + $0x9c8] sm:$0xff]
  %v337 = vld [vmem:[%s4 + $0x9d0] sm:$0xff]
  %v338 = vld [vmem:[%s4 + $0x9d8] sm:$0xff]
  %v339 = vld [vmem:[%s4 + $0x9e0] sm:$0xff]
  %v340 = vld [vmem:[%s4 + $0x9e8] sm:$0xff]
  %v341 = vld [vmem:[%s4 + $0x9f0] sm:$0xff]
  %v342 = vld [vmem:[%s4 + $0x9f8] sm:$0xff]
  %v343 = vld [vmem:[%s4 + $0xa00] sm:$0xff]
  %v344 = vld [vmem:[%s4 + $0xa08] sm:$0xff]
  %v345 = vld [vmem:[%s4 + $0xa10] sm:$0xff]
  %v346 = vld [vmem:[%s4 + $0xa18] sm:$0xff]
  %v347 = vld [vmem:[%s4 + $0xa20] sm:$0xff]
  %v348 = vld [vmem:[%s4 + $0xa28] sm:$0xff]
  %v349 = vld [vmem:[%s4 + $0xa30] sm:$0xff]
  %v350 = vld [vmem:[%s4 + $0xa38] sm:$0xff]
  %v351 = vld [vmem:[%s4 + $0xa40] sm:$0xff]
  %v352 = vld [vmem:[%s4 + $0xa48] sm:$0xff]
  %v353 = vld [vmem:[%s4 + $0xa50] sm:$0xff]
  %v354 = vld [vmem:[%s4 + $0xa58] sm:$0xff]
  %v355 = vld [vmem:[%s4 + $0xa60] sm:$0xff]
  %v356 = vld [vmem:[%s4 + $0xa68] sm:$0xff]
  %v357 = vld [vmem:[%s4 + $0xa70] sm:$0xff]
  %v358 = vld [vmem:[%s4 + $0xa78] sm:$0xff]
  %v359 = vld [vmem:[%s4 + $0xa80] sm:$0xff]
  %v360 = vld [vmem:[%s4 + $0xa88] sm:$0xff]
  %v361 = vld [vmem:[%s4 + $0xa90] sm:$0xff]
  %v362 = vld [vmem:[%s4 + $0xa98] sm:$0xff]
  %v363 = vld [vmem:[%s4 + $0xaa0] sm:$0xff]
  %v364 = vld [vmem:[%s4 + $0xaa8] sm:$0xff]
  %v365 = vld [vmem:[%s4 + $0xab0] sm:$0xff]
  %v366 = vld [vmem:[%s4 + $0xab8] sm:$0xff]
  %v367 = vld [vmem:[%s4 + $0xac0] sm:$0xff]
  %v368 = vld [vmem:[%s4 + $0xac8] sm:$0xff]
  %v369 = vld [vmem:[%s4 + $0xad0] sm:$0xff]
  %v370 = vld [vmem:[%s4 + $0xad8] sm:$0xff]
  %v371 = vld [vmem:[%s4 + $0xae0] sm:$0xff]
  %v372 = vld [vmem:[%s4 + $0xae8] sm:$0xff]
  %v373 = vld [vmem:[%s4 + $0xaf0] sm:$0xff]
  %v374 = vld [vmem:[%s4 + $0xaf8] sm:$0xff]
  %v375 = vld [vmem:[%s4 + $0xb00] sm:$0xff]
  %v376 = vld [vmem:[%s4 + $0xb08] sm:$0xff]
  %v377 = vld [vmem:[%s4 + $0xb10] sm:$0xff]
  %v378 = vld [vmem:[%s4 + $0xb18] sm:$0xff]
  %v379 = vld [vmem:[%s4 + $0xb20] sm:$0xff]
  %v380 = vld [vmem:[%s4 + $0xb28] sm:$0xff]
  %v381 = vld [vmem:[%s4 + $0xb30] sm:$0xff]
  %v382 = vld [vmem:[%s4 + $0xb38] sm:$0xff]
  %v383 = vld [vmem:[%s4 + $0xb40] sm:$0xff]
  %v384 = vld [vmem:[%s4 + $0xb48] sm:$0xff]
  %v385 = vld [vmem:[%s4 + $0xb50] sm:$0xff]
  %v386 = vld [vmem:[%s4 + $0xb58] sm:$0xff]
  %v387 = vld [vmem:[%s4 + $0xb60] sm:$0xff]
  %v388 = vld [vmem:[%s4 + $0xb68] sm:$0xff]
  %v389 = vld [vmem:[%s4 + $0xb70] sm:$0xff]
  %v390 = vld [vmem:[%s4 + $0xb78] sm:$0xff]
  %v391 = vld [vmem:[%s4 + $0xb80] sm:$0xff]
  %v392 = vld [vmem:[%s4 + $0xb88] sm:$0xff]
  %v393 = vld [vmem:[%s4 + $0xb90] sm:$0xff]
  %v394 = vld [vmem:[%s4 + $0xb98] sm:$0xff]
  %v395 = vld [vmem:[%s4 + $0xba0] sm:$0xff]
  %v396 = vld [vmem:[%s4 + $0xba8] sm:$0xff]
  %v397 = vld [vmem:[%s4 + $0xbb0] sm:$0xff]
  %v398 = vld [vmem:[%s4 + $0xbb8] sm:$0xff]
  %v399 = vld [vmem:[%s4 + $0xbc0] sm:$0xff]
  %v400 = vld [vmem:[%s4 + $0xbc8] sm:$0xff]
  %v401 = vld [vmem:[%s4 + $0xbd0] sm:$0xff]
  %v402 = vld [vmem:[%s4 + $0xbd8] sm:$0xff]
  %v403 = vld [vmem:[%s4 + $0xbe0] sm:$0xff]
  %v404 = vld [vmem:[%s4 + $0xbe8] sm:$0xff]
  %v405 = vld [vmem:[%s4 + $0xbf0] sm:$0xff]
  %v406 = vld [vmem:[%s4 + $0xbf8] sm:$0xff]
  %v407 = vld [vmem:[%s4 + $0xc00] sm:$0xff]
  %v408 = vld [vmem:[%s4 + $0xc08] sm:$0xff]
  %v409 = vld [vmem:[%s4 + $0xc10] sm:$0xff]
  %v410 = vld [vmem:[%s4 + $0xc18] sm:$0xff]
  %v411 = vld [vmem:[%s4 + $0xc20] sm:$0xff]
  %v412 = vld [vmem:[%s4 + $0xc28] sm:$0xff]
  %v413 = vld [vmem:[%s4 + $0xc30] sm:$0xff]
  %v414 = vld [vmem:[%s4 + $0xc38] sm:$0xff]
  %v415 = vld [vmem:[%s4 + $0xc40] sm:$0xff]
  %v416 = vld [vmem:[%s4 + $0xc48] sm:$0xff]
  %v417 = vld [vmem:[%s4 + $0xc50] sm:$0xff]
  %v418 = vld [vmem:[%s4 + $0xc58] sm:$0xff]
  %v419 = vld [vmem:[%s4 + $0xc60] sm:$0xff]
  %v420 = vld [vmem:[%s4 + $0xc68] sm:$0xff]
  %v421 = vld [vmem:[%s4 + $0xc70] sm:$0xff]
  %v422 = vld [vmem:[%s4 + $0xc78] sm:$0xff]
  %v423 = vld [vmem:[%s0] sm:$0xff]
  %v424 = vld [vmem:[%s0 + $0x8] sm:$0xff]
  %v425 = vld [vmem:[%s0 + $0x10] sm:$0xff]
  %v426 = vld [vmem:[%s0 + $0x18] sm:$0xff]
  %v427 = vld [vmem:[%s0 + $0x20] sm:$0xff]
  %v428 = vld [vmem:[%s0 + $0x28] sm:$0xff]
  %v429 = vld [vmem:[%s0 + $0x30] sm:$0xff]
  %v430 = vld [vmem:[%s0 + $0x38] sm:$0xff]
  %v431 = vld [vmem:[%s0 + $0x40] sm:$0xff]
  %v432 = vld [vmem:[%s0 + $0x48] sm:$0xff]
  %v433 = vld [vmem:[%s0 + $0x50] sm:$0xff]
  %v434 = vld [vmem:[%s0 + $0x58] sm:$0xff]
  %v435 = vld [vmem:[%s0 + $0x60] sm:$0xff]
  %v436 = vld [vmem:[%s0 + $0x68] sm:$0xff]
  %v437 = vld [vmem:[%s0 + $0x70] sm:$0xff]
  %v438 = vld [vmem:[%s0 + $0x78] sm:$0xff]
  %v439 = vld [vmem:[%s0 + $0x80] sm:$0xff]
  %v440 = vld [vmem:[%s0 + $0x88] sm:$0xff]
  %v441 = vld [vmem:[%s0 + $0x90] sm:$0xff]
  %v442 = vld [vmem:[%s0 + $0x98] sm:$0xff]
  %v443 = vld [vmem:[%s0 + $0xa0] sm:$0xff]
  %v444 = vld [vmem:[%s0 + $0xa8] sm:$0xff]
  %v445 = vld [vmem:[%s0 + $0xb0] sm:$0xff]
  %v446 = vld [vmem:[%s0 + $0xb8] sm:$0xff]
  %v447 = vld [vmem:[%s0 + $0xc0] sm:$0xff]
  %448 = vmatpush.msra.mxu0 %v38
  %449 = vmatpush.msra.mxu0 %v37
  %450 = vmatpush.msra.mxu0 %v36
  %451 = vmatpush.msra.mxu0 %v35
  %452 = vmatpush.msra.mxu0 %v34
  %453 = vmatpush.msra.mxu0 %v33
  %454 = vmatpush.msra.mxu0 %v32
  %455 = vmatpush.msra.mxu0 %v31
  %456 = vmatpush.msra.mxu0 %v30
  %457 = vmatpush.msra.mxu0 %v29
  %458 = vmatpush.msra.mxu0 %v28
  %459 = vmatpush.msra.mxu0 %v27
  %460 = vmatpush.msra.mxu0 %v26
  %461 = vmatpush.msra.mxu0 %v25
  %462 = vmatpush.msra.mxu0 %v24
  %463 = vmatpush.msra.mxu0 %v23
  %464 = vmatmul.f32.gmra.mxu0 %v423
  %v465 = vpop.f32.mrf.mxu0
  %v466 = vadd.f32 0.0, %v465
  %467 = vdwg.mxu0
  %468 = vmatpush.msra.mxu0 %v54
  %469 = vmatpush.msra.mxu0 %v53
  %470 = vmatpush.msra.mxu0 %v52
  %471 = vmatpush.msra.mxu0 %v51
  %472 = vmatpush.msra.mxu0 %v50
  %473 = vmatpush.msra.mxu0 %v49
  %474 = vmatpush.msra.mxu0 %v48
  %475 = vmatpush.msra.mxu0 %v47
  %476 = vmatpush.msra.mxu0 %v46
  %477 = vmatpush.msra.mxu0 %v45
  %478 = vmatpush.msra.mxu0 %v44
  %479 = vmatpush.msra.mxu0 %v43
  %480 = vmatpush.msra.mxu0 %v42
  %481 = vmatpush.msra.mxu0 %v41
  %482 = vmatpush.msra.mxu0 %v40
  %483 = vmatpush.msra.mxu0 %v39
  %484 = vmatmul.f32.gmra.mxu0 %v424
  %v485 = vpop.f32.mrf.mxu0
  %v486 = vadd.f32 %v466, %v485
  %487 = vdwg.mxu0
  %488 = vmatpush.msra.mxu0 %v70
  %489 = vmatpush.msra.mxu0 %v69
  %490 = vmatpush.msra.mxu0 %v68
  %491 = vmatpush.msra.mxu0 %v67
  %492 = vmatpush.msra.mxu0 %v66
  %493 = vmatpush.msra.mxu0 %v65
  %494 = vmatpush.msra.mxu0 %v64
  %495 = vmatpush.msra.mxu0 %v63
  %496 = vmatpush.msra.mxu0 %v62
  %497 = vmatpush.msra.mxu0 %v61
  %498 = vmatpush.msra.mxu0 %v60
  %499 = vmatpush.msra.mxu0 %v59
  %500 = vmatpush.msra.mxu0 %v58
  %501 = vmatpush.msra.mxu0 %v57
  %502 = vmatpush.msra.mxu0 %v56
  %503 = vmatpush.msra.mxu0 %v55
  %504 = vmatmul.f32.gmra.mxu0 %v425
  %v505 = vpop.f32.mrf.mxu0
  %v506 = vadd.f32 %v486, %v505
  %507 = vdwg.mxu0
  %508 = vmatpush.msra.mxu0 %v86
  %509 = vmatpush.msra.mxu0 %v85
  %510 = vmatpush.msra.mxu0 %v84
  %511 = vmatpush.msra.mxu0 %v83
  %512 = vmatpush.msra.mxu0 %v82
  %513 = vmatpush.msra.mxu0 %v81
  %514 = vmatpush.msra.mxu0 %v80
  %515 = vmatpush.msra.mxu0 %v79
  %516 = vmatpush.msra.mxu0 %v78
  %517 = vmatpush.msra.mxu0 %v77
  %518 = vmatpush.msra.mxu0 %v76
  %519 = vmatpush.msra.mxu0 %v75
  %520 = vmatpush.msra.mxu0 %v74
  %521 = vmatpush.msra.mxu0 %v73
  %522 = vmatpush.msra.mxu0 %v72
  %523 = vmatpush.msra.mxu0 %v71
  %524 = vmatmul.f32.gmra.mxu0 %v426
  %v525 = vpop.f32.mrf.mxu0
  %v526 = vadd.f32 %v506, %v525
  %527 = vdwg.mxu0
  %528 = vmatpush.msra.mxu0 %v102
  %529 = vmatpush.msra.mxu0 %v101
  %530 = vmatpush.msra.mxu0 %v100
  %531 = vmatpush.msra.mxu0 %v99
  %532 = vmatpush.msra.mxu0 %v98
  %533 = vmatpush.msra.mxu0 %v97
  %534 = vmatpush.msra.mxu0 %v96
  %535 = vmatpush.msra.mxu0 %v95
  %536 = vmatpush.msra.mxu0 %v94
  %537 = vmatpush.msra.mxu0 %v93
  %538 = vmatpush.msra.mxu0 %v92
  %539 = vmatpush.msra.mxu0 %v91
  %540 = vmatpush.msra.mxu0 %v90
  %541 = vmatpush.msra.mxu0 %v89
  %542 = vmatpush.msra.mxu0 %v88
  %543 = vmatpush.msra.mxu0 %v87
  %544 = vmatmul.f32.gmra.mxu0 %v427
  %v545 = vpop.f32.mrf.mxu0
  %v546 = vadd.f32 %v526, %v545
  %547 = vdwg.mxu0
  %548 = vmatpush.msra.mxu0 %v118
  %549 = vmatpush.msra.mxu0 %v117
  %550 = vmatpush.msra.mxu0 %v116
  %551 = vmatpush.msra.mxu0 %v115
  %552 = vmatpush.msra.mxu0 %v114
  %553 = vmatpush.msra.mxu0 %v113
  %554 = vmatpush.msra.mxu0 %v112
  %555 = vmatpush.msra.mxu0 %v111
  %556 = vmatpush.msra.mxu0 %v110
  %557 = vmatpush.msra.mxu0 %v109
  %558 = vmatpush.msra.mxu0 %v108
  %559 = vmatpush.msra.mxu0 %v107
  %560 = vmatpush.msra.mxu0 %v106
  %561 = vmatpush.msra.mxu0 %v105
  %562 = vmatpush.msra.mxu0 %v104
  %563 = vmatpush.msra.mxu0 %v103
  %564 = vmatmul.f32.gmra.mxu0 %v428
  %v565 = vpop.f32.mrf.mxu0
  %v566 = vadd.f32 %v546, %v565
  %567 = vdwg.mxu0
  %568 = vmatpush.msra.mxu0 %v134
  %569 = vmatpush.msra.mxu0 %v133
  %570 = vmatpush.msra.mxu0 %v132
  %571 = vmatpush.msra.mxu0 %v131
  %572 = vmatpush.msra.mxu0 %v130
  %573 = vmatpush.msra.mxu0 %v129
  %574 = vmatpush.msra.mxu0 %v128
  %575 = vmatpush.msra.mxu0 %v127
  %576 = vmatpush.msra.mxu0 %v126
  %577 = vmatpush.msra.mxu0 %v125
  %578 = vmatpush.msra.mxu0 %v124
  %579 = vmatpush.msra.mxu0 %v123
  %580 = vmatpush.msra.mxu0 %v122
  %581 = vmatpush.msra.mxu0 %v121
  %582 = vmatpush.msra.mxu0 %v120
  %583 = vmatpush.msra.mxu0 %v119
  %584 = vmatmul.f32.gmra.mxu0 %v429
  %v585 = vpop.f32.mrf.mxu0
  %v586 = vadd.f32 %v566, %v585
  %587 = vdwg.mxu0
  %588 = vmatpush.msra.mxu0 %v150
  %589 = vmatpush.msra.mxu0 %v149
  %590 = vmatpush.msra.mxu0 %v148
  %591 = vmatpush.msra.mxu0 %v147
  %592 = vmatpush.msra.mxu0 %v146
  %593 = vmatpush.msra.mxu0 %v145
  %594 = vmatpush.msra.mxu0 %v144
  %595 = vmatpush.msra.mxu0 %v143
  %596 = vmatpush.msra.mxu0 %v142
  %597 = vmatpush.msra.mxu0 %v141
  %598 = vmatpush.msra.mxu0 %v140
  %599 = vmatpush.msra.mxu0 %v139
  %600 = vmatpush.msra.mxu0 %v138
  %601 = vmatpush.msra.mxu0 %v137
  %602 = vmatpush.msra.mxu0 %v136
  %603 = vmatpush.msra.mxu0 %v135
  %604 = vmatmul.f32.gmra.mxu0 %v430
  %v605 = vpop.f32.mrf.mxu0
  %v606 = vadd.f32 %v586, %v605
  %607 = vdwg.mxu0
  %608 = vmatpush.msra.mxu0 %v166
  %609 = vmatpush.msra.mxu0 %v165
  %610 = vmatpush.msra.mxu0 %v164
  %611 = vmatpush.msra.mxu0 %v163
  %612 = vmatpush.msra.mxu0 %v162
  %613 = vmatpush.msra.mxu0 %v161
  %614 = vmatpush.msra.mxu0 %v160
  %615 = vmatpush.msra.mxu0 %v159
  %616 = vmatpush.msra.mxu0 %v158
  %617 = vmatpush.msra.mxu0 %v157
  %618 = vmatpush.msra.mxu0 %v156
  %619 = vmatpush.msra.mxu0 %v155
  %620 = vmatpush.msra.mxu0 %v154
  %621 = vmatpush.msra.mxu0 %v153
  %622 = vmatpush.msra.mxu0 %v152
  %623 = vmatpush.msra.mxu0 %v151
  %624 = vmatmul.f32.gmra.mxu0 %v431
  %v625 = vpop.f32.mrf.mxu0
  %v626 = vadd.f32 %v606, %v625
  %627 = vdwg.mxu0
  %628 = vmatpush.msra.mxu0 %v182
  %629 = vmatpush.msra.mxu0 %v181
  %630 = vmatpush.msra.mxu0 %v180
  %631 = vmatpush.msra.mxu0 %v179
  %632 = vmatpush.msra.mxu0 %v178
  %633 = vmatpush.msra.mxu0 %v177
  %634 = vmatpush.msra.mxu0 %v176
  %635 = vmatpush.msra.mxu0 %v175
  %636 = vmatpush.msra.mxu0 %v174
  %637 = vmatpush.msra.mxu0 %v173
  %638 = vmatpush.msra.mxu0 %v172
  %639 = vmatpush.msra.mxu0 %v171
  %640 = vmatpush.msra.mxu0 %v170
  %641 = vmatpush.msra.mxu0 %v169
  %642 = vmatpush.msra.mxu0 %v168
  %643 = vmatpush.msra.mxu0 %v167
  %644 = vmatmul.f32.gmra.mxu0 %v432
  %v645 = vpop.f32.mrf.mxu0
  %v646 = vadd.f32 %v626, %v645
  %647 = vdwg.mxu0
  %648 = vmatpush.msra.mxu0 %v198
  %649 = vmatpush.msra.mxu0 %v197
  %650 = vmatpush.msra.mxu0 %v196
  %651 = vmatpush.msra.mxu0 %v195
  %652 = vmatpush.msra.mxu0 %v194
  %653 = vmatpush.msra.mxu0 %v193
  %654 = vmatpush.msra.mxu0 %v192
  %655 = vmatpush.msra.mxu0 %v191
  %656 = vmatpush.msra.mxu0 %v190
  %657 = vmatpush.msra.mxu0 %v189
  %658 = vmatpush.msra.mxu0 %v188
  %659 = vmatpush.msra.mxu0 %v187
  %660 = vmatpush.msra.mxu0 %v186
  %661 = vmatpush.msra.mxu0 %v185
  %662 = vmatpush.msra.mxu0 %v184
  %663 = vmatpush.msra.mxu0 %v183
  %664 = vmatmul.f32.gmra.mxu0 %v433
  %v665 = vpop.f32.mrf.mxu0
  %v666 = vadd.f32 %v646, %v665
  %667 = vdwg.mxu0
  %668 = vmatpush.msra.mxu0 %v214
  %669 = vmatpush.msra.mxu0 %v213
  %670 = vmatpush.msra.mxu0 %v212
  %671 = vmatpush.msra.mxu0 %v211
  %672 = vmatpush.msra.mxu0 %v210
  %673 = vmatpush.msra.mxu0 %v209
  %674 = vmatpush.msra.mxu0 %v208
  %675 = vmatpush.msra.mxu0 %v207
  %676 = vmatpush.msra.mxu0 %v206
  %677 = vmatpush.msra.mxu0 %v205
  %678 = vmatpush.msra.mxu0 %v204
  %679 = vmatpush.msra.mxu0 %v203
  %680 = vmatpush.msra.mxu0 %v202
  %681 = vmatpush.msra.mxu0 %v201
  %682 = vmatpush.msra.mxu0 %v200
  %683 = vmatpush.msra.mxu0 %v199
  %684 = vmatmul.f32.gmra.mxu0 %v434
  %v685 = vpop.f32.mrf.mxu0
  %v686 = vadd.f32 %v666, %v685
  %687 = vdwg.mxu0
  %688 = vmatpush.msra.mxu0 %v230
  %689 = vmatpush.msra.mxu0 %v229
  %690 = vmatpush.msra.mxu0 %v228
  %691 = vmatpush.msra.mxu0 %v227
  %692 = vmatpush.msra.mxu0 %v226
  %693 = vmatpush.msra.mxu0 %v225
  %694 = vmatpush.msra.mxu0 %v224
  %695 = vmatpush.msra.mxu0 %v223
  %696 = vmatpush.msra.mxu0 %v222
  %697 = vmatpush.msra.mxu0 %v221
  %698 = vmatpush.msra.mxu0 %v220
  %699 = vmatpush.msra.mxu0 %v219
  %700 = vmatpush.msra.mxu0 %v218
  %701 = vmatpush.msra.mxu0 %v217
  %702 = vmatpush.msra.mxu0 %v216
  %703 = vmatpush.msra.mxu0 %v215
  %704 = vmatmul.f32.gmra.mxu0 %v435
  %v705 = vpop.f32.mrf.mxu0
  %v706 = vadd.f32 %v686, %v705
  %707 = vdwg.mxu0
  %708 = vmatpush.msra.mxu0 %v246
  %709 = vmatpush.msra.mxu0 %v245
  %710 = vmatpush.msra.mxu0 %v244
  %711 = vmatpush.msra.mxu0 %v243
  %712 = vmatpush.msra.mxu0 %v242
  %713 = vmatpush.msra.mxu0 %v241
  %714 = vmatpush.msra.mxu0 %v240
  %715 = vmatpush.msra.mxu0 %v239
  %716 = vmatpush.msra.mxu0 %v238
  %717 = vmatpush.msra.mxu0 %v237
  %718 = vmatpush.msra.mxu0 %v236
  %719 = vmatpush.msra.mxu0 %v235
  %720 = vmatpush.msra.mxu0 %v234
  %721 = vmatpush.msra.mxu0 %v233
  %722 = vmatpush.msra.mxu0 %v232
  %723 = vmatpush.msra.mxu0 %v231
  %724 = vmatmul.f32.gmra.mxu0 %v436
  %v725 = vpop.f32.mrf.mxu0
  %v726 = vadd.f32 %v706, %v725
  %727 = vdwg.mxu0
  %728 = vmatpush.msra.mxu0 %v262
  %729 = vmatpush.msra.mxu0 %v261
  %730 = vmatpush.msra.mxu0 %v260
  %731 = vmatpush.msra.mxu0 %v259
  %732 = vmatpush.msra.mxu0 %v258
  %733 = vmatpush.msra.mxu0 %v257
  %734 = vmatpush.msra.mxu0 %v256
  %735 = vmatpush.msra.mxu0 %v255
  %736 = vmatpush.msra.mxu0 %v254
  %737 = vmatpush.msra.mxu0 %v253
  %738 = vmatpush.msra.mxu0 %v252
  %739 = vmatpush.msra.mxu0 %v251
  %740 = vmatpush.msra.mxu0 %v250
  %741 = vmatpush.msra.mxu0 %v249
  %742 = vmatpush.msra.mxu0 %v248
  %743 = vmatpush.msra.mxu0 %v247
  %744 = vmatmul.f32.gmra.mxu0 %v437
  %v745 = vpop.f32.mrf.mxu0
  %v746 = vadd.f32 %v726, %v745
  %747 = vdwg.mxu0
  %748 = vmatpush.msra.mxu0 %v278
  %749 = vmatpush.msra.mxu0 %v277
  %750 = vmatpush.msra.mxu0 %v276
  %751 = vmatpush.msra.mxu0 %v275
  %752 = vmatpush.msra.mxu0 %v274
  %753 = vmatpush.msra.mxu0 %v273
  %754 = vmatpush.msra.mxu0 %v272
  %755 = vmatpush.msra.mxu0 %v271
  %756 = vmatpush.msra.mxu0 %v270
  %757 = vmatpush.msra.mxu0 %v269
  %758 = vmatpush.msra.mxu0 %v268
  %759 = vmatpush.msra.mxu0 %v267
  %760 = vmatpush.msra.mxu0 %v266
  %761 = vmatpush.msra.mxu0 %v265
  %762 = vmatpush.msra.mxu0 %v264
  %763 = vmatpush.msra.mxu0 %v263
  %764 = vmatmul.f32.gmra.mxu0 %v438
  %v765 = vpop.f32.mrf.mxu0
  %v766 = vadd.f32 %v746, %v765
  %767 = vdwg.mxu0
  %768 = vmatpush.msra.mxu0 %v294
  %769 = vmatpush.msra.mxu0 %v293
  %770 = vmatpush.msra.mxu0 %v292
  %771 = vmatpush.msra.mxu0 %v291
  %772 = vmatpush.msra.mxu0 %v290
  %773 = vmatpush.msra.mxu0 %v289
  %774 = vmatpush.msra.mxu0 %v288
  %775 = vmatpush.msra.mxu0 %v287
  %776 = vmatpush.msra.mxu0 %v286
  %777 = vmatpush.msra.mxu0 %v285
  %778 = vmatpush.msra.mxu0 %v284
  %779 = vmatpush.msra.mxu0 %v283
  %780 = vmatpush.msra.mxu0 %v282
  %781 = vmatpush.msra.mxu0 %v281
  %782 = vmatpush.msra.mxu0 %v280
  %783 = vmatpush.msra.mxu0 %v279
  %784 = vmatmul.f32.gmra.mxu0 %v439
  %v785 = vpop.f32.mrf.mxu0
  %v786 = vadd.f32 %v766, %v785
  %787 = vdwg.mxu0
  %788 = vmatpush.msra.mxu0 %v310
  %789 = vmatpush.msra.mxu0 %v309
  %790 = vmatpush.msra.mxu0 %v308
  %791 = vmatpush.msra.mxu0 %v307
  %792 = vmatpush.msra.mxu0 %v306
  %793 = vmatpush.msra.mxu0 %v305
  %794 = vmatpush.msra.mxu0 %v304
  %795 = vmatpush.msra.mxu0 %v303
  %796 = vmatpush.msra.mxu0 %v302
  %797 = vmatpush.msra.mxu0 %v301
  %798 = vmatpush.msra.mxu0 %v300
  %799 = vmatpush.msra.mxu0 %v299
  %800 = vmatpush.msra.mxu0 %v298
  %801 = vmatpush.msra.mxu0 %v297
  %802 = vmatpush.msra.mxu0 %v296
  %803 = vmatpush.msra.mxu0 %v295
  %804 = vmatmul.f32.gmra.mxu0 %v440
  %v805 = vpop.f32.mrf.mxu0
  %v806 = vadd.f32 %v786, %v805
  %807 = vdwg.mxu0
  %808 = vmatpush.msra.mxu0 %v326
  %809 = vmatpush.msra.mxu0 %v325
  %810 = vmatpush.msra.mxu0 %v324
  %811 = vmatpush.msra.mxu0 %v323
  %812 = vmatpush.msra.mxu0 %v322
  %813 = vmatpush.msra.mxu0 %v321
  %814 = vmatpush.msra.mxu0 %v320
  %815 = vmatpush.msra.mxu0 %v319
  %816 = vmatpush.msra.mxu0 %v318
  %817 = vmatpush.msra.mxu0 %v317
  %818 = vmatpush.msra.mxu0 %v316
  %819 = vmatpush.msra.mxu0 %v315
  %820 = vmatpush.msra.mxu0 %v314
  %821 = vmatpush.msra.mxu0 %v313
  %822 = vmatpush.msra.mxu0 %v312
  %823 = vmatpush.msra.mxu0 %v311
  %824 = vmatmul.f32.gmra.mxu0 %v441
  %v825 = vpop.f32.mrf.mxu0
  %v826 = vadd.f32 %v806, %v825
  %827 = vdwg.mxu0
  %828 = vmatpush.msra.mxu0 %v342
  %829 = vmatpush.msra.mxu0 %v341
  %830 = vmatpush.msra.mxu0 %v340
  %831 = vmatpush.msra.mxu0 %v339
  %832 = vmatpush.msra.mxu0 %v338
  %833 = vmatpush.msra.mxu0 %v337
  %834 = vmatpush.msra.mxu0 %v336
  %835 = vmatpush.msra.mxu0 %v335
  %836 = vmatpush.msra.mxu0 %v334
  %837 = vmatpush.msra.mxu0 %v333
  %838 = vmatpush.msra.mxu0 %v332
  %839 = vmatpush.msra.mxu0 %v331
  %840 = vmatpush.msra.mxu0 %v330
  %841 = vmatpush.msra.mxu0 %v329
  %842 = vmatpush.msra.mxu0 %v328
  %843 = vmatpush.msra.mxu0 %v327
  %844 = vmatmul.f32.gmra.mxu0 %v442
  %v845 = vpop.f32.mrf.mxu0
  %v846 = vadd.f32 %v826, %v845
  %847 = vdwg.mxu0
  %848 = vmatpush.msra.mxu0 %v358
  %849 = vmatpush.msra.mxu0 %v357
  %850 = vmatpush.msra.mxu0 %v356
  %851 = vmatpush.msra.mxu0 %v355
  %852 = vmatpush.msra.mxu0 %v354
  %853 = vmatpush.msra.mxu0 %v353
  %854 = vmatpush.msra.mxu0 %v352
  %855 = vmatpush.msra.mxu0 %v351
  %856 = vmatpush.msra.mxu0 %v350
  %857 = vmatpush.msra.mxu0 %v349
  %858 = vmatpush.msra.mxu0 %v348
  %859 = vmatpush.msra.mxu0 %v347
  %860 = vmatpush.msra.mxu0 %v346
  %861 = vmatpush.msra.mxu0 %v345
  %862 = vmatpush.msra.mxu0 %v344
  %863 = vmatpush.msra.mxu0 %v343
  %864 = vmatmul.f32.gmra.mxu0 %v443
  %v865 = vpop.f32.mrf.mxu0
  %v866 = vadd.f32 %v846, %v865
  %867 = vdwg.mxu0
  %868 = vmatpush.msra.mxu0 %v374
  %869 = vmatpush.msra.mxu0 %v373
  %870 = vmatpush.msra.mxu0 %v372
  %871 = vmatpush.msra.mxu0 %v371
  %872 = vmatpush.msra.mxu0 %v370
  %873 = vmatpush.msra.mxu0 %v369
  %874 = vmatpush.msra.mxu0 %v368
  %875 = vmatpush.msra.mxu0 %v367
  %876 = vmatpush.msra.mxu0 %v366
  %877 = vmatpush.msra.mxu0 %v365
  %878 = vmatpush.msra.mxu0 %v364
  %879 = vmatpush.msra.mxu0 %v363
  %880 = vmatpush.msra.mxu0 %v362
  %881 = vmatpush.msra.mxu0 %v361
  %882 = vmatpush.msra.mxu0 %v360
  %883 = vmatpush.msra.mxu0 %v359
  %884 = vmatmul.f32.gmra.mxu0 %v444
  %v885 = vpop.f32.mrf.mxu0
  %v886 = vadd.f32 %v866, %v885
  %887 = vdwg.mxu0
  %888 = vmatpush.msra.mxu0 %v390
  %889 = vmatpush.msra.mxu0 %v389
  %890 = vmatpush.msra.mxu0 %v388
  %891 = vmatpush.msra.mxu0 %v387
  %892 = vmatpush.msra.mxu0 %v386
  %893 = vmatpush.msra.mxu0 %v385
  %894 = vmatpush.msra.mxu0 %v384
  %895 = vmatpush.msra.mxu0 %v383
  %896 = vmatpush.msra.mxu0 %v382
  %897 = vmatpush.msra.mxu0 %v381
  %898 = vmatpush.msra.mxu0 %v380
  %899 = vmatpush.msra.mxu0 %v379
  %900 = vmatpush.msra.mxu0 %v378
  %901 = vmatpush.msra.mxu0 %v377
  %902 = vmatpush.msra.mxu0 %v376
  %903 = vmatpush.msra.mxu0 %v375
  %904 = vmatmul.f32.gmra.mxu0 %v445
  %v905 = vpop.f32.mrf.mxu0
  %v906 = vadd.f32 %v886, %v905
  %907 = vdwg.mxu0
  %908 = vmatpush.msra.mxu0 %v406
  %909 = vmatpush.msra.mxu0 %v405
  %910 = vmatpush.msra.mxu0 %v404
  %911 = vmatpush.msra.mxu0 %v403
  %912 = vmatpush.msra.mxu0 %v402
  %913 = vmatpush.msra.mxu0 %v401
  %914 = vmatpush.msra.mxu0 %v400
  %915 = vmatpush.msra.mxu0 %v399
  %916 = vmatpush.msra.mxu0 %v398
  %917 = vmatpush.msra.mxu0 %v397
  %918 = vmatpush.msra.mxu0 %v396
  %919 = vmatpush.msra.mxu0 %v395
  %920 = vmatpush.msra.mxu0 %v394
  %921 = vmatpush.msra.mxu0 %v393
  %922 = vmatpush.msra.mxu0 %v392
  %923 = vmatpush.msra.mxu0 %v391
  %924 = vmatmul.f32.gmra.mxu0 %v446
  %v925 = vpop.f32.mrf.mxu0
  %v926 = vadd.f32 %v906, %v925
  %927 = vdwg.mxu0
  %928 = vmatpush.msra.mxu0 %v422
  %929 = vmatpush.msra.mxu0 %v421
  %930 = vmatpush.msra.mxu0 %v420
  %931 = vmatpush.msra.mxu0 %v419
  %932 = vmatpush.msra.mxu0 %v418
  %933 = vmatpush.msra.mxu0 %v417
  %934 = vmatpush.msra.mxu0 %v416
  %935 = vmatpush.msra.mxu0 %v415
  %936 = vmatpush.msra.mxu0 %v414
  %937 = vmatpush.msra.mxu0 %v413
  %938 = vmatpush.msra.mxu0 %v412
  %939 = vmatpush.msra.mxu0 %v411
  %940 = vmatpush.msra.mxu0 %v410
  %941 = vmatpush.msra.mxu0 %v409
  %942 = vmatpush.msra.mxu0 %v408
  %943 = vmatpush.msra.mxu0 %v407
  %944 = vmatmul.f32.gmra.mxu0 %v447
  %v945 = vpop.f32.mrf.mxu0
  %v946 = vadd.f32 %v926, %v945
  %947 = vdwg.mxu0
  %v948 = vld [vmem:[%s1] sm:$0xff]
  %v949 = vld [vmem:[%s1 + $0x8] sm:$0xff]
  %v950 = vld [vmem:[%s1 + $0x10] sm:$0xff]
  %v951 = vld [vmem:[%s1 + $0x18] sm:$0xff]
  %v952 = vld [vmem:[%s1 + $0x20] sm:$0xff]
  %v953 = vld [vmem:[%s1 + $0x28] sm:$0xff]
  %v954 = vld [vmem:[%s1 + $0x30] sm:$0xff]
  %v955 = vld [vmem:[%s1 + $0x38] sm:$0xff]
  %v956 = vld [vmem:[%s1 + $0x40] sm:$0xff]
  %v957 = vld [vmem:[%s1 + $0x48] sm:$0xff]
  %v958 = vld [vmem:[%s1 + $0x50] sm:$0xff]
  %v959 = vld [vmem:[%s1 + $0x58] sm:$0xff]
  %v960 = vld [vmem:[%s1 + $0x60] sm:$0xff]
  %v961 = vld [vmem:[%s1 + $0x68] sm:$0xff]
  %v962 = vld [vmem:[%s1 + $0x70] sm:$0xff]
  %v963 = vld [vmem:[%s1 + $0x78] sm:$0xff]
  %v964 = vld [vmem:[%s1 + $0x80] sm:$0xff]
  %v965 = vld [vmem:[%s1 + $0x88] sm:$0xff]
  %v966 = vld [vmem:[%s1 + $0x90] sm:$0xff]
  %v967 = vld [vmem:[%s1 + $0x98] sm:$0xff]
  %v968 = vld [vmem:[%s1 + $0xa0] sm:$0xff]
  %v969 = vld [vmem:[%s1 + $0xa8] sm:$0xff]
  %v970 = vld [vmem:[%s1 + $0xb0] sm:$0xff]
  %v971 = vld [vmem:[%s1 + $0xb8] sm:$0xff]
  %v972 = vld [vmem:[%s1 + $0xc0] sm:$0xff]
  %973 = vmatpush.msra.mxu0 %v38
  %974 = vmatpush.msra.mxu0 %v37
  %975 = vmatpush.msra.mxu0 %v36
  %976 = vmatpush.msra.mxu0 %v35
  %977 = vmatpush.msra.mxu0 %v34
  %978 = vmatpush.msra.mxu0 %v33
  %979 = vmatpush.msra.mxu0 %v32
  %980 = vmatpush.msra.mxu0 %v31
  %981 = vmatpush.msra.mxu0 %v30
  %982 = vmatpush.msra.mxu0 %v29
  %983 = vmatpush.msra.mxu0 %v28
  %984 = vmatpush.msra.mxu0 %v27
  %985 = vmatpush.msra.mxu0 %v26
  %986 = vmatpush.msra.mxu0 %v25
  %987 = vmatpush.msra.mxu0 %v24
  %988 = vmatpush.msra.mxu0 %v23
  %989 = vmatmul.f32.gmra.mxu0 %v948
  %v990 = vpop.f32.mrf.mxu0
  %v991 = vadd.f32 0.0, %v990
  %992 = vdwg.mxu0
  %993 = vmatpush.msra.mxu0 %v54
  %994 = vmatpush.msra.mxu0 %v53
  %995 = vmatpush.msra.mxu0 %v52
  %996 = vmatpush.msra.mxu0 %v51
  %997 = vmatpush.msra.mxu0 %v50
  %998 = vmatpush.msra.mxu0 %v49
  %999 = vmatpush.msra.mxu0 %v48
  %1000 = vmatpush.msra.mxu0 %v47
  %1001 = vmatpush.msra.mxu0 %v46
  %1002 = vmatpush.msra.mxu0 %v45
  %1003 = vmatpush.msra.mxu0 %v44
  %1004 = vmatpush.msra.mxu0 %v43
  %1005 = vmatpush.msra.mxu0 %v42
  %1006 = vmatpush.msra.mxu0 %v41
  %1007 = vmatpush.msra.mxu0 %v40
  %1008 = vmatpush.msra.mxu0 %v39
  %1009 = vmatmul.f32.gmra.mxu0 %v949
  %v1010 = vpop.f32.mrf.mxu0
  %v1011 = vadd.f32 %v991, %v1010
  %1012 = vdwg.mxu0
  %1013 = vmatpush.msra.mxu0 %v70
  %1014 = vmatpush.msra.mxu0 %v69
  %1015 = vmatpush.msra.mxu0 %v68
  %1016 = vmatpush.msra.mxu0 %v67
  %1017 = vmatpush.msra.mxu0 %v66
  %1018 = vmatpush.msra.mxu0 %v65
  %1019 = vmatpush.msra.mxu0 %v64
  %1020 = vmatpush.msra.mxu0 %v63
  %1021 = vmatpush.msra.mxu0 %v62
  %1022 = vmatpush.msra.mxu0 %v61
  %1023 = vmatpush.msra.mxu0 %v60
  %1024 = vmatpush.msra.mxu0 %v59
  %1025 = vmatpush.msra.mxu0 %v58
  %1026 = vmatpush.msra.mxu0 %v57
  %1027 = vmatpush.msra.mxu0 %v56
  %1028 = vmatpush.msra.mxu0 %v55
  %1029 = vmatmul.f32.gmra.mxu0 %v950
  %v1030 = vpop.f32.mrf.mxu0
  %v1031 = vadd.f32 %v1011, %v1030
  %1032 = vdwg.mxu0
  %1033 = vmatpush.msra.mxu0 %v86
  %1034 = vmatpush.msra.mxu0 %v85
  %1035 = vmatpush.msra.mxu0 %v84
  %1036 = vmatpush.msra.mxu0 %v83
  %1037 = vmatpush.msra.mxu0 %v82
  %1038 = vmatpush.msra.mxu0 %v81
  %1039 = vmatpush.msra.mxu0 %v80
  %1040 = vmatpush.msra.mxu0 %v79
  %1041 = vmatpush.msra.mxu0 %v78
  %1042 = vmatpush.msra.mxu0 %v77
  %1043 = vmatpush.msra.mxu0 %v76
  %1044 = vmatpush.msra.mxu0 %v75
  %1045 = vmatpush.msra.mxu0 %v74
  %1046 = vmatpush.msra.mxu0 %v73
  %1047 = vmatpush.msra.mxu0 %v72
  %1048 = vmatpush.msra.mxu0 %v71
  %1049 = vmatmul.f32.gmra.mxu0 %v951
  %v1050 = vpop.f32.mrf.mxu0
  %v1051 = vadd.f32 %v1031, %v1050
  %1052 = vdwg.mxu0
  %1053 = vmatpush.msra.mxu0 %v102
  %1054 = vmatpush.msra.mxu0 %v101
  %1055 = vmatpush.msra.mxu0 %v100
  %1056 = vmatpush.msra.mxu0 %v99
  %1057 = vmatpush.msra.mxu0 %v98
  %1058 = vmatpush.msra.mxu0 %v97
  %1059 = vmatpush.msra.mxu0 %v96
  %1060 = vmatpush.msra.mxu0 %v95
  %1061 = vmatpush.msra.mxu0 %v94
  %1062 = vmatpush.msra.mxu0 %v93
  %1063 = vmatpush.msra.mxu0 %v92
  %1064 = vmatpush.msra.mxu0 %v91
  %1065 = vmatpush.msra.mxu0 %v90
  %1066 = vmatpush.msra.mxu0 %v89
  %1067 = vmatpush.msra.mxu0 %v88
  %1068 = vmatpush.msra.mxu0 %v87
  %1069 = vmatmul.f32.gmra.mxu0 %v952
  %v1070 = vpop.f32.mrf.mxu0
  %v1071 = vadd.f32 %v1051, %v1070
  %1072 = vdwg.mxu0
  %1073 = vmatpush.msra.mxu0 %v118
  %1074 = vmatpush.msra.mxu0 %v117
  %1075 = vmatpush.msra.mxu0 %v116
  %1076 = vmatpush.msra.mxu0 %v115
  %1077 = vmatpush.msra.mxu0 %v114
  %1078 = vmatpush.msra.mxu0 %v113
  %1079 = vmatpush.msra.mxu0 %v112
  %1080 = vmatpush.msra.mxu0 %v111
  %1081 = vmatpush.msra.mxu0 %v110
  %1082 = vmatpush.msra.mxu0 %v109
  %1083 = vmatpush.msra.mxu0 %v108
  %1084 = vmatpush.msra.mxu0 %v107
  %1085 = vmatpush.msra.mxu0 %v106
  %1086 = vmatpush.msra.mxu0 %v105
  %1087 = vmatpush.msra.mxu0 %v104
  %1088 = vmatpush.msra.mxu0 %v103
  %1089 = vmatmul.f32.gmra.mxu0 %v953
  %v1090 = vpop.f32.mrf.mxu0
  %v1091 = vadd.f32 %v1071, %v1090
  %1092 = vdwg.mxu0
  %1093 = vmatpush.msra.mxu0 %v134
  %1094 = vmatpush.msra.mxu0 %v133
  %1095 = vmatpush.msra.mxu0 %v132
  %1096 = vmatpush.msra.mxu0 %v131
  %1097 = vmatpush.msra.mxu0 %v130
  %1098 = vmatpush.msra.mxu0 %v129
  %1099 = vmatpush.msra.mxu0 %v128
  %1100 = vmatpush.msra.mxu0 %v127
  %1101 = vmatpush.msra.mxu0 %v126
  %1102 = vmatpush.msra.mxu0 %v125
  %1103 = vmatpush.msra.mxu0 %v124
  %1104 = vmatpush.msra.mxu0 %v123
  %1105 = vmatpush.msra.mxu0 %v122
  %1106 = vmatpush.msra.mxu0 %v121
  %1107 = vmatpush.msra.mxu0 %v120
  %1108 = vmatpush.msra.mxu0 %v119
  %1109 = vmatmul.f32.gmra.mxu0 %v954
  %v1110 = vpop.f32.mrf.mxu0
  %v1111 = vadd.f32 %v1091, %v1110
  %1112 = vdwg.mxu0
  %1113 = vmatpush.msra.mxu0 %v150
  %1114 = vmatpush.msra.mxu0 %v149
  %1115 = vmatpush.msra.mxu0 %v148
  %1116 = vmatpush.msra.mxu0 %v147
  %1117 = vmatpush.msra.mxu0 %v146
  %1118 = vmatpush.msra.mxu0 %v145
  %1119 = vmatpush.msra.mxu0 %v144
  %1120 = vmatpush.msra.mxu0 %v143
  %1121 = vmatpush.msra.mxu0 %v142
  %1122 = vmatpush.msra.mxu0 %v141
  %1123 = vmatpush.msra.mxu0 %v140
  %1124 = vmatpush.msra.mxu0 %v139
  %1125 = vmatpush.msra.mxu0 %v138
  %1126 = vmatpush.msra.mxu0 %v137
  %1127 = vmatpush.msra.mxu0 %v136
  %1128 = vmatpush.msra.mxu0 %v135
  %1129 = vmatmul.f32.gmra.mxu0 %v955
  %v1130 = vpop.f32.mrf.mxu0
  %v1131 = vadd.f32 %v1111, %v1130
  %1132 = vdwg.mxu0
  %1133 = vmatpush.msra.mxu0 %v166
  %1134 = vmatpush.msra.mxu0 %v165
  %1135 = vmatpush.msra.mxu0 %v164
  %1136 = vmatpush.msra.mxu0 %v163
  %1137 = vmatpush.msra.mxu0 %v162
  %1138 = vmatpush.msra.mxu0 %v161
  %1139 = vmatpush.msra.mxu0 %v160
  %1140 = vmatpush.msra.mxu0 %v159
  %1141 = vmatpush.msra.mxu0 %v158
  %1142 = vmatpush.msra.mxu0 %v157
  %1143 = vmatpush.msra.mxu0 %v156
  %1144 = vmatpush.msra.mxu0 %v155
  %1145 = vmatpush.msra.mxu0 %v154
  %1146 = vmatpush.msra.mxu0 %v153
  %1147 = vmatpush.msra.mxu0 %v152
  %1148 = vmatpush.msra.mxu0 %v151
  %1149 = vmatmul.f32.gmra.mxu0 %v956
  %v1150 = vpop.f32.mrf.mxu0
  %v1151 = vadd.f32 %v1131, %v1150
  %1152 = vdwg.mxu0
  %1153 = vmatpush.msra.mxu0 %v182
  %1154 = vmatpush.msra.mxu0 %v181
  %1155 = vmatpush.msra.mxu0 %v180
  %1156 = vmatpush.msra.mxu0 %v179
  %1157 = vmatpush.msra.mxu0 %v178
  %1158 = vmatpush.msra.mxu0 %v177
  %1159 = vmatpush.msra.mxu0 %v176
  %1160 = vmatpush.msra.mxu0 %v175
  %1161 = vmatpush.msra.mxu0 %v174
  %1162 = vmatpush.msra.mxu0 %v173
  %1163 = vmatpush.msra.mxu0 %v172
  %1164 = vmatpush.msra.mxu0 %v171
  %1165 = vmatpush.msra.mxu0 %v170
  %1166 = vmatpush.msra.mxu0 %v169
  %1167 = vmatpush.msra.mxu0 %v168
  %1168 = vmatpush.msra.mxu0 %v167
  %1169 = vmatmul.f32.gmra.mxu0 %v957
  %v1170 = vpop.f32.mrf.mxu0
  %v1171 = vadd.f32 %v1151, %v1170
  %1172 = vdwg.mxu0
  %1173 = vmatpush.msra.mxu0 %v198
  %1174 = vmatpush.msra.mxu0 %v197
  %1175 = vmatpush.msra.mxu0 %v196
  %1176 = vmatpush.msra.mxu0 %v195
  %1177 = vmatpush.msra.mxu0 %v194
  %1178 = vmatpush.msra.mxu0 %v193
  %1179 = vmatpush.msra.mxu0 %v192
  %1180 = vmatpush.msra.mxu0 %v191
  %1181 = vmatpush.msra.mxu0 %v190
  %1182 = vmatpush.msra.mxu0 %v189
  %1183 = vmatpush.msra.mxu0 %v188
  %1184 = vmatpush.msra.mxu0 %v187
  %1185 = vmatpush.msra.mxu0 %v186
  %1186 = vmatpush.msra.mxu0 %v185
  %1187 = vmatpush.msra.mxu0 %v184
  %1188 = vmatpush.msra.mxu0 %v183
  %1189 = vmatmul.f32.gmra.mxu0 %v958
  %v1190 = vpop.f32.mrf.mxu0
  %v1191 = vadd.f32 %v1171, %v1190
  %1192 = vdwg.mxu0
  %1193 = vmatpush.msra.mxu0 %v214
  %1194 = vmatpush.msra.mxu0 %v213
  %1195 = vmatpush.msra.mxu0 %v212
  %1196 = vmatpush.msra.mxu0 %v211
  %1197 = vmatpush.msra.mxu0 %v210
  %1198 = vmatpush.msra.mxu0 %v209
  %1199 = vmatpush.msra.mxu0 %v208
  %1200 = vmatpush.msra.mxu0 %v207
  %1201 = vmatpush.msra.mxu0 %v206
  %1202 = vmatpush.msra.mxu0 %v205
  %1203 = vmatpush.msra.mxu0 %v204
  %1204 = vmatpush.msra.mxu0 %v203
  %1205 = vmatpush.msra.mxu0 %v202
  %1206 = vmatpush.msra.mxu0 %v201
  %1207 = vmatpush.msra.mxu0 %v200
  %1208 = vmatpush.msra.mxu0 %v199
  %1209 = vmatmul.f32.gmra.mxu0 %v959
  %v1210 = vpop.f32.mrf.mxu0
  %v1211 = vadd.f32 %v1191, %v1210
  %1212 = vdwg.mxu0
  %1213 = vmatpush.msra.mxu0 %v230
  %1214 = vmatpush.msra.mxu0 %v229
  %1215 = vmatpush.msra.mxu0 %v228
  %1216 = vmatpush.msra.mxu0 %v227
  %1217 = vmatpush.msra.mxu0 %v226
  %1218 = vmatpush.msra.mxu0 %v225
  %1219 = vmatpush.msra.mxu0 %v224
  %1220 = vmatpush.msra.mxu0 %v223
  %1221 = vmatpush.msra.mxu0 %v222
  %1222 = vmatpush.msra.mxu0 %v221
  %1223 = vmatpush.msra.mxu0 %v220
  %1224 = vmatpush.msra.mxu0 %v219
  %1225 = vmatpush.msra.mxu0 %v218
  %1226 = vmatpush.msra.mxu0 %v217
  %1227 = vmatpush.msra.mxu0 %v216
  %1228 = vmatpush.msra.mxu0 %v215
  %1229 = vmatmul.f32.gmra.mxu0 %v960
  %v1230 = vpop.f32.mrf.mxu0
  %v1231 = vadd.f32 %v1211, %v1230
  %1232 = vdwg.mxu0
  %1233 = vmatpush.msra.mxu0 %v246
  %1234 = vmatpush.msra.mxu0 %v245
  %1235 = vmatpush.msra.mxu0 %v244
  %1236 = vmatpush.msra.mxu0 %v243
  %1237 = vmatpush.msra.mxu0 %v242
  %1238 = vmatpush.msra.mxu0 %v241
  %1239 = vmatpush.msra.mxu0 %v240
  %1240 = vmatpush.msra.mxu0 %v239
  %1241 = vmatpush.msra.mxu0 %v238
  %1242 = vmatpush.msra.mxu0 %v237
  %1243 = vmatpush.msra.mxu0 %v236
  %1244 = vmatpush.msra.mxu0 %v235
  %1245 = vmatpush.msra.mxu0 %v234
  %1246 = vmatpush.msra.mxu0 %v233
  %1247 = vmatpush.msra.mxu0 %v232
  %1248 = vmatpush.msra.mxu0 %v231
  %1249 = vmatmul.f32.gmra.mxu0 %v961
  %v1250 = vpop.f32.mrf.mxu0
  %v1251 = vadd.f32 %v1231, %v1250
  %1252 = vdwg.mxu0
  %1253 = vmatpush.msra.mxu0 %v262
  %1254 = vmatpush.msra.mxu0 %v261
  %1255 = vmatpush.msra.mxu0 %v260
  %1256 = vmatpush.msra.mxu0 %v259
  %1257 = vmatpush.msra.mxu0 %v258
  %1258 = vmatpush.msra.mxu0 %v257
  %1259 = vmatpush.msra.mxu0 %v256
  %1260 = vmatpush.msra.mxu0 %v255
  %1261 = vmatpush.msra.mxu0 %v254
  %1262 = vmatpush.msra.mxu0 %v253
  %1263 = vmatpush.msra.mxu0 %v252
  %1264 = vmatpush.msra.mxu0 %v251
  %1265 = vmatpush.msra.mxu0 %v250
  %1266 = vmatpush.msra.mxu0 %v249
  %1267 = vmatpush.msra.mxu0 %v248
  %1268 = vmatpush.msra.mxu0 %v247
  %1269 = vmatmul.f32.gmra.mxu0 %v962
  %v1270 = vpop.f32.mrf.mxu0
  %v1271 = vadd.f32 %v1251, %v1270
  %1272 = vdwg.mxu0
  %1273 = vmatpush.msra.mxu0 %v278
  %1274 = vmatpush.msra.mxu0 %v277
  %1275 = vmatpush.msra.mxu0 %v276
  %1276 = vmatpush.msra.mxu0 %v275
  %1277 = vmatpush.msra.mxu0 %v274
  %1278 = vmatpush.msra.mxu0 %v273
  %1279 = vmatpush.msra.mxu0 %v272
  %1280 = vmatpush.msra.mxu0 %v271
  %1281 = vmatpush.msra.mxu0 %v270
  %1282 = vmatpush.msra.mxu0 %v269
  %1283 = vmatpush.msra.mxu0 %v268
  %1284 = vmatpush.msra.mxu0 %v267
  %1285 = vmatpush.msra.mxu0 %v266
  %1286 = vmatpush.msra.mxu0 %v265
  %1287 = vmatpush.msra.mxu0 %v264
  %1288 = vmatpush.msra.mxu0 %v263
  %1289 = vmatmul.f32.gmra.mxu0 %v963
  %v1290 = vpop.f32.mrf.mxu0
  %v1291 = vadd.f32 %v1271, %v1290
  %1292 = vdwg.mxu0
  %1293 = vmatpush.msra.mxu0 %v294
  %1294 = vmatpush.msra.mxu0 %v293
  %1295 = vmatpush.msra.mxu0 %v292
  %1296 = vmatpush.msra.mxu0 %v291
  %1297 = vmatpush.msra.mxu0 %v290
  %1298 = vmatpush.msra.mxu0 %v289
  %1299 = vmatpush.msra.mxu0 %v288
  %1300 = vmatpush.msra.mxu0 %v287
  %1301 = vmatpush.msra.mxu0 %v286
  %1302 = vmatpush.msra.mxu0 %v285
  %1303 = vmatpush.msra.mxu0 %v284
  %1304 = vmatpush.msra.mxu0 %v283
  %1305 = vmatpush.msra.mxu0 %v282
  %1306 = vmatpush.msra.mxu0 %v281
  %1307 = vmatpush.msra.mxu0 %v280
  %1308 = vmatpush.msra.mxu0 %v279
  %1309 = vmatmul.f32.gmra.mxu0 %v964
  %v1310 = vpop.f32.mrf.mxu0
  %v1311 = vadd.f32 %v1291, %v1310
  %1312 = vdwg.mxu0
  %1313 = vmatpush.msra.mxu0 %v310
  %1314 = vmatpush.msra.mxu0 %v309
  %1315 = vmatpush.msra.mxu0 %v308
  %1316 = vmatpush.msra.mxu0 %v307
  %1317 = vmatpush.msra.mxu0 %v306
  %1318 = vmatpush.msra.mxu0 %v305
  %1319 = vmatpush.msra.mxu0 %v304
  %1320 = vmatpush.msra.mxu0 %v303
  %1321 = vmatpush.msra.mxu0 %v302
  %1322 = vmatpush.msra.mxu0 %v301
  %1323 = vmatpush.msra.mxu0 %v300
  %1324 = vmatpush.msra.mxu0 %v299
  %1325 = vmatpush.msra.mxu0 %v298
  %1326 = vmatpush.msra.mxu0 %v297
  %1327 = vmatpush.msra.mxu0 %v296
  %1328 = vmatpush.msra.mxu0 %v295
  %1329 = vmatmul.f32.gmra.mxu0 %v965
  %v1330 = vpop.f32.mrf.mxu0
  %v1331 = vadd.f32 %v1311, %v1330
  %1332 = vdwg.mxu0
  %1333 = vmatpush.msra.mxu0 %v326
  %1334 = vmatpush.msra.mxu0 %v325
  %1335 = vmatpush.msra.mxu0 %v324
  %1336 = vmatpush.msra.mxu0 %v323
  %1337 = vmatpush.msra.mxu0 %v322
  %1338 = vmatpush.msra.mxu0 %v321
  %1339 = vmatpush.msra.mxu0 %v320
  %1340 = vmatpush.msra.mxu0 %v319
  %1341 = vmatpush.msra.mxu0 %v318
  %1342 = vmatpush.msra.mxu0 %v317
  %1343 = vmatpush.msra.mxu0 %v316
  %1344 = vmatpush.msra.mxu0 %v315
  %1345 = vmatpush.msra.mxu0 %v314
  %1346 = vmatpush.msra.mxu0 %v313
  %1347 = vmatpush.msra.mxu0 %v312
  %1348 = vmatpush.msra.mxu0 %v311
  %1349 = vmatmul.f32.gmra.mxu0 %v966
  %v1350 = vpop.f32.mrf.mxu0
  %v1351 = vadd.f32 %v1331, %v1350
  %1352 = vdwg.mxu0
  %1353 = vmatpush.msra.mxu0 %v342
  %1354 = vmatpush.msra.mxu0 %v341
  %1355 = vmatpush.msra.mxu0 %v340
  %1356 = vmatpush.msra.mxu0 %v339
  %1357 = vmatpush.msra.mxu0 %v338
  %1358 = vmatpush.msra.mxu0 %v337
  %1359 = vmatpush.msra.mxu0 %v336
  %1360 = vmatpush.msra.mxu0 %v335
  %1361 = vmatpush.msra.mxu0 %v334
  %1362 = vmatpush.msra.mxu0 %v333
  %1363 = vmatpush.msra.mxu0 %v332
  %1364 = vmatpush.msra.mxu0 %v331
  %1365 = vmatpush.msra.mxu0 %v330
  %1366 = vmatpush.msra.mxu0 %v329
  %1367 = vmatpush.msra.mxu0 %v328
  %1368 = vmatpush.msra.mxu0 %v327
  %1369 = vmatmul.f32.gmra.mxu0 %v967
  %v1370 = vpop.f32.mrf.mxu0
  %v1371 = vadd.f32 %v1351, %v1370
  %1372 = vdwg.mxu0
  %1373 = vmatpush.msra.mxu0 %v358
  %1374 = vmatpush.msra.mxu0 %v357
  %1375 = vmatpush.msra.mxu0 %v356
  %1376 = vmatpush.msra.mxu0 %v355
  %1377 = vmatpush.msra.mxu0 %v354
  %1378 = vmatpush.msra.mxu0 %v353
  %1379 = vmatpush.msra.mxu0 %v352
  %1380 = vmatpush.msra.mxu0 %v351
  %1381 = vmatpush.msra.mxu0 %v350
  %1382 = vmatpush.msra.mxu0 %v349
  %1383 = vmatpush.msra.mxu0 %v348
  %1384 = vmatpush.msra.mxu0 %v347
  %1385 = vmatpush.msra.mxu0 %v346
  %1386 = vmatpush.msra.mxu0 %v345
  %1387 = vmatpush.msra.mxu0 %v344
  %1388 = vmatpush.msra.mxu0 %v343
  %1389 = vmatmul.f32.gmra.mxu0 %v968
  %v1390 = vpop.f32.mrf.mxu0
  %v1391 = vadd.f32 %v1371, %v1390
  %1392 = vdwg.mxu0
  %1393 = vmatpush.msra.mxu0 %v374
  %1394 = vmatpush.msra.mxu0 %v373
  %1395 = vmatpush.msra.mxu0 %v372
  %1396 = vmatpush.msra.mxu0 %v371
  %1397 = vmatpush.msra.mxu0 %v370
  %1398 = vmatpush.msra.mxu0 %v369
  %1399 = vmatpush.msra.mxu0 %v368
  %1400 = vmatpush.msra.mxu0 %v367
  %1401 = vmatpush.msra.mxu0 %v366
  %1402 = vmatpush.msra.mxu0 %v365
  %1403 = vmatpush.msra.mxu0 %v364
  %1404 = vmatpush.msra.mxu0 %v363
  %1405 = vmatpush.msra.mxu0 %v362
  %1406 = vmatpush.msra.mxu0 %v361
  %1407 = vmatpush.msra.mxu0 %v360
  %1408 = vmatpush.msra.mxu0 %v359
  %1409 = vmatmul.f32.gmra.mxu0 %v969
  %v1410 = vpop.f32.mrf.mxu0
  %v1411 = vadd.f32 %v1391, %v1410
  %1412 = vdwg.mxu0
  %1413 = vmatpush.msra.mxu0 %v390
  %1414 = vmatpush.msra.mxu0 %v389
  %1415 = vmatpush.msra.mxu0 %v388
  %1416 = vmatpush.msra.mxu0 %v387
  %1417 = vmatpush.msra.mxu0 %v386
  %1418 = vmatpush.msra.mxu0 %v385
  %1419 = vmatpush.msra.mxu0 %v384
  %1420 = vmatpush.msra.mxu0 %v383
  %1421 = vmatpush.msra.mxu0 %v382
  %1422 = vmatpush.msra.mxu0 %v381
  %1423 = vmatpush.msra.mxu0 %v380
  %1424 = vmatpush.msra.mxu0 %v379
  %1425 = vmatpush.msra.mxu0 %v378
  %1426 = vmatpush.msra.mxu0 %v377
  %1427 = vmatpush.msra.mxu0 %v376
  %1428 = vmatpush.msra.mxu0 %v375
  %1429 = vmatmul.f32.gmra.mxu0 %v970
  %v1430 = vpop.f32.mrf.mxu0
  %v1431 = vadd.f32 %v1411, %v1430
  %1432 = vdwg.mxu0
  %1433 = vmatpush.msra.mxu0 %v406
  %1434 = vmatpush.msra.mxu0 %v405
  %1435 = vmatpush.msra.mxu0 %v404
  %1436 = vmatpush.msra.mxu0 %v403
  %1437 = vmatpush.msra.mxu0 %v402
  %1438 = vmatpush.msra.mxu0 %v401
  %1439 = vmatpush.msra.mxu0 %v400
  %1440 = vmatpush.msra.mxu0 %v399
  %1441 = vmatpush.msra.mxu0 %v398
  %1442 = vmatpush.msra.mxu0 %v397
  %1443 = vmatpush.msra.mxu0 %v396
  %1444 = vmatpush.msra.mxu0 %v395
  %1445 = vmatpush.msra.mxu0 %v394
  %1446 = vmatpush.msra.mxu0 %v393
  %1447 = vmatpush.msra.mxu0 %v392
  %1448 = vmatpush.msra.mxu0 %v391
  %1449 = vmatmul.f32.gmra.mxu0 %v971
  %v1450 = vpop.f32.mrf.mxu0
  %v1451 = vadd.f32 %v1431, %v1450
  %1452 = vdwg.mxu0
  %1453 = vmatpush.msra.mxu0 %v422
  %1454 = vmatpush.msra.mxu0 %v421
  %1455 = vmatpush.msra.mxu0 %v420
  %1456 = vmatpush.msra.mxu0 %v419
  %1457 = vmatpush.msra.mxu0 %v418
  %1458 = vmatpush.msra.mxu0 %v417
  %1459 = vmatpush.msra.mxu0 %v416
  %1460 = vmatpush.msra.mxu0 %v415
  %1461 = vmatpush.msra.mxu0 %v414
  %1462 = vmatpush.msra.mxu0 %v413
  %1463 = vmatpush.msra.mxu0 %v412
  %1464 = vmatpush.msra.mxu0 %v411
  %1465 = vmatpush.msra.mxu0 %v410
  %1466 = vmatpush.msra.mxu0 %v409
  %1467 = vmatpush.msra.mxu0 %v408
  %1468 = vmatpush.msra.mxu0 %v407
  %1469 = vmatmul.f32.gmra.mxu0 %v972
  %v1470 = vpop.f32.mrf.mxu0
  %v1471 = vadd.f32 %v1451, %v1470
  %1472 = vdwg.mxu0
  %v1473 = vmax.f32 %v946, %v1471
  %v1474 = vld [vmem:[%s2] sm:$0xff]
  %v1475 = vld [vmem:[%s2 + $0x8] sm:$0xff]
  %v1476 = vld [vmem:[%s2 + $0x10] sm:$0xff]
  %v1477 = vld [vmem:[%s2 + $0x18] sm:$0xff]
  %v1478 = vld [vmem:[%s2 + $0x20] sm:$0xff]
  %v1479 = vld [vmem:[%s2 + $0x28] sm:$0xff]
  %v1480 = vld [vmem:[%s2 + $0x30] sm:$0xff]
  %v1481 = vld [vmem:[%s2 + $0x38] sm:$0xff]
  %v1482 = vld [vmem:[%s2 + $0x40] sm:$0xff]
  %v1483 = vld [vmem:[%s2 + $0x48] sm:$0xff]
  %v1484 = vld [vmem:[%s2 + $0x50] sm:$0xff]
  %v1485 = vld [vmem:[%s2 + $0x58] sm:$0xff]
  %v1486 = vld [vmem:[%s2 + $0x60] sm:$0xff]
  %v1487 = vld [vmem:[%s2 + $0x68] sm:$0xff]
  %v1488 = vld [vmem:[%s2 + $0x70] sm:$0xff]
  %v1489 = vld [vmem:[%s2 + $0x78] sm:$0xff]
  %v1490 = vld [vmem:[%s2 + $0x80] sm:$0xff]
  %v1491 = vld [vmem:[%s2 + $0x88] sm:$0xff]
  %v1492 = vld [vmem:[%s2 + $0x90] sm:$0xff]
  %v1493 = vld [vmem:[%s2 + $0x98] sm:$0xff]
  %v1494 = vld [vmem:[%s2 + $0xa0] sm:$0xff]
  %v1495 = vld [vmem:[%s2 + $0xa8] sm:$0xff]
  %v1496 = vld [vmem:[%s2 + $0xb0] sm:$0xff]
  %v1497 = vld [vmem:[%s2 + $0xb8] sm:$0xff]
  %v1498 = vld [vmem:[%s2 + $0xc0] sm:$0xff]
  %1499 = vmatpush.msra.mxu0 %v38
  %1500 = vmatpush.msra.mxu0 %v37
  %1501 = vmatpush.msra.mxu0 %v36
  %1502 = vmatpush.msra.mxu0 %v35
  %1503 = vmatpush.msra.mxu0 %v34
  %1504 = vmatpush.msra.mxu0 %v33
  %1505 = vmatpush.msra.mxu0 %v32
  %1506 = vmatpush.msra.mxu0 %v31
  %1507 = vmatpush.msra.mxu0 %v30
  %1508 = vmatpush.msra.mxu0 %v29
  %1509 = vmatpush.msra.mxu0 %v28
  %1510 = vmatpush.msra.mxu0 %v27
  %1511 = vmatpush.msra.mxu0 %v26
  %1512 = vmatpush.msra.mxu0 %v25
  %1513 = vmatpush.msra.mxu0 %v24
  %1514 = vmatpush.msra.mxu0 %v23
  %1515 = vmatmul.f32.gmra.mxu0 %v1474
  %v1516 = vpop.f32.mrf.mxu0
  %v1517 = vadd.f32 0.0, %v1516
  %1518 = vdwg.mxu0
  %1519 = vmatpush.msra.mxu0 %v54
  %1520 = vmatpush.msra.mxu0 %v53
  %1521 = vmatpush.msra.mxu0 %v52
  %1522 = vmatpush.msra.mxu0 %v51
  %1523 = vmatpush.msra.mxu0 %v50
  %1524 = vmatpush.msra.mxu0 %v49
  %1525 = vmatpush.msra.mxu0 %v48
  %1526 = vmatpush.msra.mxu0 %v47
  %1527 = vmatpush.msra.mxu0 %v46
  %1528 = vmatpush.msra.mxu0 %v45
  %1529 = vmatpush.msra.mxu0 %v44
  %1530 = vmatpush.msra.mxu0 %v43
  %1531 = vmatpush.msra.mxu0 %v42
  %1532 = vmatpush.msra.mxu0 %v41
  %1533 = vmatpush.msra.mxu0 %v40
  %1534 = vmatpush.msra.mxu0 %v39
  %1535 = vmatmul.f32.gmra.mxu0 %v1475
  %v1536 = vpop.f32.mrf.mxu0
  %v1537 = vadd.f32 %v1517, %v1536
  %1538 = vdwg.mxu0
  %1539 = vmatpush.msra.mxu0 %v70
  %1540 = vmatpush.msra.mxu0 %v69
  %1541 = vmatpush.msra.mxu0 %v68
  %1542 = vmatpush.msra.mxu0 %v67
  %1543 = vmatpush.msra.mxu0 %v66
  %1544 = vmatpush.msra.mxu0 %v65
  %1545 = vmatpush.msra.mxu0 %v64
  %1546 = vmatpush.msra.mxu0 %v63
  %1547 = vmatpush.msra.mxu0 %v62
  %1548 = vmatpush.msra.mxu0 %v61
  %1549 = vmatpush.msra.mxu0 %v60
  %1550 = vmatpush.msra.mxu0 %v59
  %1551 = vmatpush.msra.mxu0 %v58
  %1552 = vmatpush.msra.mxu0 %v57
  %1553 = vmatpush.msra.mxu0 %v56
  %1554 = vmatpush.msra.mxu0 %v55
  %1555 = vmatmul.f32.gmra.mxu0 %v1476
  %v1556 = vpop.f32.mrf.mxu0
  %v1557 = vadd.f32 %v1537, %v1556
  %1558 = vdwg.mxu0
  %1559 = vmatpush.msra.mxu0 %v86
  %1560 = vmatpush.msra.mxu0 %v85
  %1561 = vmatpush.msra.mxu0 %v84
  %1562 = vmatpush.msra.mxu0 %v83
  %1563 = vmatpush.msra.mxu0 %v82
  %1564 = vmatpush.msra.mxu0 %v81
  %1565 = vmatpush.msra.mxu0 %v80
  %1566 = vmatpush.msra.mxu0 %v79
  %1567 = vmatpush.msra.mxu0 %v78
  %1568 = vmatpush.msra.mxu0 %v77
  %1569 = vmatpush.msra.mxu0 %v76
  %1570 = vmatpush.msra.mxu0 %v75
  %1571 = vmatpush.msra.mxu0 %v74
  %1572 = vmatpush.msra.mxu0 %v73
  %1573 = vmatpush.msra.mxu0 %v72
  %1574 = vmatpush.msra.mxu0 %v71
  %1575 = vmatmul.f32.gmra.mxu0 %v1477
  %v1576 = vpop.f32.mrf.mxu0
  %v1577 = vadd.f32 %v1557, %v1576
  %1578 = vdwg.mxu0
  %1579 = vmatpush.msra.mxu0 %v102
  %1580 = vmatpush.msra.mxu0 %v101
  %1581 = vmatpush.msra.mxu0 %v100
  %1582 = vmatpush.msra.mxu0 %v99
  %1583 = vmatpush.msra.mxu0 %v98
  %1584 = vmatpush.msra.mxu0 %v97
  %1585 = vmatpush.msra.mxu0 %v96
  %1586 = vmatpush.msra.mxu0 %v95
  %1587 = vmatpush.msra.mxu0 %v94
  %1588 = vmatpush.msra.mxu0 %v93
  %1589 = vmatpush.msra.mxu0 %v92
  %1590 = vmatpush.msra.mxu0 %v91
  %1591 = vmatpush.msra.mxu0 %v90
  %1592 = vmatpush.msra.mxu0 %v89
  %1593 = vmatpush.msra.mxu0 %v88
  %1594 = vmatpush.msra.mxu0 %v87
  %1595 = vmatmul.f32.gmra.mxu0 %v1478
  %v1596 = vpop.f32.mrf.mxu0
  %v1597 = vadd.f32 %v1577, %v1596
  %1598 = vdwg.mxu0
  %1599 = vmatpush.msra.mxu0 %v118
  %1600 = vmatpush.msra.mxu0 %v117
  %1601 = vmatpush.msra.mxu0 %v116
  %1602 = vmatpush.msra.mxu0 %v115
  %1603 = vmatpush.msra.mxu0 %v114
  %1604 = vmatpush.msra.mxu0 %v113
  %1605 = vmatpush.msra.mxu0 %v112
  %1606 = vmatpush.msra.mxu0 %v111
  %1607 = vmatpush.msra.mxu0 %v110
  %1608 = vmatpush.msra.mxu0 %v109
  %1609 = vmatpush.msra.mxu0 %v108
  %1610 = vmatpush.msra.mxu0 %v107
  %1611 = vmatpush.msra.mxu0 %v106
  %1612 = vmatpush.msra.mxu0 %v105
  %1613 = vmatpush.msra.mxu0 %v104
  %1614 = vmatpush.msra.mxu0 %v103
  %1615 = vmatmul.f32.gmra.mxu0 %v1479
  %v1616 = vpop.f32.mrf.mxu0
  %v1617 = vadd.f32 %v1597, %v1616
  %1618 = vdwg.mxu0
  %1619 = vmatpush.msra.mxu0 %v134
  %1620 = vmatpush.msra.mxu0 %v133
  %1621 = vmatpush.msra.mxu0 %v132
  %1622 = vmatpush.msra.mxu0 %v131
  %1623 = vmatpush.msra.mxu0 %v130
  %1624 = vmatpush.msra.mxu0 %v129
  %1625 = vmatpush.msra.mxu0 %v128
  %1626 = vmatpush.msra.mxu0 %v127
  %1627 = vmatpush.msra.mxu0 %v126
  %1628 = vmatpush.msra.mxu0 %v125
  %1629 = vmatpush.msra.mxu0 %v124
  %1630 = vmatpush.msra.mxu0 %v123
  %1631 = vmatpush.msra.mxu0 %v122
  %1632 = vmatpush.msra.mxu0 %v121
  %1633 = vmatpush.msra.mxu0 %v120
  %1634 = vmatpush.msra.mxu0 %v119
  %1635 = vmatmul.f32.gmra.mxu0 %v1480
  %v1636 = vpop.f32.mrf.mxu0
  %v1637 = vadd.f32 %v1617, %v1636
  %1638 = vdwg.mxu0
  %1639 = vmatpush.msra.mxu0 %v150
  %1640 = vmatpush.msra.mxu0 %v149
  %1641 = vmatpush.msra.mxu0 %v148
  %1642 = vmatpush.msra.mxu0 %v147
  %1643 = vmatpush.msra.mxu0 %v146
  %1644 = vmatpush.msra.mxu0 %v145
  %1645 = vmatpush.msra.mxu0 %v144
  %1646 = vmatpush.msra.mxu0 %v143
  %1647 = vmatpush.msra.mxu0 %v142
  %1648 = vmatpush.msra.mxu0 %v141
  %1649 = vmatpush.msra.mxu0 %v140
  %1650 = vmatpush.msra.mxu0 %v139
  %1651 = vmatpush.msra.mxu0 %v138
  %1652 = vmatpush.msra.mxu0 %v137
  %1653 = vmatpush.msra.mxu0 %v136
  %1654 = vmatpush.msra.mxu0 %v135
  %1655 = vmatmul.f32.gmra.mxu0 %v1481
  %v1656 = vpop.f32.mrf.mxu0
  %v1657 = vadd.f32 %v1637, %v1656
  %1658 = vdwg.mxu0
  %1659 = vmatpush.msra.mxu0 %v166
  %1660 = vmatpush.msra.mxu0 %v165
  %1661 = vmatpush.msra.mxu0 %v164
  %1662 = vmatpush.msra.mxu0 %v163
  %1663 = vmatpush.msra.mxu0 %v162
  %1664 = vmatpush.msra.mxu0 %v161
  %1665 = vmatpush.msra.mxu0 %v160
  %1666 = vmatpush.msra.mxu0 %v159
  %1667 = vmatpush.msra.mxu0 %v158
  %1668 = vmatpush.msra.mxu0 %v157
  %1669 = vmatpush.msra.mxu0 %v156
  %1670 = vmatpush.msra.mxu0 %v155
  %1671 = vmatpush.msra.mxu0 %v154
  %1672 = vmatpush.msra.mxu0 %v153
  %1673 = vmatpush.msra.mxu0 %v152
  %1674 = vmatpush.msra.mxu0 %v151
  %1675 = vmatmul.f32.gmra.mxu0 %v1482
  %v1676 = vpop.f32.mrf.mxu0
  %v1677 = vadd.f32 %v1657, %v1676
  %1678 = vdwg.mxu0
  %1679 = vmatpush.msra.mxu0 %v182
  %1680 = vmatpush.msra.mxu0 %v181
  %1681 = vmatpush.msra.mxu0 %v180
  %1682 = vmatpush.msra.mxu0 %v179
  %1683 = vmatpush.msra.mxu0 %v178
  %1684 = vmatpush.msra.mxu0 %v177
  %1685 = vmatpush.msra.mxu0 %v176
  %1686 = vmatpush.msra.mxu0 %v175
  %1687 = vmatpush.msra.mxu0 %v174
  %1688 = vmatpush.msra.mxu0 %v173
  %1689 = vmatpush.msra.mxu0 %v172
  %1690 = vmatpush.msra.mxu0 %v171
  %1691 = vmatpush.msra.mxu0 %v170
  %1692 = vmatpush.msra.mxu0 %v169
  %1693 = vmatpush.msra.mxu0 %v168
  %1694 = vmatpush.msra.mxu0 %v167
  %1695 = vmatmul.f32.gmra.mxu0 %v1483
  %v1696 = vpop.f32.mrf.mxu0
  %v1697 = vadd.f32 %v1677, %v1696
  %1698 = vdwg.mxu0
  %1699 = vmatpush.msra.mxu0 %v198
  %1700 = vmatpush.msra.mxu0 %v197
  %1701 = vmatpush.msra.mxu0 %v196
  %1702 = vmatpush.msra.mxu0 %v195
  %1703 = vmatpush.msra.mxu0 %v194
  %1704 = vmatpush.msra.mxu0 %v193
  %1705 = vmatpush.msra.mxu0 %v192
  %1706 = vmatpush.msra.mxu0 %v191
  %1707 = vmatpush.msra.mxu0 %v190
  %1708 = vmatpush.msra.mxu0 %v189
  %1709 = vmatpush.msra.mxu0 %v188
  %1710 = vmatpush.msra.mxu0 %v187
  %1711 = vmatpush.msra.mxu0 %v186
  %1712 = vmatpush.msra.mxu0 %v185
  %1713 = vmatpush.msra.mxu0 %v184
  %1714 = vmatpush.msra.mxu0 %v183
  %1715 = vmatmul.f32.gmra.mxu0 %v1484
  %v1716 = vpop.f32.mrf.mxu0
  %v1717 = vadd.f32 %v1697, %v1716
  %1718 = vdwg.mxu0
  %1719 = vmatpush.msra.mxu0 %v214
  %1720 = vmatpush.msra.mxu0 %v213
  %1721 = vmatpush.msra.mxu0 %v212
  %1722 = vmatpush.msra.mxu0 %v211
  %1723 = vmatpush.msra.mxu0 %v210
  %1724 = vmatpush.msra.mxu0 %v209
  %1725 = vmatpush.msra.mxu0 %v208
  %1726 = vmatpush.msra.mxu0 %v207
  %1727 = vmatpush.msra.mxu0 %v206
  %1728 = vmatpush.msra.mxu0 %v205
  %1729 = vmatpush.msra.mxu0 %v204
  %1730 = vmatpush.msra.mxu0 %v203
  %1731 = vmatpush.msra.mxu0 %v202
  %1732 = vmatpush.msra.mxu0 %v201
  %1733 = vmatpush.msra.mxu0 %v200
  %1734 = vmatpush.msra.mxu0 %v199
  %1735 = vmatmul.f32.gmra.mxu0 %v1485
  %v1736 = vpop.f32.mrf.mxu0
  %v1737 = vadd.f32 %v1717, %v1736
  %1738 = vdwg.mxu0
  %1739 = vmatpush.msra.mxu0 %v230
  %1740 = vmatpush.msra.mxu0 %v229
  %1741 = vmatpush.msra.mxu0 %v228
  %1742 = vmatpush.msra.mxu0 %v227
  %1743 = vmatpush.msra.mxu0 %v226
  %1744 = vmatpush.msra.mxu0 %v225
  %1745 = vmatpush.msra.mxu0 %v224
  %1746 = vmatpush.msra.mxu0 %v223
  %1747 = vmatpush.msra.mxu0 %v222
  %1748 = vmatpush.msra.mxu0 %v221
  %1749 = vmatpush.msra.mxu0 %v220
  %1750 = vmatpush.msra.mxu0 %v219
  %1751 = vmatpush.msra.mxu0 %v218
  %1752 = vmatpush.msra.mxu0 %v217
  %1753 = vmatpush.msra.mxu0 %v216
  %1754 = vmatpush.msra.mxu0 %v215
  %1755 = vmatmul.f32.gmra.mxu0 %v1486
  %v1756 = vpop.f32.mrf.mxu0
  %v1757 = vadd.f32 %v1737, %v1756
  %1758 = vdwg.mxu0
  %1759 = vmatpush.msra.mxu0 %v246
  %1760 = vmatpush.msra.mxu0 %v245
  %1761 = vmatpush.msra.mxu0 %v244
  %1762 = vmatpush.msra.mxu0 %v243
  %1763 = vmatpush.msra.mxu0 %v242
  %1764 = vmatpush.msra.mxu0 %v241
  %1765 = vmatpush.msra.mxu0 %v240
  %1766 = vmatpush.msra.mxu0 %v239
  %1767 = vmatpush.msra.mxu0 %v238
  %1768 = vmatpush.msra.mxu0 %v237
  %1769 = vmatpush.msra.mxu0 %v236
  %1770 = vmatpush.msra.mxu0 %v235
  %1771 = vmatpush.msra.mxu0 %v234
  %1772 = vmatpush.msra.mxu0 %v233
  %1773 = vmatpush.msra.mxu0 %v232
  %1774 = vmatpush.msra.mxu0 %v231
  %1775 = vmatmul.f32.gmra.mxu0 %v1487
  %v1776 = vpop.f32.mrf.mxu0
  %v1777 = vadd.f32 %v1757, %v1776
  %1778 = vdwg.mxu0
  %1779 = vmatpush.msra.mxu0 %v262
  %1780 = vmatpush.msra.mxu0 %v261
  %1781 = vmatpush.msra.mxu0 %v260
  %1782 = vmatpush.msra.mxu0 %v259
  %1783 = vmatpush.msra.mxu0 %v258
  %1784 = vmatpush.msra.mxu0 %v257
  %1785 = vmatpush.msra.mxu0 %v256
  %1786 = vmatpush.msra.mxu0 %v255
  %1787 = vmatpush.msra.mxu0 %v254
  %1788 = vmatpush.msra.mxu0 %v253
  %1789 = vmatpush.msra.mxu0 %v252
  %1790 = vmatpush.msra.mxu0 %v251
  %1791 = vmatpush.msra.mxu0 %v250
  %1792 = vmatpush.msra.mxu0 %v249
  %1793 = vmatpush.msra.mxu0 %v248
  %1794 = vmatpush.msra.mxu0 %v247
  %1795 = vmatmul.f32.gmra.mxu0 %v1488
  %v1796 = vpop.f32.mrf.mxu0
  %v1797 = vadd.f32 %v1777, %v1796
  %1798 = vdwg.mxu0
  %1799 = vmatpush.msra.mxu0 %v278
  %1800 = vmatpush.msra.mxu0 %v277
  %1801 = vmatpush.msra.mxu0 %v276
  %1802 = vmatpush.msra.mxu0 %v275
  %1803 = vmatpush.msra.mxu0 %v274
  %1804 = vmatpush.msra.mxu0 %v273
  %1805 = vmatpush.msra.mxu0 %v272
  %1806 = vmatpush.msra.mxu0 %v271
  %1807 = vmatpush.msra.mxu0 %v270
  %1808 = vmatpush.msra.mxu0 %v269
  %1809 = vmatpush.msra.mxu0 %v268
  %1810 = vmatpush.msra.mxu0 %v267
  %1811 = vmatpush.msra.mxu0 %v266
  %1812 = vmatpush.msra.mxu0 %v265
  %1813 = vmatpush.msra.mxu0 %v264
  %1814 = vmatpush.msra.mxu0 %v263
  %1815 = vmatmul.f32.gmra.mxu0 %v1489
  %v1816 = vpop.f32.mrf.mxu0
  %v1817 = vadd.f32 %v1797, %v1816
  %1818 = vdwg.mxu0
  %1819 = vmatpush.msra.mxu0 %v294
  %1820 = vmatpush.msra.mxu0 %v293
  %1821 = vmatpush.msra.mxu0 %v292
  %1822 = vmatpush.msra.mxu0 %v291
  %1823 = vmatpush.msra.mxu0 %v290
  %1824 = vmatpush.msra.mxu0 %v289
  %1825 = vmatpush.msra.mxu0 %v288
  %1826 = vmatpush.msra.mxu0 %v287
  %1827 = vmatpush.msra.mxu0 %v286
  %1828 = vmatpush.msra.mxu0 %v285
  %1829 = vmatpush.msra.mxu0 %v284
  %1830 = vmatpush.msra.mxu0 %v283
  %1831 = vmatpush.msra.mxu0 %v282
  %1832 = vmatpush.msra.mxu0 %v281
  %1833 = vmatpush.msra.mxu0 %v280
  %1834 = vmatpush.msra.mxu0 %v279
  %1835 = vmatmul.f32.gmra.mxu0 %v1490
  %v1836 = vpop.f32.mrf.mxu0
  %v1837 = vadd.f32 %v1817, %v1836
  %1838 = vdwg.mxu0
  %1839 = vmatpush.msra.mxu0 %v310
  %1840 = vmatpush.msra.mxu0 %v309
  %1841 = vmatpush.msra.mxu0 %v308
  %1842 = vmatpush.msra.mxu0 %v307
  %1843 = vmatpush.msra.mxu0 %v306
  %1844 = vmatpush.msra.mxu0 %v305
  %1845 = vmatpush.msra.mxu0 %v304
  %1846 = vmatpush.msra.mxu0 %v303
  %1847 = vmatpush.msra.mxu0 %v302
  %1848 = vmatpush.msra.mxu0 %v301
  %1849 = vmatpush.msra.mxu0 %v300
  %1850 = vmatpush.msra.mxu0 %v299
  %1851 = vmatpush.msra.mxu0 %v298
  %1852 = vmatpush.msra.mxu0 %v297
  %1853 = vmatpush.msra.mxu0 %v296
  %1854 = vmatpush.msra.mxu0 %v295
  %1855 = vmatmul.f32.gmra.mxu0 %v1491
  %v1856 = vpop.f32.mrf.mxu0
  %v1857 = vadd.f32 %v1837, %v1856
  %1858 = vdwg.mxu0
  %1859 = vmatpush.msra.mxu0 %v326
  %1860 = vmatpush.msra.mxu0 %v325
  %1861 = vmatpush.msra.mxu0 %v324
  %1862 = vmatpush.msra.mxu0 %v323
  %1863 = vmatpush.msra.mxu0 %v322
  %1864 = vmatpush.msra.mxu0 %v321
  %1865 = vmatpush.msra.mxu0 %v320
  %1866 = vmatpush.msra.mxu0 %v319
  %1867 = vmatpush.msra.mxu0 %v318
  %1868 = vmatpush.msra.mxu0 %v317
  %1869 = vmatpush.msra.mxu0 %v316
  %1870 = vmatpush.msra.mxu0 %v315
  %1871 = vmatpush.msra.mxu0 %v314
  %1872 = vmatpush.msra.mxu0 %v313
  %1873 = vmatpush.msra.mxu0 %v312
  %1874 = vmatpush.msra.mxu0 %v311
  %1875 = vmatmul.f32.gmra.mxu0 %v1492
  %v1876 = vpop.f32.mrf.mxu0
  %v1877 = vadd.f32 %v1857, %v1876
  %1878 = vdwg.mxu0
  %1879 = vmatpush.msra.mxu0 %v342
  %1880 = vmatpush.msra.mxu0 %v341
  %1881 = vmatpush.msra.mxu0 %v340
  %1882 = vmatpush.msra.mxu0 %v339
  %1883 = vmatpush.msra.mxu0 %v338
  %1884 = vmatpush.msra.mxu0 %v337
  %1885 = vmatpush.msra.mxu0 %v336
  %1886 = vmatpush.msra.mxu0 %v335
  %1887 = vmatpush.msra.mxu0 %v334
  %1888 = vmatpush.msra.mxu0 %v333
  %1889 = vmatpush.msra.mxu0 %v332
  %1890 = vmatpush.msra.mxu0 %v331
  %1891 = vmatpush.msra.mxu0 %v330
  %1892 = vmatpush.msra.mxu0 %v329
  %1893 = vmatpush.msra.mxu0 %v328
  %1894 = vmatpush.msra.mxu0 %v327
  %1895 = vmatmul.f32.gmra.mxu0 %v1493
  %v1896 = vpop.f32.mrf.mxu0
  %v1897 = vadd.f32 %v1877, %v1896
  %1898 = vdwg.mxu0
  %1899 = vmatpush.msra.mxu0 %v358
  %1900 = vmatpush.msra.mxu0 %v357
  %1901 = vmatpush.msra.mxu0 %v356
  %1902 = vmatpush.msra.mxu0 %v355
  %1903 = vmatpush.msra.mxu0 %v354
  %1904 = vmatpush.msra.mxu0 %v353
  %1905 = vmatpush.msra.mxu0 %v352
  %1906 = vmatpush.msra.mxu0 %v351
  %1907 = vmatpush.msra.mxu0 %v350
  %1908 = vmatpush.msra.mxu0 %v349
  %1909 = vmatpush.msra.mxu0 %v348
  %1910 = vmatpush.msra.mxu0 %v347
  %1911 = vmatpush.msra.mxu0 %v346
  %1912 = vmatpush.msra.mxu0 %v345
  %1913 = vmatpush.msra.mxu0 %v344
  %1914 = vmatpush.msra.mxu0 %v343
  %1915 = vmatmul.f32.gmra.mxu0 %v1494
  %v1916 = vpop.f32.mrf.mxu0
  %v1917 = vadd.f32 %v1897, %v1916
  %1918 = vdwg.mxu0
  %1919 = vmatpush.msra.mxu0 %v374
  %1920 = vmatpush.msra.mxu0 %v373
  %1921 = vmatpush.msra.mxu0 %v372
  %1922 = vmatpush.msra.mxu0 %v371
  %1923 = vmatpush.msra.mxu0 %v370
  %1924 = vmatpush.msra.mxu0 %v369
  %1925 = vmatpush.msra.mxu0 %v368
  %1926 = vmatpush.msra.mxu0 %v367
  %1927 = vmatpush.msra.mxu0 %v366
  %1928 = vmatpush.msra.mxu0 %v365
  %1929 = vmatpush.msra.mxu0 %v364
  %1930 = vmatpush.msra.mxu0 %v363
  %1931 = vmatpush.msra.mxu0 %v362
  %1932 = vmatpush.msra.mxu0 %v361
  %1933 = vmatpush.msra.mxu0 %v360
  %1934 = vmatpush.msra.mxu0 %v359
  %1935 = vmatmul.f32.gmra.mxu0 %v1495
  %v1936 = vpop.f32.mrf.mxu0
  %v1937 = vadd.f32 %v1917, %v1936
  %1938 = vdwg.mxu0
  %1939 = vmatpush.msra.mxu0 %v390
  %1940 = vmatpush.msra.mxu0 %v389
  %1941 = vmatpush.msra.mxu0 %v388
  %1942 = vmatpush.msra.mxu0 %v387
  %1943 = vmatpush.msra.mxu0 %v386
  %1944 = vmatpush.msra.mxu0 %v385
  %1945 = vmatpush.msra.mxu0 %v384
  %1946 = vmatpush.msra.mxu0 %v383
  %1947 = vmatpush.msra.mxu0 %v382
  %1948 = vmatpush.msra.mxu0 %v381
  %1949 = vmatpush.msra.mxu0 %v380
  %1950 = vmatpush.msra.mxu0 %v379
  %1951 = vmatpush.msra.mxu0 %v378
  %1952 = vmatpush.msra.mxu0 %v377
  %1953 = vmatpush.msra.mxu0 %v376
  %1954 = vmatpush.msra.mxu0 %v375
  %1955 = vmatmul.f32.gmra.mxu0 %v1496
  %v1956 = vpop.f32.mrf.mxu0
  %v1957 = vadd.f32 %v1937, %v1956
  %1958 = vdwg.mxu0
  %1959 = vmatpush.msra.mxu0 %v406
  %1960 = vmatpush.msra.mxu0 %v405
  %1961 = vmatpush.msra.mxu0 %v404
  %1962 = vmatpush.msra.mxu0 %v403
  %1963 = vmatpush.msra.mxu0 %v402
  %1964 = vmatpush.msra.mxu0 %v401
  %1965 = vmatpush.msra.mxu0 %v400
  %1966 = vmatpush.msra.mxu0 %v399
  %1967 = vmatpush.msra.mxu0 %v398
  %1968 = vmatpush.msra.mxu0 %v397
  %1969 = vmatpush.msra.mxu0 %v396
  %1970 = vmatpush.msra.mxu0 %v395
  %1971 = vmatpush.msra.mxu0 %v394
  %1972 = vmatpush.msra.mxu0 %v393
  %1973 = vmatpush.msra.mxu0 %v392
  %1974 = vmatpush.msra.mxu0 %v391
  %1975 = vmatmul.f32.gmra.mxu0 %v1497
  %v1976 = vpop.f32.mrf.mxu0
  %v1977 = vadd.f32 %v1957, %v1976
  %1978 = vdwg.mxu0
  %1979 = vmatpush.msra.mxu0 %v422
  %1980 = vmatpush.msra.mxu0 %v421
  %1981 = vmatpush.msra.mxu0 %v420
  %1982 = vmatpush.msra.mxu0 %v419
  %1983 = vmatpush.msra.mxu0 %v418
  %1984 = vmatpush.msra.mxu0 %v417
  %1985 = vmatpush.msra.mxu0 %v416
  %1986 = vmatpush.msra.mxu0 %v415
  %1987 = vmatpush.msra.mxu0 %v414
  %1988 = vmatpush.msra.mxu0 %v413
  %1989 = vmatpush.msra.mxu0 %v412
  %1990 = vmatpush.msra.mxu0 %v411
  %1991 = vmatpush.msra.mxu0 %v410
  %1992 = vmatpush.msra.mxu0 %v409
  %1993 = vmatpush.msra.mxu0 %v408
  %1994 = vmatpush.msra.mxu0 %v407
  %1995 = vmatmul.f32.gmra.mxu0 %v1498
  %v1996 = vpop.f32.mrf.mxu0
  %v1997 = vadd.f32 %v1977, %v1996
  %1998 = vdwg.mxu0
  %v1999 = vmax.f32 %v1473, %v1997
  %v2000 = vld [vmem:[%s3] sm:$0xff]
  %v2001 = vld [vmem:[%s3 + $0x8] sm:$0xff]
  %v2002 = vld [vmem:[%s3 + $0x10] sm:$0xff]
  %v2003 = vld [vmem:[%s3 + $0x18] sm:$0xff]
  %v2004 = vld [vmem:[%s3 + $0x20] sm:$0xff]
  %v2005 = vld [vmem:[%s3 + $0x28] sm:$0xff]
  %v2006 = vld [vmem:[%s3 + $0x30] sm:$0xff]
  %v2007 = vld [vmem:[%s3 + $0x38] sm:$0xff]
  %v2008 = vld [vmem:[%s3 + $0x40] sm:$0xff]
  %v2009 = vld [vmem:[%s3 + $0x48] sm:$0xff]
  %v2010 = vld [vmem:[%s3 + $0x50] sm:$0xff]
  %v2011 = vld [vmem:[%s3 + $0x58] sm:$0xff]
  %v2012 = vld [vmem:[%s3 + $0x60] sm:$0xff]
  %v2013 = vld [vmem:[%s3 + $0x68] sm:$0xff]
  %v2014 = vld [vmem:[%s3 + $0x70] sm:$0xff]
  %v2015 = vld [vmem:[%s3 + $0x78] sm:$0xff]
  %v2016 = vld [vmem:[%s3 + $0x80] sm:$0xff]
  %v2017 = vld [vmem:[%s3 + $0x88] sm:$0xff]
  %v2018 = vld [vmem:[%s3 + $0x90] sm:$0xff]
  %v2019 = vld [vmem:[%s3 + $0x98] sm:$0xff]
  %v2020 = vld [vmem:[%s3 + $0xa0] sm:$0xff]
  %v2021 = vld [vmem:[%s3 + $0xa8] sm:$0xff]
  %v2022 = vld [vmem:[%s3 + $0xb0] sm:$0xff]
  %v2023 = vld [vmem:[%s3 + $0xb8] sm:$0xff]
  %v2024 = vld [vmem:[%s3 + $0xc0] sm:$0xff]
  %2025 = vmatpush.msra.mxu0 %v38
  %2026 = vmatpush.msra.mxu0 %v37
  %2027 = vmatpush.msra.mxu0 %v36
  %2028 = vmatpush.msra.mxu0 %v35
  %2029 = vmatpush.msra.mxu0 %v34
  %2030 = vmatpush.msra.mxu0 %v33
  %2031 = vmatpush.msra.mxu0 %v32
  %2032 = vmatpush.msra.mxu0 %v31
  %2033 = vmatpush.msra.mxu0 %v30
  %2034 = vmatpush.msra.mxu0 %v29
  %2035 = vmatpush.msra.mxu0 %v28
  %2036 = vmatpush.msra.mxu0 %v27
  %2037 = vmatpush.msra.mxu0 %v26
  %2038 = vmatpush.msra.mxu0 %v25
  %2039 = vmatpush.msra.mxu0 %v24
  %2040 = vmatpush.msra.mxu0 %v23
  %2041 = vmatmul.f32.gmra.mxu0 %v2000
  %v2042 = vpop.f32.mrf.mxu0
  %v2043 = vadd.f32 0.0, %v2042
  %2044 = vdwg.mxu0
  %2045 = vmatpush.msra.mxu0 %v54
  %2046 = vmatpush.msra.mxu0 %v53
  %2047 = vmatpush.msra.mxu0 %v52
  %2048 = vmatpush.msra.mxu0 %v51
  %2049 = vmatpush.msra.mxu0 %v50
  %2050 = vmatpush.msra.mxu0 %v49
  %2051 = vmatpush.msra.mxu0 %v48
  %2052 = vmatpush.msra.mxu0 %v47
  %2053 = vmatpush.msra.mxu0 %v46
  %2054 = vmatpush.msra.mxu0 %v45
  %2055 = vmatpush.msra.mxu0 %v44
  %2056 = vmatpush.msra.mxu0 %v43
  %2057 = vmatpush.msra.mxu0 %v42
  %2058 = vmatpush.msra.mxu0 %v41
  %2059 = vmatpush.msra.mxu0 %v40
  %2060 = vmatpush.msra.mxu0 %v39
  %2061 = vmatmul.f32.gmra.mxu0 %v2001
  %v2062 = vpop.f32.mrf.mxu0
  %v2063 = vadd.f32 %v2043, %v2062
  %2064 = vdwg.mxu0
  %2065 = vmatpush.msra.mxu0 %v70
  %2066 = vmatpush.msra.mxu0 %v69
  %2067 = vmatpush.msra.mxu0 %v68
  %2068 = vmatpush.msra.mxu0 %v67
  %2069 = vmatpush.msra.mxu0 %v66
  %2070 = vmatpush.msra.mxu0 %v65
  %2071 = vmatpush.msra.mxu0 %v64
  %2072 = vmatpush.msra.mxu0 %v63
  %2073 = vmatpush.msra.mxu0 %v62
  %2074 = vmatpush.msra.mxu0 %v61
  %2075 = vmatpush.msra.mxu0 %v60
  %2076 = vmatpush.msra.mxu0 %v59
  %2077 = vmatpush.msra.mxu0 %v58
  %2078 = vmatpush.msra.mxu0 %v57
  %2079 = vmatpush.msra.mxu0 %v56
  %2080 = vmatpush.msra.mxu0 %v55
  %2081 = vmatmul.f32.gmra.mxu0 %v2002
  %v2082 = vpop.f32.mrf.mxu0
  %v2083 = vadd.f32 %v2063, %v2082
  %2084 = vdwg.mxu0
  %2085 = vmatpush.msra.mxu0 %v86
  %2086 = vmatpush.msra.mxu0 %v85
  %2087 = vmatpush.msra.mxu0 %v84
  %2088 = vmatpush.msra.mxu0 %v83
  %2089 = vmatpush.msra.mxu0 %v82
  %2090 = vmatpush.msra.mxu0 %v81
  %2091 = vmatpush.msra.mxu0 %v80
  %2092 = vmatpush.msra.mxu0 %v79
  %2093 = vmatpush.msra.mxu0 %v78
  %2094 = vmatpush.msra.mxu0 %v77
  %2095 = vmatpush.msra.mxu0 %v76
  %2096 = vmatpush.msra.mxu0 %v75
  %2097 = vmatpush.msra.mxu0 %v74
  %2098 = vmatpush.msra.mxu0 %v73
  %2099 = vmatpush.msra.mxu0 %v72
  %2100 = vmatpush.msra.mxu0 %v71
  %2101 = vmatmul.f32.gmra.mxu0 %v2003
  %v2102 = vpop.f32.mrf.mxu0
  %v2103 = vadd.f32 %v2083, %v2102
  %2104 = vdwg.mxu0
  %2105 = vmatpush.msra.mxu0 %v102
  %2106 = vmatpush.msra.mxu0 %v101
  %2107 = vmatpush.msra.mxu0 %v100
  %2108 = vmatpush.msra.mxu0 %v99
  %2109 = vmatpush.msra.mxu0 %v98
  %2110 = vmatpush.msra.mxu0 %v97
  %2111 = vmatpush.msra.mxu0 %v96
  %2112 = vmatpush.msra.mxu0 %v95
  %2113 = vmatpush.msra.mxu0 %v94
  %2114 = vmatpush.msra.mxu0 %v93
  %2115 = vmatpush.msra.mxu0 %v92
  %2116 = vmatpush.msra.mxu0 %v91
  %2117 = vmatpush.msra.mxu0 %v90
  %2118 = vmatpush.msra.mxu0 %v89
  %2119 = vmatpush.msra.mxu0 %v88
  %2120 = vmatpush.msra.mxu0 %v87
  %2121 = vmatmul.f32.gmra.mxu0 %v2004
  %v2122 = vpop.f32.mrf.mxu0
  %v2123 = vadd.f32 %v2103, %v2122
  %2124 = vdwg.mxu0
  %2125 = vmatpush.msra.mxu0 %v118
  %2126 = vmatpush.msra.mxu0 %v117
  %2127 = vmatpush.msra.mxu0 %v116
  %2128 = vmatpush.msra.mxu0 %v115
  %2129 = vmatpush.msra.mxu0 %v114
  %2130 = vmatpush.msra.mxu0 %v113
  %2131 = vmatpush.msra.mxu0 %v112
  %2132 = vmatpush.msra.mxu0 %v111
  %2133 = vmatpush.msra.mxu0 %v110
  %2134 = vmatpush.msra.mxu0 %v109
  %2135 = vmatpush.msra.mxu0 %v108
  %2136 = vmatpush.msra.mxu0 %v107
  %2137 = vmatpush.msra.mxu0 %v106
  %2138 = vmatpush.msra.mxu0 %v105
  %2139 = vmatpush.msra.mxu0 %v104
  %2140 = vmatpush.msra.mxu0 %v103
  %2141 = vmatmul.f32.gmra.mxu0 %v2005
  %v2142 = vpop.f32.mrf.mxu0
  %v2143 = vadd.f32 %v2123, %v2142
  %2144 = vdwg.mxu0
  %2145 = vmatpush.msra.mxu0 %v134
  %2146 = vmatpush.msra.mxu0 %v133
  %2147 = vmatpush.msra.mxu0 %v132
  %2148 = vmatpush.msra.mxu0 %v131
  %2149 = vmatpush.msra.mxu0 %v130
  %2150 = vmatpush.msra.mxu0 %v129
  %2151 = vmatpush.msra.mxu0 %v128
  %2152 = vmatpush.msra.mxu0 %v127
  %2153 = vmatpush.msra.mxu0 %v126
  %2154 = vmatpush.msra.mxu0 %v125
  %2155 = vmatpush.msra.mxu0 %v124
  %2156 = vmatpush.msra.mxu0 %v123
  %2157 = vmatpush.msra.mxu0 %v122
  %2158 = vmatpush.msra.mxu0 %v121
  %2159 = vmatpush.msra.mxu0 %v120
  %2160 = vmatpush.msra.mxu0 %v119
  %2161 = vmatmul.f32.gmra.mxu0 %v2006
  %v2162 = vpop.f32.mrf.mxu0
  %v2163 = vadd.f32 %v2143, %v2162
  %2164 = vdwg.mxu0
  %2165 = vmatpush.msra.mxu0 %v150
  %2166 = vmatpush.msra.mxu0 %v149
  %2167 = vmatpush.msra.mxu0 %v148
  %2168 = vmatpush.msra.mxu0 %v147
  %2169 = vmatpush.msra.mxu0 %v146
  %2170 = vmatpush.msra.mxu0 %v145
  %2171 = vmatpush.msra.mxu0 %v144
  %2172 = vmatpush.msra.mxu0 %v143
  %2173 = vmatpush.msra.mxu0 %v142
  %2174 = vmatpush.msra.mxu0 %v141
  %2175 = vmatpush.msra.mxu0 %v140
  %2176 = vmatpush.msra.mxu0 %v139
  %2177 = vmatpush.msra.mxu0 %v138
  %2178 = vmatpush.msra.mxu0 %v137
  %2179 = vmatpush.msra.mxu0 %v136
  %2180 = vmatpush.msra.mxu0 %v135
  %2181 = vmatmul.f32.gmra.mxu0 %v2007
  %v2182 = vpop.f32.mrf.mxu0
  %v2183 = vadd.f32 %v2163, %v2182
  %2184 = vdwg.mxu0
  %2185 = vmatpush.msra.mxu0 %v166
  %2186 = vmatpush.msra.mxu0 %v165
  %2187 = vmatpush.msra.mxu0 %v164
  %2188 = vmatpush.msra.mxu0 %v163
  %2189 = vmatpush.msra.mxu0 %v162
  %2190 = vmatpush.msra.mxu0 %v161
  %2191 = vmatpush.msra.mxu0 %v160
  %2192 = vmatpush.msra.mxu0 %v159
  %2193 = vmatpush.msra.mxu0 %v158
  %2194 = vmatpush.msra.mxu0 %v157
  %2195 = vmatpush.msra.mxu0 %v156
  %2196 = vmatpush.msra.mxu0 %v155
  %2197 = vmatpush.msra.mxu0 %v154
  %2198 = vmatpush.msra.mxu0 %v153
  %2199 = vmatpush.msra.mxu0 %v152
  %2200 = vmatpush.msra.mxu0 %v151
  %2201 = vmatmul.f32.gmra.mxu0 %v2008
  %v2202 = vpop.f32.mrf.mxu0
  %v2203 = vadd.f32 %v2183, %v2202
  %2204 = vdwg.mxu0
  %2205 = vmatpush.msra.mxu0 %v182
  %2206 = vmatpush.msra.mxu0 %v181
  %2207 = vmatpush.msra.mxu0 %v180
  %2208 = vmatpush.msra.mxu0 %v179
  %2209 = vmatpush.msra.mxu0 %v178
  %2210 = vmatpush.msra.mxu0 %v177
  %2211 = vmatpush.msra.mxu0 %v176
  %2212 = vmatpush.msra.mxu0 %v175
  %2213 = vmatpush.msra.mxu0 %v174
  %2214 = vmatpush.msra.mxu0 %v173
  %2215 = vmatpush.msra.mxu0 %v172
  %2216 = vmatpush.msra.mxu0 %v171
  %2217 = vmatpush.msra.mxu0 %v170
  %2218 = vmatpush.msra.mxu0 %v169
  %2219 = vmatpush.msra.mxu0 %v168
  %2220 = vmatpush.msra.mxu0 %v167
  %2221 = vmatmul.f32.gmra.mxu0 %v2009
  %v2222 = vpop.f32.mrf.mxu0
  %v2223 = vadd.f32 %v2203, %v2222
  %2224 = vdwg.mxu0
  %2225 = vmatpush.msra.mxu0 %v198
  %2226 = vmatpush.msra.mxu0 %v197
  %2227 = vmatpush.msra.mxu0 %v196
  %2228 = vmatpush.msra.mxu0 %v195
  %2229 = vmatpush.msra.mxu0 %v194
  %2230 = vmatpush.msra.mxu0 %v193
  %2231 = vmatpush.msra.mxu0 %v192
  %2232 = vmatpush.msra.mxu0 %v191
  %2233 = vmatpush.msra.mxu0 %v190
  %2234 = vmatpush.msra.mxu0 %v189
  %2235 = vmatpush.msra.mxu0 %v188
  %2236 = vmatpush.msra.mxu0 %v187
  %2237 = vmatpush.msra.mxu0 %v186
  %2238 = vmatpush.msra.mxu0 %v185
  %2239 = vmatpush.msra.mxu0 %v184
  %2240 = vmatpush.msra.mxu0 %v183
  %2241 = vmatmul.f32.gmra.mxu0 %v2010
  %v2242 = vpop.f32.mrf.mxu0
  %v2243 = vadd.f32 %v2223, %v2242
  %2244 = vdwg.mxu0
  %2245 = vmatpush.msra.mxu0 %v214
  %2246 = vmatpush.msra.mxu0 %v213
  %2247 = vmatpush.msra.mxu0 %v212
  %2248 = vmatpush.msra.mxu0 %v211
  %2249 = vmatpush.msra.mxu0 %v210
  %2250 = vmatpush.msra.mxu0 %v209
  %2251 = vmatpush.msra.mxu0 %v208
  %2252 = vmatpush.msra.mxu0 %v207
  %2253 = vmatpush.msra.mxu0 %v206
  %2254 = vmatpush.msra.mxu0 %v205
  %2255 = vmatpush.msra.mxu0 %v204
  %2256 = vmatpush.msra.mxu0 %v203
  %2257 = vmatpush.msra.mxu0 %v202
  %2258 = vmatpush.msra.mxu0 %v201
  %2259 = vmatpush.msra.mxu0 %v200
  %2260 = vmatpush.msra.mxu0 %v199
  %2261 = vmatmul.f32.gmra.mxu0 %v2011
  %v2262 = vpop.f32.mrf.mxu0
  %v2263 = vadd.f32 %v2243, %v2262
  %2264 = vdwg.mxu0
  %2265 = vmatpush.msra.mxu0 %v230
  %2266 = vmatpush.msra.mxu0 %v229
  %2267 = vmatpush.msra.mxu0 %v228
  %2268 = vmatpush.msra.mxu0 %v227
  %2269 = vmatpush.msra.mxu0 %v226
  %2270 = vmatpush.msra.mxu0 %v225
  %2271 = vmatpush.msra.mxu0 %v224
  %2272 = vmatpush.msra.mxu0 %v223
  %2273 = vmatpush.msra.mxu0 %v222
  %2274 = vmatpush.msra.mxu0 %v221
  %2275 = vmatpush.msra.mxu0 %v220
  %2276 = vmatpush.msra.mxu0 %v219
  %2277 = vmatpush.msra.mxu0 %v218
  %2278 = vmatpush.msra.mxu0 %v217
  %2279 = vmatpush.msra.mxu0 %v216
  %2280 = vmatpush.msra.mxu0 %v215
  %2281 = vmatmul.f32.gmra.mxu0 %v2012
  %v2282 = vpop.f32.mrf.mxu0
  %v2283 = vadd.f32 %v2263, %v2282
  %2284 = vdwg.mxu0
  %2285 = vmatpush.msra.mxu0 %v246
  %2286 = vmatpush.msra.mxu0 %v245
  %2287 = vmatpush.msra.mxu0 %v244
  %2288 = vmatpush.msra.mxu0 %v243
  %2289 = vmatpush.msra.mxu0 %v242
  %2290 = vmatpush.msra.mxu0 %v241
  %2291 = vmatpush.msra.mxu0 %v240
  %2292 = vmatpush.msra.mxu0 %v239
  %2293 = vmatpush.msra.mxu0 %v238
  %2294 = vmatpush.msra.mxu0 %v237
  %2295 = vmatpush.msra.mxu0 %v236
  %2296 = vmatpush.msra.mxu0 %v235
  %2297 = vmatpush.msra.mxu0 %v234
  %2298 = vmatpush.msra.mxu0 %v233
  %2299 = vmatpush.msra.mxu0 %v232
  %2300 = vmatpush.msra.mxu0 %v231
  %2301 = vmatmul.f32.gmra.mxu0 %v2013
  %v2302 = vpop.f32.mrf.mxu0
  %v2303 = vadd.f32 %v2283, %v2302
  %2304 = vdwg.mxu0
  %2305 = vmatpush.msra.mxu0 %v262
  %2306 = vmatpush.msra.mxu0 %v261
  %2307 = vmatpush.msra.mxu0 %v260
  %2308 = vmatpush.msra.mxu0 %v259
  %2309 = vmatpush.msra.mxu0 %v258
  %2310 = vmatpush.msra.mxu0 %v257
  %2311 = vmatpush.msra.mxu0 %v256
  %2312 = vmatpush.msra.mxu0 %v255
  %2313 = vmatpush.msra.mxu0 %v254
  %2314 = vmatpush.msra.mxu0 %v253
  %2315 = vmatpush.msra.mxu0 %v252
  %2316 = vmatpush.msra.mxu0 %v251
  %2317 = vmatpush.msra.mxu0 %v250
  %2318 = vmatpush.msra.mxu0 %v249
  %2319 = vmatpush.msra.mxu0 %v248
  %2320 = vmatpush.msra.mxu0 %v247
  %2321 = vmatmul.f32.gmra.mxu0 %v2014
  %v2322 = vpop.f32.mrf.mxu0
  %v2323 = vadd.f32 %v2303, %v2322
  %2324 = vdwg.mxu0
  %2325 = vmatpush.msra.mxu0 %v278
  %2326 = vmatpush.msra.mxu0 %v277
  %2327 = vmatpush.msra.mxu0 %v276
  %2328 = vmatpush.msra.mxu0 %v275
  %2329 = vmatpush.msra.mxu0 %v274
  %2330 = vmatpush.msra.mxu0 %v273
  %2331 = vmatpush.msra.mxu0 %v272
  %2332 = vmatpush.msra.mxu0 %v271
  %2333 = vmatpush.msra.mxu0 %v270
  %2334 = vmatpush.msra.mxu0 %v269
  %2335 = vmatpush.msra.mxu0 %v268
  %2336 = vmatpush.msra.mxu0 %v267
  %2337 = vmatpush.msra.mxu0 %v266
  %2338 = vmatpush.msra.mxu0 %v265
  %2339 = vmatpush.msra.mxu0 %v264
  %2340 = vmatpush.msra.mxu0 %v263
  %2341 = vmatmul.f32.gmra.mxu0 %v2015
  %v2342 = vpop.f32.mrf.mxu0
  %v2343 = vadd.f32 %v2323, %v2342
  %2344 = vdwg.mxu0
  %2345 = vmatpush.msra.mxu0 %v294
  %2346 = vmatpush.msra.mxu0 %v293
  %2347 = vmatpush.msra.mxu0 %v292
  %2348 = vmatpush.msra.mxu0 %v291
  %2349 = vmatpush.msra.mxu0 %v290
  %2350 = vmatpush.msra.mxu0 %v289
  %2351 = vmatpush.msra.mxu0 %v288
  %2352 = vmatpush.msra.mxu0 %v287
  %2353 = vmatpush.msra.mxu0 %v286
  %2354 = vmatpush.msra.mxu0 %v285
  %2355 = vmatpush.msra.mxu0 %v284
  %2356 = vmatpush.msra.mxu0 %v283
  %2357 = vmatpush.msra.mxu0 %v282
  %2358 = vmatpush.msra.mxu0 %v281
  %2359 = vmatpush.msra.mxu0 %v280
  %2360 = vmatpush.msra.mxu0 %v279
  %2361 = vmatmul.f32.gmra.mxu0 %v2016
  %v2362 = vpop.f32.mrf.mxu0
  %v2363 = vadd.f32 %v2343, %v2362
  %2364 = vdwg.mxu0
  %2365 = vmatpush.msra.mxu0 %v310
  %2366 = vmatpush.msra.mxu0 %v309
  %2367 = vmatpush.msra.mxu0 %v308
  %2368 = vmatpush.msra.mxu0 %v307
  %2369 = vmatpush.msra.mxu0 %v306
  %2370 = vmatpush.msra.mxu0 %v305
  %2371 = vmatpush.msra.mxu0 %v304
  %2372 = vmatpush.msra.mxu0 %v303
  %2373 = vmatpush.msra.mxu0 %v302
  %2374 = vmatpush.msra.mxu0 %v301
  %2375 = vmatpush.msra.mxu0 %v300
  %2376 = vmatpush.msra.mxu0 %v299
  %2377 = vmatpush.msra.mxu0 %v298
  %2378 = vmatpush.msra.mxu0 %v297
  %2379 = vmatpush.msra.mxu0 %v296
  %2380 = vmatpush.msra.mxu0 %v295
  %2381 = vmatmul.f32.gmra.mxu0 %v2017
  %v2382 = vpop.f32.mrf.mxu0
  %v2383 = vadd.f32 %v2363, %v2382
  %2384 = vdwg.mxu0
  %2385 = vmatpush.msra.mxu0 %v326
  %2386 = vmatpush.msra.mxu0 %v325
  %2387 = vmatpush.msra.mxu0 %v324
  %2388 = vmatpush.msra.mxu0 %v323
  %2389 = vmatpush.msra.mxu0 %v322
  %2390 = vmatpush.msra.mxu0 %v321
  %2391 = vmatpush.msra.mxu0 %v320
  %2392 = vmatpush.msra.mxu0 %v319
  %2393 = vmatpush.msra.mxu0 %v318
  %2394 = vmatpush.msra.mxu0 %v317
  %2395 = vmatpush.msra.mxu0 %v316
  %2396 = vmatpush.msra.mxu0 %v315
  %2397 = vmatpush.msra.mxu0 %v314
  %2398 = vmatpush.msra.mxu0 %v313
  %2399 = vmatpush.msra.mxu0 %v312
  %2400 = vmatpush.msra.mxu0 %v311
  %2401 = vmatmul.f32.gmra.mxu0 %v2018
  %v2402 = vpop.f32.mrf.mxu0
  %v2403 = vadd.f32 %v2383, %v2402
  %2404 = vdwg.mxu0
  %2405 = vmatpush.msra.mxu0 %v342
  %2406 = vmatpush.msra.mxu0 %v341
  %2407 = vmatpush.msra.mxu0 %v340
  %2408 = vmatpush.msra.mxu0 %v339
  %2409 = vmatpush.msra.mxu0 %v338
  %2410 = vmatpush.msra.mxu0 %v337
  %2411 = vmatpush.msra.mxu0 %v336
  %2412 = vmatpush.msra.mxu0 %v335
  %2413 = vmatpush.msra.mxu0 %v334
  %2414 = vmatpush.msra.mxu0 %v333
  %2415 = vmatpush.msra.mxu0 %v332
  %2416 = vmatpush.msra.mxu0 %v331
  %2417 = vmatpush.msra.mxu0 %v330
  %2418 = vmatpush.msra.mxu0 %v329
  %2419 = vmatpush.msra.mxu0 %v328
  %2420 = vmatpush.msra.mxu0 %v327
  %2421 = vmatmul.f32.gmra.mxu0 %v2019
  %v2422 = vpop.f32.mrf.mxu0
  %v2423 = vadd.f32 %v2403, %v2422
  %2424 = vdwg.mxu0
  %2425 = vmatpush.msra.mxu0 %v358
  %2426 = vmatpush.msra.mxu0 %v357
  %2427 = vmatpush.msra.mxu0 %v356
  %2428 = vmatpush.msra.mxu0 %v355
  %2429 = vmatpush.msra.mxu0 %v354
  %2430 = vmatpush.msra.mxu0 %v353
  %2431 = vmatpush.msra.mxu0 %v352
  %2432 = vmatpush.msra.mxu0 %v351
  %2433 = vmatpush.msra.mxu0 %v350
  %2434 = vmatpush.msra.mxu0 %v349
  %2435 = vmatpush.msra.mxu0 %v348
  %2436 = vmatpush.msra.mxu0 %v347
  %2437 = vmatpush.msra.mxu0 %v346
  %2438 = vmatpush.msra.mxu0 %v345
  %2439 = vmatpush.msra.mxu0 %v344
  %2440 = vmatpush.msra.mxu0 %v343
  %2441 = vmatmul.f32.gmra.mxu0 %v2020
  %v2442 = vpop.f32.mrf.mxu0
  %v2443 = vadd.f32 %v2423, %v2442
  %2444 = vdwg.mxu0
  %2445 = vmatpush.msra.mxu0 %v374
  %2446 = vmatpush.msra.mxu0 %v373
  %2447 = vmatpush.msra.mxu0 %v372
  %2448 = vmatpush.msra.mxu0 %v371
  %2449 = vmatpush.msra.mxu0 %v370
  %2450 = vmatpush.msra.mxu0 %v369
  %2451 = vmatpush.msra.mxu0 %v368
  %2452 = vmatpush.msra.mxu0 %v367
  %2453 = vmatpush.msra.mxu0 %v366
  %2454 = vmatpush.msra.mxu0 %v365
  %2455 = vmatpush.msra.mxu0 %v364
  %2456 = vmatpush.msra.mxu0 %v363
  %2457 = vmatpush.msra.mxu0 %v362
  %2458 = vmatpush.msra.mxu0 %v361
  %2459 = vmatpush.msra.mxu0 %v360
  %2460 = vmatpush.msra.mxu0 %v359
  %2461 = vmatmul.f32.gmra.mxu0 %v2021
  %v2462 = vpop.f32.mrf.mxu0
  %v2463 = vadd.f32 %v2443, %v2462
  %2464 = vdwg.mxu0
  %2465 = vmatpush.msra.mxu0 %v390
  %2466 = vmatpush.msra.mxu0 %v389
  %2467 = vmatpush.msra.mxu0 %v388
  %2468 = vmatpush.msra.mxu0 %v387
  %2469 = vmatpush.msra.mxu0 %v386
  %2470 = vmatpush.msra.mxu0 %v385
  %2471 = vmatpush.msra.mxu0 %v384
  %2472 = vmatpush.msra.mxu0 %v383
  %2473 = vmatpush.msra.mxu0 %v382
  %2474 = vmatpush.msra.mxu0 %v381
  %2475 = vmatpush.msra.mxu0 %v380
  %2476 = vmatpush.msra.mxu0 %v379
  %2477 = vmatpush.msra.mxu0 %v378
  %2478 = vmatpush.msra.mxu0 %v377
  %2479 = vmatpush.msra.mxu0 %v376
  %2480 = vmatpush.msra.mxu0 %v375
  %2481 = vmatmul.f32.gmra.mxu0 %v2022
  %v2482 = vpop.f32.mrf.mxu0
  %v2483 = vadd.f32 %v2463, %v2482
  %2484 = vdwg.mxu0
  %2485 = vmatpush.msra.mxu0 %v406
  %2486 = vmatpush.msra.mxu0 %v405
  %2487 = vmatpush.msra.mxu0 %v404
  %2488 = vmatpush.msra.mxu0 %v403
  %2489 = vmatpush.msra.mxu0 %v402
  %2490 = vmatpush.msra.mxu0 %v401
  %2491 = vmatpush.msra.mxu0 %v400
  %2492 = vmatpush.msra.mxu0 %v399
  %2493 = vmatpush.msra.mxu0 %v398
  %2494 = vmatpush.msra.mxu0 %v397
  %2495 = vmatpush.msra.mxu0 %v396
  %2496 = vmatpush.msra.mxu0 %v395
  %2497 = vmatpush.msra.mxu0 %v394
  %2498 = vmatpush.msra.mxu0 %v393
  %2499 = vmatpush.msra.mxu0 %v392
  %2500 = vmatpush.msra.mxu0 %v391
  %2501 = vmatmul.f32.gmra.mxu0 %v2023
  %v2502 = vpop.f32.mrf.mxu0
  %v2503 = vadd.f32 %v2483, %v2502
  %2504 = vdwg.mxu0
  %2505 = vmatpush.msra.mxu0 %v422
  %2506 = vmatpush.msra.mxu0 %v421
  %2507 = vmatpush.msra.mxu0 %v420
  %2508 = vmatpush.msra.mxu0 %v419
  %2509 = vmatpush.msra.mxu0 %v418
  %2510 = vmatpush.msra.mxu0 %v417
  %2511 = vmatpush.msra.mxu0 %v416
  %2512 = vmatpush.msra.mxu0 %v415
  %2513 = vmatpush.msra.mxu0 %v414
  %2514 = vmatpush.msra.mxu0 %v413
  %2515 = vmatpush.msra.mxu0 %v412
  %2516 = vmatpush.msra.mxu0 %v411
  %2517 = vmatpush.msra.mxu0 %v410
  %2518 = vmatpush.msra.mxu0 %v409
  %2519 = vmatpush.msra.mxu0 %v408
  %2520 = vmatpush.msra.mxu0 %v407
  %2521 = vmatmul.f32.gmra.mxu0 %v2024
  %v2522 = vpop.f32.mrf.mxu0
  %v2523 = vadd.f32 %v2503, %v2522
  %2524 = vdwg.mxu0
  %v2525 = vmax.f32 %v1999, %v2523
  %v2526 = vld [vmem:[%s5] sm:$0x1]
  %v2528 = vperm.slane %v2526, 0
  %v2530 = vadd.f32 %v2525, %v2528
  %v2531 = vmax.f32 %v2530, 0.0
  %2532 = vst [vmem:[%s6] sm:$0xff] %v2531
  // Predicated region
  $region26: #{lenet5_forward.4} parent=0 // pred_check
    _
  $region27: #{lenet5_forward.4} parent=0 // pred_check_branch
    %2534 = sbr.rel (0) target = $region29
  $region28: #{lenet5_forward.4} parent=0 // pred_region
    _
  $region29: #{lenet5_forward.4} parent=0 // pred_fallthru
    _
  // Predicated region
  $region30: #{lenet5_forward.4} parent=0 // pred_check
    _
  $region31: #{lenet5_forward.4} parent=0 // pred_check_branch
    %2536 = sbr.rel (0) target = $region33
  $region32: #{lenet5_forward.4} parent=0 // pred_region
    _
  $region33: #{lenet5_forward.4} parent=0 // pred_fallthru
    _

</llo_original>
